<compile_context>
chip_gen: v7x
topology: tpu7x:2x2x1
jax: 0.10.0
libtpu: 0.0.40
codegen_flags: <defaults>
</compile_context>

<pallas_src>
import jax
import jax.numpy as jnp
from jax.experimental import pallas as pl
from jax.experimental.pallas import tpu as pltpu  # noqa: F401

# ----------------------------- small, consistent dims -----------------------------
B = 2          # batch
MEL = 32       # mel_bins
P = 32         # pre_net_out_size
H = 32         # decoder_hidden_size
E = 32         # enc_hidden_size  (encoder_out feature dim = 2*E)
A = 32         # attn_dim (== E)
F = 8          # n_filters
K = 5          # location_kernel_size (odd)
PAD = (K - 1) // 2
T_ENC = 8      # max_text_len
MT = 6         # number of mel frames (decoder time steps)

TA = T_ENC * A            # 256
GRU_IN = P + E + H        # 96 (same for both GRUs since P == E == A == H)
QLOC_IN = H + 2 * T_ENC   # 48
OUT_IN = H + A            # 64
BIGW = MEL + 1 + P        # 65: [mel | gate | pre-ReLU prenet h1]

# weight-slab row offsets (all multiples of 16 -> clean bf16 sublane tiles)
R_GA = 0                    # attn GRU  (96, 192)
R_GO = R_GA + GRU_IN        # out  GRU  (96, 192)
R_QL = R_GO + GRU_IN        # fused query+location (48, 256)
R_SC = R_QL + QLOC_IN       # block-diag score proj (256, 8)
R_BIG = R_SC + TA           # fused mel|gate|pre1 (64, 65)
R_P2 = R_BIG + OUT_IN       # prenet W2 (32, 32)
R_TOT = R_P2 + P            # 592 rows total
WSLAB_LANES = 256


# --------------------------------- the kernel ---------------------------------
def decoder_kernel(wslab_ref, bslab_ref, kbs_ref, keys3_ref, drop_ref,
                   mel_ref, att_ref, gate_ref):
    # per-call activations (tiny) are hoisted; weights are loaded at use site.
    keysb = kbs_ref[:, 0:TA]                     # (B, 256) keys_projected + loc bias
    sbias = kbs_ref[:, TA:TA + T_ENC]            # (B, 8)   score bias + key mask
    keys3 = keys3_ref[...]                       # (B, T, A)

    def gru(x_cat, row0, brow, h_prev):
        # one block-diagonal bf16 dot -> [gi | gh]; PyTorch gate order r, z, n.
        # sigmoid folded to 0.5*tanh+0.5 (r/z columns pre-scaled by 0.5).
        w = wslab_ref[row0:row0 + GRU_IN, 0:6 * H]        # (96, 192) bf16
        b = bslab_ref[brow:brow + 1, 0:6 * H]             # (1, 192)  f32
        g = jnp.dot(x_cat.astype(jnp.bfloat16), w,
                    preferred_element_type=jnp.float32) + b
        gi, gh = g[:, :3 * H], g[:, 3 * H:]
        r = 0.5 * jnp.tanh(gi[:, :H] + gh[:, :H]) + 0.5
        z = 0.5 * jnp.tanh(gi[:, H:2 * H] + gh[:, H:2 * H]) + 0.5
        n = jnp.tanh(gi[:, 2 * H:] + r * gh[:, 2 * H:])
        return (1.0 - z) * n + z * h_prev

    # init_decoder_states: everything zero; prenet(SOS zeros) == 0 (no biases)
    dec_in = jnp.zeros((B, P), jnp.float32)
    h_a = jnp.zeros((B, H), jnp.float32)
    h_o = jnp.zeros((B, H), jnp.float32)
    a_w = jnp.zeros((B, T_ENC), jnp.float32)
    a_c = jnp.zeros((B, T_ENC), jnp.float32)
    ctx = jnp.zeros((B, A), jnp.float32)

    for t in range(MT):  # MT is tiny & static: full unroll, state stays in vregs
        # ----- attention RNN (GRU on concat(dec_input, context)) -----
        h_a = gru(jnp.concatenate([dec_in, ctx, h_a], axis=-1), R_GA, 0, h_a)
        # TODO(synk): nn.Dropout(0.1) on attn_rnn_hidden treated as identity.

        # ----- location-sensitive attention (query + location fused: 1 dot) -----
        ql_in = jnp.concatenate([h_a, a_w, a_c], axis=-1)             # (B, 48)
        wql = wslab_ref[R_QL:R_QL + QLOC_IN, 0:TA]                    # (48, 256) bf16
        e = jnp.tanh(jnp.dot(ql_in.astype(jnp.bfloat16), wql,
                             preferred_element_type=jnp.float32) + keysb)
        wsc = wslab_ref[R_SC:R_SC + TA, 0:T_ENC]                      # (256, 8) bf16
        scores = jnp.dot(e.astype(jnp.bfloat16), wsc,
                         preferred_element_type=jnp.float32) + sbias  # (B, T)
        smax = jnp.max(scores, axis=-1, keepdims=True)
        ex = jnp.exp(scores - smax)
        w = ex / jnp.sum(ex, axis=-1, keepdims=True)                  # exact softmax
        ctx = jnp.sum(w[:, :, None] * keys3, axis=1)                  # (B, A)
        a_w = w
        a_c = a_c + w

        # ----- output RNN (GRU on concat(attn_hidden, context)) -----
        h_o = gru(jnp.concatenate([h_a, ctx, h_o], axis=-1), R_GO, 1, h_o)
        # TODO(synk): nn.Dropout(0.1) on out_rnn_hidden treated as identity.

        # ----- fused mel | gate | (mel @ prenet-W1) projection: 1 dot -----
        wbig = wslab_ref[R_BIG:R_BIG + OUT_IN, 0:BIGW]                # (64, 65) bf16
        bbig = bslab_ref[2:3, 0:BIGW]                                 # (1, 65)  f32
        hc = jnp.concatenate([h_o, ctx], axis=-1)                     # (B, 64)
        big = jnp.dot(hc.astype(jnp.bfloat16), wbig,
                      preferred_element_type=jnp.float32) + bbig      # (B, 65)
        mel = big[:, :MEL]
        gate = big[:, MEL:MEL + 1]
        h1 = jnp.maximum(big[:, MEL + 1:], 0.0) * drop_ref[t, :, 0:P]  # relu+drop p=.5

        # per-step stores feed nothing downstream -> off the recurrent chain
        mel_ref[:, t, :] = mel
        att_ref[:, t, :] = w
        gate_ref[:, t, :] = gate

        # ----- remaining PreNet half -> next decoder input (teacher_force = 0.0) -----
        wp2 = wslab_ref[R_P2:R_P2 + P, 0:P]                           # (32, 32) bf16
        dec_in = jnp.maximum(
            jnp.dot(h1.astype(jnp.bfloat16), wp2,
                    preferred_element_type=jnp.float32), 0.0) * drop_ref[t, :, P:2 * P]


# ------------------------------ parameter-only packing ------------------------------
def pack_params(p):
    """All packing that depends only on the weights (call once, outside the hot path)."""
    # GRU cells as block-diagonal fused weights: concat([x, h]) @ W -> [gi | gh],
    # with the r/z gate columns pre-scaled by 0.5 (sigmoid(x) = 0.5*tanh(x/2)+0.5).
    gate_scale = jnp.concatenate(
        [jnp.full((2 * H,), 0.5), jnp.ones((H,)),
         jnp.full((2 * H,), 0.5), jnp.ones((H,))]).astype(jnp.float32)

    def gru_bd(wih_t, whh_t, bih, bhh):
        din = wih_t.shape[0]
        W = jnp.zeros((din + H, 6 * H), jnp.float32)
        W = W.at[:din, :3 * H].set(wih_t)
        W = W.at[din:, 3 * H:].set(whh_t)
        b = jnp.concatenate([bih, bhh], axis=-1)
        return W * gate_scale[None, :], b * gate_scale[None, :]

    wga, bga = gru_bd(p["wih_aT"], p["whh_aT"], p["bih_a"], p["bhh_a"])
    wgo, bgo = gru_bd(p["wih_oT"], p["whh_oT"], p["bih_o"], p["bhh_o"])

    # fused query + location projection: [h_a | a_w | a_c] @ [wq_tiled; Ca; Cc]
    wq_tiled = jnp.tile(p["wqT"], (1, T_ENC))                         # (H, T*A)
    Wa = p["wconv_a"] @ p["wlocT"]                                    # (K, A)
    Wc = p["wconv_c"] @ p["wlocT"]                                    # (K, A)
    s_idx = jnp.arange(T_ENC)[:, None]                                # input position t'
    t_idx = jnp.arange(T_ENC)[None, :]                                # output position s
    k_idx = s_idx - t_idx + PAD
    valid = (k_idx >= 0) & (k_idx < K)
    k_safe = jnp.clip(k_idx, 0, K - 1)
    Ca = jnp.where(valid[:, :, None], Wa[k_safe], 0.0).reshape(T_ENC, TA)
    Cc = jnp.where(valid[:, :, None], Wc[k_safe], 0.0).reshape(T_ENC, TA)
    wqloc = jnp.concatenate([wq_tiled, Ca, Cc], axis=0)               # (48, T*A)

    # block-diagonal score projection (sum over A per T block)
    wsc = (jnp.eye(T_ENC, dtype=jnp.float32)[:, None, :]
           * p["ws"][0][None, :, None]).reshape(TA, T_ENC)            # (T*A, T)

    # fused mel | gate | (mel @ prenet-W1) projection (linear composition)
    wbig = jnp.concatenate([p["wmelT"], p["wgateT"], p["wmelT"] @ p["wpre1T"]],
                           axis=1)                                    # (64, 65)
    bbig = jnp.concatenate([p["bmel"], p["bgate"], p["bmel"] @ p["wpre1T"]],
                           axis=1)                                    # (1, 65)

    def pad_lanes(x, lanes=WSLAB_LANES):
        return jnp.pad(x, ((0, 0), (0, lanes - x.shape[1])))

    wslab = jnp.concatenate(
        [pad_lanes(wga), pad_lanes(wgo), pad_lanes(wqloc),
         pad_lanes(wsc), pad_lanes(wbig), pad_lanes(p["wpre2T"])],
        axis=0).astype(jnp.bfloat16)                                  # (592, 256) bf16
    assert wslab.shape == (R_TOT, WSLAB_LANES)
    bslab = jnp.concatenate([pad_lanes(bga), pad_lanes(bgo), pad_lanes(bbig)],
                            axis=0)                                   # (3, 256) f32

    return dict(wslab=wslab, bslab=bslab, wkT=p["wkT"],
                bloc_tiled=jnp.tile(p["bloc"], (1, T_ENC)), bs=p["bs"])


# ------------------------------ wrapper / glue ------------------------------
@jax.jit
def decoder_forward(packed, enc_outputs, text_lens, mel_spec_lens, drop1, drop2):
    # keys projection hoisted out of the sequential kernel (f32)
    keys3 = jnp.einsum('bte,ea->bta', enc_outputs, packed["wkT"])     # (B, T, A)
    keysb = keys3.reshape(B, TA) + packed["bloc_tiled"]               # + location bias
    enc_mask = jnp.arange(T_ENC)[None, :] > text_lens[:, None]        # module: base > lens
    sbias = packed["bs"] + jnp.where(enc_mask, jnp.float32(-1e30), 0.0)
    kbs = jnp.concatenate([keysb, sbias], axis=-1)                    # (B, 264)
    drop12 = jnp.concatenate([drop1, drop2], axis=-1)                 # (MT, B, 2P)

    mel_o, att_o, gate_o = pl.pallas_call(
        decoder_kernel,
        out_shape=(jax.ShapeDtypeStruct((B, MT, MEL), jnp.float32),
                   jax.ShapeDtypeStruct((B, MT, T_ENC), jnp.float32),
                   jax.ShapeDtypeStruct((B, MT, 1), jnp.float32)),
    )(packed["wslab"], packed["bslab"], kbs, keys3, drop12)

    gate_o = gate_o[..., 0]                                           # (B, MT)

    # mask_output (glue, elementwise; module uses strict >)
    mask = jnp.arange(MT)[None, :] > mel_spec_lens[:, None]
    masked_mel = jnp.where(mask[:, :, None], 0.0, mel_o)
    masked_gate = jnp.where(mask, 1000.0, gate_o)
    return masked_mel, masked_gate, att_o, mask


# ------------------- pure-JAX reference (literal per-step math) -------------------
def reference_forward(p, enc, enc_mask_f, d1, d2):
    keys = (enc.reshape(B * T_ENC, 2 * E) @ p["wkT"]).reshape(B, T_ENC, A)
    dec_in = jnp.zeros((B, P), jnp.float32)
    attn_h = jnp.zeros((B, H), jnp.float32)
    out_h = jnp.zeros((B, H), jnp.float32)
    a_w = jnp.zeros((B, T_ENC), jnp.float32)
    a_c = jnp.zeros((B, T_ENC), jnp.float32)
    ctx = jnp.zeros((B, A), jnp.float32)

    def gru(x_parts, wih, h, whh, bih, bhh):
        gi, off = bih, 0
        for xp in x_parts:
            d = xp.shape[-1]
            gi = gi + xp @ wih[off:off + d]
            off += d
        gh = h @ whh + bhh
        r = jax.nn.sigmoid(gi[:, :H] + gh[:, :H])
        z = jax.nn.sigmoid(gi[:, H:2 * H] + gh[:, H:2 * H])
        n = jnp.tanh(gi[:, 2 * H:] + r * gh[:, 2 * H:])
        return (1.0 - z) * n + z * h

    mels, gates, atts = [], [], []
    for t in range(MT):
        h_a = gru([dec_in, ctx], p["wih_aT"], attn_h, p["whh_aT"], p["bih_a"], p["bhh_a"])
        attn_h = h_a
        pq = h_a @ p["wqT"]
        a_pad = jnp.pad(a_w, ((0, 0), (PAD, PAD)))
        c_pad = jnp.pad(a_c, ((0, 0), (PAD, PAD)))
        conv = jnp.zeros((B, T_ENC, F), jnp.float32)
        for k in range(K):
            conv = conv + a_pad[:, k:k + T_ENC][:, :, None] * p["wconv_a"][k][None, None, :]
            conv = conv + c_pad[:, k:k + T_ENC][:, :, None] * p["wconv_c"][k][None, None, :]
        loc = (conv.reshape(B * T_ENC, F) @ p["wlocT"]).reshape(B, T_ENC, A) + p["bloc"][None]
        e = jnp.tanh(pq[:, None, :] + keys + loc)
        scores = jnp.sum(e * p["ws"][None], axis=-1) + p["bs"]
        scores = jnp.where(enc_mask_f > 0.5, -1e30, scores)
        w = jax.nn.softmax(scores, axis=1)
        ctx = jnp.sum(w[:, :, None] * keys, axis=1)
        a_w = w
        a_c = a_c + w
        h_o = gru([h_a, ctx], p["wih_oT"], out_h, p["whh_oT"], p["bih_o"], p["bhh_o"])
        out_h = h_o
        mel = h_o @ p["wmelT"][:H] + ctx @ p["wmelT"][H:] + p["bmel"]
        gate = h_o @ p["wgateT"][:H] + ctx @ p["wgateT"][H:] + p["bgate"]
        mels.append(mel); gates.append(gate[:, 0]); atts.append(w)
        h1 = jnp.maximum(mel @ p["wpre1T"], 0.0) * d1[t]
        dec_in = jnp.maximum(h1 @ p["wpre2T"], 0.0) * d2[t]
    return jnp.stack(mels, 1), jnp.stack(gates, 1), jnp.stack(atts, 1)


def init_params(key):
    ks = jax.random.split(key, 22)
    w = lambda k, shape, s=0.1: jax.random.normal(k, shape, jnp.float32) * s
    p = {}
    p["wpre1T"] = w(ks[0], (MEL, P))
    p["wpre2T"] = w(ks[1], (P, P))
    p["wih_aT"] = w(ks[2], (P + E, 3 * H))
    p["whh_aT"] = w(ks[3], (H, 3 * H))
    p["bih_a"] = w(ks[4], (1, 3 * H))
    p["bhh_a"] = w(ks[5], (1, 3 * H))
    p["wqT"] = w(ks[6], (H, A))
    p["wkT"] = w(ks[7], (2 * E, A))
    p["ws"] = w(ks[8], (1, A))
    p["bs"] = w(ks[9], (1, 1))
    wconv = w(ks[10], (F, 2, K))                      # PyTorch Conv1d weight (F, 2, K)
    p["wconv_a"] = jnp.transpose(wconv[:, 0, :])      # (K, F)
    p["wconv_c"] = jnp.transpose(wconv[:, 1, :])      # (K, F)
    p["wlocT"] = w(ks[11], (F, A))
    p["bloc"] = w(ks[12], (1, A))
    p["wih_oT"] = w(ks[13], (H + A, 3 * H))
    p["whh_oT"] = w(ks[14], (H, 3 * H))
    p["bih_o"] = w(ks[15], (1, 3 * H))
    p["bhh_o"] = w(ks[16], (1, 3 * H))
    p["wmelT"] = w(ks[17], (H + A, MEL))
    p["bmel"] = w(ks[18], (1, MEL))
    p["wgateT"] = w(ks[19], (H + A, 1))
    p["bgate"] = w(ks[20], (1, 1))
    return p


if __name__ == "__main__":
    root = jax.random.PRNGKey(0)
    kpar, kenc, kmel, kd1, kd2 = jax.random.split(root, 5)
    params = init_params(kpar)
    packed = pack_params(params)          # parameter-only packing, done once

    enc_outputs = jax.random.normal(kenc, (B, T_ENC, 2 * E), jnp.float32)
    text_lens = jnp.array([6, 4], jnp.int32)
    mel_spec_true = jax.random.normal(kmel, (B, MT, MEL), jnp.float32)  # only shape matters (ratio=0)
    mel_spec_lens = jnp.array([5, 3], jnp.int32)

    # PreNet dropout masks (p=0.5, training=True), scale 1/(1-p)=2.0 — shared by kernel & reference.
    drop1 = jax.random.bernoulli(kd1, 0.5, (MT, B, P)).astype(jnp.float32) * 2.0
    drop2 = jax.random.bernoulli(kd2, 0.5, (MT, B, P)).astype(jnp.float32) * 2.0

    masked_mel, masked_gate, attn_out, mask = decoder_forward(
        packed, enc_outputs, text_lens, mel_spec_lens, drop1, drop2)
    jax.block_until_ready((masked_mel, masked_gate, attn_out, mask))

    # sanity check vs pure-JAX f32 reference
    enc_mask_f = (jnp.arange(T_ENC)[None, :] > text_lens[:, None]).astype(jnp.float32)
    ref_mel, ref_gate, ref_att = reference_forward(params, enc_outputs, enc_mask_f, drop1, drop2)
    mel_mask = jnp.arange(MT)[None, :] > mel_spec_lens[:, None]
    ref_mel = jnp.where(mel_mask[:, :, None], 0.0, ref_mel)
    ref_gate = jnp.where(mel_mask, 1000.0, ref_gate)

    err = max(float(jnp.max(jnp.abs(masked_mel - ref_mel))),
              float(jnp.max(jnp.abs(masked_gate - ref_gate))),
              float(jnp.max(jnp.abs(attn_out - ref_att))))
    assert err < 5e-2, f"kernel vs reference mismatch: {err}"
    print("KERNEL_OK")
</pallas_src>

<mosaic_0001>
module attributes {stable_mosaic.version = 11 : i64} {
  func.func @decoder_kernel(%arg0: memref<592x256xbf16, #tpu.memory_space<vmem>>, %arg1: memref<3x256xf32, #tpu.memory_space<vmem>>, %arg2: memref<2x264xf32, #tpu.memory_space<vmem>>, %arg3: memref<2x8x32xf32, #tpu.memory_space<vmem>>, %arg4: memref<6x2x64xf32, #tpu.memory_space<vmem>>, %arg5: memref<2x6x32xf32, #tpu.memory_space<vmem>>, %arg6: memref<2x6x8xf32, #tpu.memory_space<vmem>>, %arg7: memref<2x6x1xf32, #tpu.memory_space<vmem>>) attributes {dimension_semantics = [], scalar_prefetch = 0 : i64, scratch_operands = 0 : i64, tpu.core_type = #tpu.core_type<tc>} {
    %c0 = arith.constant 0 : index
    %c0_0 = arith.constant 0 : index
    %0 = vector.load %arg2[%c0, %c0_0] : memref<2x264xf32, #tpu.memory_space<vmem>>, vector<2x256xf32>
    %c0_1 = arith.constant 0 : index
    %c256 = arith.constant 256 : index
    %1 = vector.load %arg2[%c0_1, %c256] : memref<2x264xf32, #tpu.memory_space<vmem>>, vector<2x8xf32>
    %c0_2 = arith.constant 0 : index
    %c0_3 = arith.constant 0 : index
    %c0_4 = arith.constant 0 : index
    %2 = vector.load %arg3[%c0_2, %c0_3, %c0_4] : memref<2x8x32xf32, #tpu.memory_space<vmem>>, vector<2x8x32xf32>
    %cst = arith.constant 0.000000e+00 : f32
    %3 = vector.broadcast %cst : f32 to vector<2x32xf32>
    %cst_5 = arith.constant 0.000000e+00 : f32
    %4 = vector.broadcast %cst_5 : f32 to vector<2x32xf32>
    %cst_6 = arith.constant 0.000000e+00 : f32
    %5 = vector.broadcast %cst_6 : f32 to vector<2x32xf32>
    %cst_7 = arith.constant 0.000000e+00 : f32
    %6 = vector.broadcast %cst_7 : f32 to vector<2x8xf32>
    %cst_8 = arith.constant 0.000000e+00 : f32
    %7 = vector.broadcast %cst_8 : f32 to vector<2x8xf32>
    %cst_9 = arith.constant 0.000000e+00 : f32
    %8 = vector.broadcast %cst_9 : f32 to vector<2x32xf32>
    %9 = tpu.concatenate %3, %8, %4 in 1 : vector<2x32xf32>, vector<2x32xf32>, vector<2x32xf32> -> vector<2x96xf32>
    %c0_10 = arith.constant 0 : index
    %c0_11 = arith.constant 0 : index
    %10 = vector.load %arg0[%c0_10, %c0_11] : memref<592x256xbf16, #tpu.memory_space<vmem>>, vector<96x192xbf16>
    %c0_12 = arith.constant 0 : index
    %c0_13 = arith.constant 0 : index
    %11 = vector.load %arg1[%c0_12, %c0_13] : memref<3x256xf32, #tpu.memory_space<vmem>>, vector<1x192xf32>
    %12 = arith.truncf %9 : vector<2x96xf32> to vector<2x96xbf16>
    %cst_14 = arith.constant dense<0.000000e+00> : vector<2x192xf32>
    %13 = tpu.matmul %12, %10, %cst_14 {dimension_numbers = #tpu.dot_dimension_numbers<[1], [0], [0], [1], [0, 0, 1, 1], [], []>} : vector<2x96xbf16>, vector<96x192xbf16>, vector<2x192xf32> -> vector<2x192xf32>
    %14 = vector.broadcast %11 : vector<1x192xf32> to vector<2x192xf32>
    %15 = arith.addf %13, %14 : vector<2x192xf32>
    %16 = vector.extract_strided_slice %15 {offsets = [0, 0], sizes = [2, 96], strides = [1, 1]} : vector<2x192xf32> to vector<2x96xf32>
    %17 = vector.extract_strided_slice %15 {offsets = [0, 96], sizes = [2, 96], strides = [1, 1]} : vector<2x192xf32> to vector<2x96xf32>
    %18 = vector.extract_strided_slice %16 {offsets = [0, 0], sizes = [2, 32], strides = [1, 1]} : vector<2x96xf32> to vector<2x32xf32>
    %19 = vector.extract_strided_slice %17 {offsets = [0, 0], sizes = [2, 32], strides = [1, 1]} : vector<2x96xf32> to vector<2x32xf32>
    %20 = arith.addf %18, %19 : vector<2x32xf32>
    %21 = math.tanh %20 : vector<2x32xf32>
    %cst_15 = arith.constant 5.000000e-01 : f32
    %22 = vector.broadcast %cst_15 : f32 to vector<2x32xf32>
    %23 = arith.mulf %22, %21 : vector<2x32xf32>
    %cst_16 = arith.constant 5.000000e-01 : f32
    %24 = vector.broadcast %cst_16 : f32 to vector<2x32xf32>
    %25 = arith.addf %23, %24 : vector<2x32xf32>
    %26 = vector.extract_strided_slice %16 {offsets = [0, 32], sizes = [2, 32], strides = [1, 1]} : vector<2x96xf32> to vector<2x32xf32>
    %27 = vector.extract_strided_slice %17 {offsets = [0, 32], sizes = [2, 32], strides = [1, 1]} : vector<2x96xf32> to vector<2x32xf32>
    %28 = arith.addf %26, %27 : vector<2x32xf32>
    %29 = math.tanh %28 : vector<2x32xf32>
    %cst_17 = arith.constant 5.000000e-01 : f32
    %30 = vector.broadcast %cst_17 : f32 to vector<2x32xf32>
    %31 = arith.mulf %30, %29 : vector<2x32xf32>
    %cst_18 = arith.constant 5.000000e-01 : f32
    %32 = vector.broadcast %cst_18 : f32 to vector<2x32xf32>
    %33 = arith.addf %31, %32 : vector<2x32xf32>
    %34 = vector.extract_strided_slice %16 {offsets = [0, 64], sizes = [2, 32], strides = [1, 1]} : vector<2x96xf32> to vector<2x32xf32>
    %35 = vector.extract_strided_slice %17 {offsets = [0, 64], sizes = [2, 32], strides = [1, 1]} : vector<2x96xf32> to vector<2x32xf32>
    %36 = arith.mulf %25, %35 : vector<2x32xf32>
    %37 = arith.addf %34, %36 : vector<2x32xf32>
    %38 = math.tanh %37 : vector<2x32xf32>
    %cst_19 = arith.constant 1.000000e+00 : f32
    %39 = vector.broadcast %cst_19 : f32 to vector<2x32xf32>
    %40 = arith.subf %39, %33 : vector<2x32xf32>
    %41 = arith.mulf %40, %38 : vector<2x32xf32>
    %42 = arith.mulf %33, %4 : vector<2x32xf32>
    %43 = arith.addf %41, %42 : vector<2x32xf32>
    %44 = tpu.concatenate %43, %6, %7 in 1 : vector<2x32xf32>, vector<2x8xf32>, vector<2x8xf32> -> vector<2x48xf32>
    %c192 = arith.constant 192 : index
    %c0_20 = arith.constant 0 : index
    %45 = vector.load %arg0[%c192, %c0_20] : memref<592x256xbf16, #tpu.memory_space<vmem>>, vector<48x256xbf16>
    %46 = arith.truncf %44 : vector<2x48xf32> to vector<2x48xbf16>
    %cst_21 = arith.constant dense<0.000000e+00> : vector<2x256xf32>
    %47 = tpu.matmul %46, %45, %cst_21 {dimension_numbers = #tpu.dot_dimension_numbers<[1], [0], [0], [1], [0, 0, 1, 1], [], []>} : vector<2x48xbf16>, vector<48x256xbf16>, vector<2x256xf32> -> vector<2x256xf32>
    %48 = arith.addf %47, %0 : vector<2x256xf32>
    %49 = math.tanh %48 : vector<2x256xf32>
    %c240 = arith.constant 240 : index
    %c0_22 = arith.constant 0 : index
    %50 = vector.load %arg0[%c240, %c0_22] : memref<592x256xbf16, #tpu.memory_space<vmem>>, vector<256x8xbf16>
    %51 = arith.truncf %49 : vector<2x256xf32> to vector<2x256xbf16>
    %cst_23 = arith.constant dense<0.000000e+00> : vector<2x8xf32>
    %52 = tpu.matmul %51, %50, %cst_23 {dimension_numbers = #tpu.dot_dimension_numbers<[1], [0], [0], [1], [0, 0, 1, 1], [], []>} : vector<2x256xbf16>, vector<256x8xbf16>, vector<2x8xf32> -> vector<2x8xf32>
    %53 = arith.addf %52, %1 : vector<2x8xf32>
    %cst_24 = arith.constant dense<0xFF800000> : vector<2xf32>
    %54 = vector.multi_reduction <maximumf>, %53, %cst_24 [1] : vector<2x8xf32> to vector<2xf32>
    %55 = vector.shape_cast %54 : vector<2xf32> to vector<2x1xf32>
    %56 = vector.broadcast %55 : vector<2x1xf32> to vector<2x8xf32>
    %57 = arith.subf %53, %56 : vector<2x8xf32>
    %58 = math.exp %57 : vector<2x8xf32>
    %cst_25 = arith.constant dense<0.000000e+00> : vector<2xf32>
    %59 = vector.multi_reduction <add>, %58, %cst_25 [1] : vector<2x8xf32> to vector<2xf32>
    %60 = vector.shape_cast %59 : vector<2xf32> to vector<2x1xf32>
    %61 = vector.broadcast %60 : vector<2x1xf32> to vector<2x8xf32>
    %62 = arith.divf %58, %61 : vector<2x8xf32>
    %63 = vector.shape_cast %62 : vector<2x8xf32> to vector<2x8x1xf32>
    %64 = vector.broadcast %63 : vector<2x8x1xf32> to vector<2x8x32xf32>
    %65 = arith.mulf %64, %2 : vector<2x8x32xf32>
    %cst_26 = arith.constant dense<0.000000e+00> : vector<2x32xf32>
    %66 = vector.multi_reduction <add>, %65, %cst_26 [1] : vector<2x8x32xf32> to vector<2x32xf32>
    %67 = arith.addf %7, %62 : vector<2x8xf32>
    %68 = tpu.concatenate %43, %66, %5 in 1 : vector<2x32xf32>, vector<2x32xf32>, vector<2x32xf32> -> vector<2x96xf32>
    %c96 = arith.constant 96 : index
    %c0_27 = arith.constant 0 : index
    %69 = vector.load %arg0[%c96, %c0_27] : memref<592x256xbf16, #tpu.memory_space<vmem>>, vector<96x192xbf16>
    %c1 = arith.constant 1 : index
    %c0_28 = arith.constant 0 : index
    %70 = vector.load %arg1[%c1, %c0_28] : memref<3x256xf32, #tpu.memory_space<vmem>>, vector<1x192xf32>
    %71 = arith.truncf %68 : vector<2x96xf32> to vector<2x96xbf16>
    %cst_29 = arith.constant dense<0.000000e+00> : vector<2x192xf32>
    %72 = tpu.matmul %71, %69, %cst_29 {dimension_numbers = #tpu.dot_dimension_numbers<[1], [0], [0], [1], [0, 0, 1, 1], [], []>} : vector<2x96xbf16>, vector<96x192xbf16>, vector<2x192xf32> -> vector<2x192xf32>
    %73 = vector.broadcast %70 : vector<1x192xf32> to vector<2x192xf32>
    %74 = arith.addf %72, %73 : vector<2x192xf32>
    %75 = vector.extract_strided_slice %74 {offsets = [0, 0], sizes = [2, 96], strides = [1, 1]} : vector<2x192xf32> to vector<2x96xf32>
    %76 = vector.extract_strided_slice %74 {offsets = [0, 96], sizes = [2, 96], strides = [1, 1]} : vector<2x192xf32> to vector<2x96xf32>
    %77 = vector.extract_strided_slice %75 {offsets = [0, 0], sizes = [2, 32], strides = [1, 1]} : vector<2x96xf32> to vector<2x32xf32>
    %78 = vector.extract_strided_slice %76 {offsets = [0, 0], sizes = [2, 32], strides = [1, 1]} : vector<2x96xf32> to vector<2x32xf32>
    %79 = arith.addf %77, %78 : vector<2x32xf32>
    %80 = math.tanh %79 : vector<2x32xf32>
    %cst_30 = arith.constant 5.000000e-01 : f32
    %81 = vector.broadcast %cst_30 : f32 to vector<2x32xf32>
    %82 = arith.mulf %81, %80 : vector<2x32xf32>
    %cst_31 = arith.constant 5.000000e-01 : f32
    %83 = vector.broadcast %cst_31 : f32 to vector<2x32xf32>
    %84 = arith.addf %82, %83 : vector<2x32xf32>
    %85 = vector.extract_strided_slice %75 {offsets = [0, 32], sizes = [2, 32], strides = [1, 1]} : vector<2x96xf32> to vector<2x32xf32>
    %86 = vector.extract_strided_slice %76 {offsets = [0, 32], sizes = [2, 32], strides = [1, 1]} : vector<2x96xf32> to vector<2x32xf32>
    %87 = arith.addf %85, %86 : vector<2x32xf32>
    %88 = math.tanh %87 : vector<2x32xf32>
    %cst_32 = arith.constant 5.000000e-01 : f32
    %89 = vector.broadcast %cst_32 : f32 to vector<2x32xf32>
    %90 = arith.mulf %89, %88 : vector<2x32xf32>
    %cst_33 = arith.constant 5.000000e-01 : f32
    %91 = vector.broadcast %cst_33 : f32 to vector<2x32xf32>
    %92 = arith.addf %90, %91 : vector<2x32xf32>
    %93 = vector.extract_strided_slice %75 {offsets = [0, 64], sizes = [2, 32], strides = [1, 1]} : vector<2x96xf32> to vector<2x32xf32>
    %94 = vector.extract_strided_slice %76 {offsets = [0, 64], sizes = [2, 32], strides = [1, 1]} : vector<2x96xf32> to vector<2x32xf32>
    %95 = arith.mulf %84, %94 : vector<2x32xf32>
    %96 = arith.addf %93, %95 : vector<2x32xf32>
    %97 = math.tanh %96 : vector<2x32xf32>
    %cst_34 = arith.constant 1.000000e+00 : f32
    %98 = vector.broadcast %cst_34 : f32 to vector<2x32xf32>
    %99 = arith.subf %98, %92 : vector<2x32xf32>
    %100 = arith.mulf %99, %97 : vector<2x32xf32>
    %101 = arith.mulf %92, %5 : vector<2x32xf32>
    %102 = arith.addf %100, %101 : vector<2x32xf32>
    %c496 = arith.constant 496 : index
    %c0_35 = arith.constant 0 : index
    %103 = vector.load %arg0[%c496, %c0_35] : memref<592x256xbf16, #tpu.memory_space<vmem>>, vector<64x65xbf16>
    %c2 = arith.constant 2 : index
    %c0_36 = arith.constant 0 : index
    %104 = vector.load %arg1[%c2, %c0_36] : memref<3x256xf32, #tpu.memory_space<vmem>>, vector<1x65xf32>
    %105 = tpu.concatenate %102, %66 in 1 : vector<2x32xf32>, vector<2x32xf32> -> vector<2x64xf32>
    %106 = arith.truncf %105 : vector<2x64xf32> to vector<2x64xbf16>
    %cst_37 = arith.constant dense<0.000000e+00> : vector<2x65xf32>
    %107 = tpu.matmul %106, %103, %cst_37 {dimension_numbers = #tpu.dot_dimension_numbers<[1], [0], [0], [1], [0, 0, 1, 1], [], []>} : vector<2x64xbf16>, vector<64x65xbf16>, vector<2x65xf32> -> vector<2x65xf32>
    %108 = vector.broadcast %104 : vector<1x65xf32> to vector<2x65xf32>
    %109 = arith.addf %107, %108 : vector<2x65xf32>
    %110 = vector.extract_strided_slice %109 {offsets = [0, 0], sizes = [2, 32], strides = [1, 1]} : vector<2x65xf32> to vector<2x32xf32>
    %111 = vector.extract_strided_slice %109 {offsets = [0, 32], sizes = [2, 1], strides = [1, 1]} : vector<2x65xf32> to vector<2x1xf32>
    %112 = vector.extract_strided_slice %109 {offsets = [0, 33], sizes = [2, 32], strides = [1, 1]} : vector<2x65xf32> to vector<2x32xf32>
    %cst_38 = arith.constant 0.000000e+00 : f32
    %113 = vector.broadcast %cst_38 : f32 to vector<2x32xf32>
    %114 = arith.maximumf %112, %113 : vector<2x32xf32>
    %c0_39 = arith.constant 0 : index
    %c0_40 = arith.constant 0 : index
    %c0_41 = arith.constant 0 : index
    %115 = vector.load %arg4[%c0_39, %c0_40, %c0_41] : memref<6x2x64xf32, #tpu.memory_space<vmem>>, vector<1x2x32xf32>
    %116 = vector.shape_cast %115 : vector<1x2x32xf32> to vector<2x32xf32>
    %117 = arith.mulf %114, %116 : vector<2x32xf32>
    %c0_42 = arith.constant 0 : index
    %c0_43 = arith.constant 0 : index
    %c0_44 = arith.constant 0 : index
    %118 = vector.load %arg5[%c0_42, %c0_43, %c0_44] : memref<2x6x32xf32, #tpu.memory_space<vmem>>, vector<2x1x32xf32>
    %119 = vector.shape_cast %118 : vector<2x1x32xf32> to vector<2x32xf32>
    %120 = vector.shape_cast %110 : vector<2x32xf32> to vector<2x1x32xf32>
    tpu.vector_store %arg5[%c0_42, %c0_43, %c0_44], %120 {strides = array<i32>} : memref<2x6x32xf32, #tpu.memory_space<vmem>>, vector<2x1x32xf32>,
    %c0_45 = arith.constant 0 : index
    %c0_46 = arith.constant 0 : index
    %c0_47 = arith.constant 0 : index
    %121 = vector.load %arg6[%c0_45, %c0_46, %c0_47] : memref<2x6x8xf32, #tpu.memory_space<vmem>>, vector<2x1x8xf32>
    %122 = vector.shape_cast %121 : vector<2x1x8xf32> to vector<2x8xf32>
    %123 = vector.shape_cast %62 : vector<2x8xf32> to vector<2x1x8xf32>
    tpu.vector_store %arg6[%c0_45, %c0_46, %c0_47], %123 {strides = array<i32>} : memref<2x6x8xf32, #tpu.memory_space<vmem>>, vector<2x1x8xf32>,
    %c0_48 = arith.constant 0 : index
    %c0_49 = arith.constant 0 : index
    %c0_50 = arith.constant 0 : index
    %124 = vector.load %arg7[%c0_48, %c0_49, %c0_50] : memref<2x6x1xf32, #tpu.memory_space<vmem>>, vector<2x1x1xf32>
    %125 = vector.shape_cast %124 : vector<2x1x1xf32> to vector<2x1xf32>
    %126 = vector.shape_cast %111 : vector<2x1xf32> to vector<2x1x1xf32>
    tpu.vector_store %arg7[%c0_48, %c0_49, %c0_50], %126 {strides = array<i32>} : memref<2x6x1xf32, #tpu.memory_space<vmem>>, vector<2x1x1xf32>,
    %c560 = arith.constant 560 : index
    %c0_51 = arith.constant 0 : index
    %127 = vector.load %arg0[%c560, %c0_51] : memref<592x256xbf16, #tpu.memory_space<vmem>>, vector<32x32xbf16>
    %128 = arith.truncf %117 : vector<2x32xf32> to vector<2x32xbf16>
    %cst_52 = arith.constant dense<0.000000e+00> : vector<2x32xf32>
    %129 = tpu.matmul %128, %127, %cst_52 {dimension_numbers = #tpu.dot_dimension_numbers<[1], [0], [0], [1], [0, 0, 1, 1], [], []>} : vector<2x32xbf16>, vector<32x32xbf16>, vector<2x32xf32> -> vector<2x32xf32>
    %cst_53 = arith.constant 0.000000e+00 : f32
    %130 = vector.broadcast %cst_53 : f32 to vector<2x32xf32>
    %131 = arith.maximumf %129, %130 : vector<2x32xf32>
    %c0_54 = arith.constant 0 : index
    %c0_55 = arith.constant 0 : index
    %c32 = arith.constant 32 : index
    %132 = vector.load %arg4[%c0_54, %c0_55, %c32] : memref<6x2x64xf32, #tpu.memory_space<vmem>>, vector<1x2x32xf32>
    %133 = vector.shape_cast %132 : vector<1x2x32xf32> to vector<2x32xf32>
    %134 = arith.mulf %131, %133 : vector<2x32xf32>
    %135 = tpu.concatenate %134, %66, %43 in 1 : vector<2x32xf32>, vector<2x32xf32>, vector<2x32xf32> -> vector<2x96xf32>
    %c0_56 = arith.constant 0 : index
    %c0_57 = arith.constant 0 : index
    %136 = vector.load %arg0[%c0_56, %c0_57] : memref<592x256xbf16, #tpu.memory_space<vmem>>, vector<96x192xbf16>
    %c0_58 = arith.constant 0 : index
    %c0_59 = arith.constant 0 : index
    %137 = vector.load %arg1[%c0_58, %c0_59] : memref<3x256xf32, #tpu.memory_space<vmem>>, vector<1x192xf32>
    %138 = arith.truncf %135 : vector<2x96xf32> to vector<2x96xbf16>
    %cst_60 = arith.constant dense<0.000000e+00> : vector<2x192xf32>
    %139 = tpu.matmul %138, %136, %cst_60 {dimension_numbers = #tpu.dot_dimension_numbers<[1], [0], [0], [1], [0, 0, 1, 1], [], []>} : vector<2x96xbf16>, vector<96x192xbf16>, vector<2x192xf32> -> vector<2x192xf32>
    %140 = vector.broadcast %137 : vector<1x192xf32> to vector<2x192xf32>
    %141 = arith.addf %139, %140 : vector<2x192xf32>
    %142 = vector.extract_strided_slice %141 {offsets = [0, 0], sizes = [2, 96], strides = [1, 1]} : vector<2x192xf32> to vector<2x96xf32>
    %143 = vector.extract_strided_slice %141 {offsets = [0, 96], sizes = [2, 96], strides = [1, 1]} : vector<2x192xf32> to vector<2x96xf32>
    %144 = vector.extract_strided_slice %142 {offsets = [0, 0], sizes = [2, 32], strides = [1, 1]} : vector<2x96xf32> to vector<2x32xf32>
    %145 = vector.extract_strided_slice %143 {offsets = [0, 0], sizes = [2, 32], strides = [1, 1]} : vector<2x96xf32> to vector<2x32xf32>
    %146 = arith.addf %144, %145 : vector<2x32xf32>
    %147 = math.tanh %146 : vector<2x32xf32>
    %cst_61 = arith.constant 5.000000e-01 : f32
    %148 = vector.broadcast %cst_61 : f32 to vector<2x32xf32>
    %149 = arith.mulf %148, %147 : vector<2x32xf32>
    %cst_62 = arith.constant 5.000000e-01 : f32
    %150 = vector.broadcast %cst_62 : f32 to vector<2x32xf32>
    %151 = arith.addf %149, %150 : vector<2x32xf32>
    %152 = vector.extract_strided_slice %142 {offsets = [0, 32], sizes = [2, 32], strides = [1, 1]} : vector<2x96xf32> to vector<2x32xf32>
    %153 = vector.extract_strided_slice %143 {offsets = [0, 32], sizes = [2, 32], strides = [1, 1]} : vector<2x96xf32> to vector<2x32xf32>
    %154 = arith.addf %152, %153 : vector<2x32xf32>
    %155 = math.tanh %154 : vector<2x32xf32>
    %cst_63 = arith.constant 5.000000e-01 : f32
    %156 = vector.broadcast %cst_63 : f32 to vector<2x32xf32>
    %157 = arith.mulf %156, %155 : vector<2x32xf32>
    %cst_64 = arith.constant 5.000000e-01 : f32
    %158 = vector.broadcast %cst_64 : f32 to vector<2x32xf32>
    %159 = arith.addf %157, %158 : vector<2x32xf32>
    %160 = vector.extract_strided_slice %142 {offsets = [0, 64], sizes = [2, 32], strides = [1, 1]} : vector<2x96xf32> to vector<2x32xf32>
    %161 = vector.extract_strided_slice %143 {offsets = [0, 64], sizes = [2, 32], strides = [1, 1]} : vector<2x96xf32> to vector<2x32xf32>
    %162 = arith.mulf %151, %161 : vector<2x32xf32>
    %163 = arith.addf %160, %162 : vector<2x32xf32>
    %164 = math.tanh %163 : vector<2x32xf32>
    %cst_65 = arith.constant 1.000000e+00 : f32
    %165 = vector.broadcast %cst_65 : f32 to vector<2x32xf32>
    %166 = arith.subf %165, %159 : vector<2x32xf32>
    %167 = arith.mulf %166, %164 : vector<2x32xf32>
    %168 = arith.mulf %159, %43 : vector<2x32xf32>
    %169 = arith.addf %167, %168 : vector<2x32xf32>
    %170 = tpu.concatenate %169, %62, %67 in 1 : vector<2x32xf32>, vector<2x8xf32>, vector<2x8xf32> -> vector<2x48xf32>
    %c192_66 = arith.constant 192 : index
    %c0_67 = arith.constant 0 : index
    %171 = vector.load %arg0[%c192_66, %c0_67] : memref<592x256xbf16, #tpu.memory_space<vmem>>, vector<48x256xbf16>
    %172 = arith.truncf %170 : vector<2x48xf32> to vector<2x48xbf16>
    %cst_68 = arith.constant dense<0.000000e+00> : vector<2x256xf32>
    %173 = tpu.matmul %172, %171, %cst_68 {dimension_numbers = #tpu.dot_dimension_numbers<[1], [0], [0], [1], [0, 0, 1, 1], [], []>} : vector<2x48xbf16>, vector<48x256xbf16>, vector<2x256xf32> -> vector<2x256xf32>
    %174 = arith.addf %173, %0 : vector<2x256xf32>
    %175 = math.tanh %174 : vector<2x256xf32>
    %c240_69 = arith.constant 240 : index
    %c0_70 = arith.constant 0 : index
    %176 = vector.load %arg0[%c240_69, %c0_70] : memref<592x256xbf16, #tpu.memory_space<vmem>>, vector<256x8xbf16>
    %177 = arith.truncf %175 : vector<2x256xf32> to vector<2x256xbf16>
    %cst_71 = arith.constant dense<0.000000e+00> : vector<2x8xf32>
    %178 = tpu.matmul %177, %176, %cst_71 {dimension_numbers = #tpu.dot_dimension_numbers<[1], [0], [0], [1], [0, 0, 1, 1], [], []>} : vector<2x256xbf16>, vector<256x8xbf16>, vector<2x8xf32> -> vector<2x8xf32>
    %179 = arith.addf %178, %1 : vector<2x8xf32>
    %cst_72 = arith.constant dense<0xFF800000> : vector<2xf32>
    %180 = vector.multi_reduction <maximumf>, %179, %cst_72 [1] : vector<2x8xf32> to vector<2xf32>
    %181 = vector.shape_cast %180 : vector<2xf32> to vector<2x1xf32>
    %182 = vector.broadcast %181 : vector<2x1xf32> to vector<2x8xf32>
    %183 = arith.subf %179, %182 : vector<2x8xf32>
    %184 = math.exp %183 : vector<2x8xf32>
    %cst_73 = arith.constant dense<0.000000e+00> : vector<2xf32>
    %185 = vector.multi_reduction <add>, %184, %cst_73 [1] : vector<2x8xf32> to vector<2xf32>
    %186 = vector.shape_cast %185 : vector<2xf32> to vector<2x1xf32>
    %187 = vector.broadcast %186 : vector<2x1xf32> to vector<2x8xf32>
    %188 = arith.divf %184, %187 : vector<2x8xf32>
    %189 = vector.shape_cast %188 : vector<2x8xf32> to vector<2x8x1xf32>
    %190 = vector.broadcast %189 : vector<2x8x1xf32> to vector<2x8x32xf32>
    %191 = arith.mulf %190, %2 : vector<2x8x32xf32>
    %cst_74 = arith.constant dense<0.000000e+00> : vector<2x32xf32>
    %192 = vector.multi_reduction <add>, %191, %cst_74 [1] : vector<2x8x32xf32> to vector<2x32xf32>
    %193 = arith.addf %67, %188 : vector<2x8xf32>
    %194 = tpu.concatenate %169, %192, %102 in 1 : vector<2x32xf32>, vector<2x32xf32>, vector<2x32xf32> -> vector<2x96xf32>
    %c96_75 = arith.constant 96 : index
    %c0_76 = arith.constant 0 : index
    %195 = vector.load %arg0[%c96_75, %c0_76] : memref<592x256xbf16, #tpu.memory_space<vmem>>, vector<96x192xbf16>
    %c1_77 = arith.constant 1 : index
    %c0_78 = arith.constant 0 : index
    %196 = vector.load %arg1[%c1_77, %c0_78] : memref<3x256xf32, #tpu.memory_space<vmem>>, vector<1x192xf32>
    %197 = arith.truncf %194 : vector<2x96xf32> to vector<2x96xbf16>
    %cst_79 = arith.constant dense<0.000000e+00> : vector<2x192xf32>
    %198 = tpu.matmul %197, %195, %cst_79 {dimension_numbers = #tpu.dot_dimension_numbers<[1], [0], [0], [1], [0, 0, 1, 1], [], []>} : vector<2x96xbf16>, vector<96x192xbf16>, vector<2x192xf32> -> vector<2x192xf32>
    %199 = vector.broadcast %196 : vector<1x192xf32> to vector<2x192xf32>
    %200 = arith.addf %198, %199 : vector<2x192xf32>
    %201 = vector.extract_strided_slice %200 {offsets = [0, 0], sizes = [2, 96], strides = [1, 1]} : vector<2x192xf32> to vector<2x96xf32>
    %202 = vector.extract_strided_slice %200 {offsets = [0, 96], sizes = [2, 96], strides = [1, 1]} : vector<2x192xf32> to vector<2x96xf32>
    %203 = vector.extract_strided_slice %201 {offsets = [0, 0], sizes = [2, 32], strides = [1, 1]} : vector<2x96xf32> to vector<2x32xf32>
    %204 = vector.extract_strided_slice %202 {offsets = [0, 0], sizes = [2, 32], strides = [1, 1]} : vector<2x96xf32> to vector<2x32xf32>
    %205 = arith.addf %203, %204 : vector<2x32xf32>
    %206 = math.tanh %205 : vector<2x32xf32>
    %cst_80 = arith.constant 5.000000e-01 : f32
    %207 = vector.broadcast %cst_80 : f32 to vector<2x32xf32>
    %208 = arith.mulf %207, %206 : vector<2x32xf32>
    %cst_81 = arith.constant 5.000000e-01 : f32
    %209 = vector.broadcast %cst_81 : f32 to vector<2x32xf32>
    %210 = arith.addf %208, %209 : vector<2x32xf32>
    %211 = vector.extract_strided_slice %201 {offsets = [0, 32], sizes = [2, 32], strides = [1, 1]} : vector<2x96xf32> to vector<2x32xf32>
    %212 = vector.extract_strided_slice %202 {offsets = [0, 32], sizes = [2, 32], strides = [1, 1]} : vector<2x96xf32> to vector<2x32xf32>
    %213 = arith.addf %211, %212 : vector<2x32xf32>
    %214 = math.tanh %213 : vector<2x32xf32>
    %cst_82 = arith.constant 5.000000e-01 : f32
    %215 = vector.broadcast %cst_82 : f32 to vector<2x32xf32>
    %216 = arith.mulf %215, %214 : vector<2x32xf32>
    %cst_83 = arith.constant 5.000000e-01 : f32
    %217 = vector.broadcast %cst_83 : f32 to vector<2x32xf32>
    %218 = arith.addf %216, %217 : vector<2x32xf32>
    %219 = vector.extract_strided_slice %201 {offsets = [0, 64], sizes = [2, 32], strides = [1, 1]} : vector<2x96xf32> to vector<2x32xf32>
    %220 = vector.extract_strided_slice %202 {offsets = [0, 64], sizes = [2, 32], strides = [1, 1]} : vector<2x96xf32> to vector<2x32xf32>
    %221 = arith.mulf %210, %220 : vector<2x32xf32>
    %222 = arith.addf %219, %221 : vector<2x32xf32>
    %223 = math.tanh %222 : vector<2x32xf32>
    %cst_84 = arith.constant 1.000000e+00 : f32
    %224 = vector.broadcast %cst_84 : f32 to vector<2x32xf32>
    %225 = arith.subf %224, %218 : vector<2x32xf32>
    %226 = arith.mulf %225, %223 : vector<2x32xf32>
    %227 = arith.mulf %218, %102 : vector<2x32xf32>
    %228 = arith.addf %226, %227 : vector<2x32xf32>
    %c496_85 = arith.constant 496 : index
    %c0_86 = arith.constant 0 : index
    %229 = vector.load %arg0[%c496_85, %c0_86] : memref<592x256xbf16, #tpu.memory_space<vmem>>, vector<64x65xbf16>
    %c2_87 = arith.constant 2 : index
    %c0_88 = arith.constant 0 : index
    %230 = vector.load %arg1[%c2_87, %c0_88] : memref<3x256xf32, #tpu.memory_space<vmem>>, vector<1x65xf32>
    %231 = tpu.concatenate %228, %192 in 1 : vector<2x32xf32>, vector<2x32xf32> -> vector<2x64xf32>
    %232 = arith.truncf %231 : vector<2x64xf32> to vector<2x64xbf16>
    %cst_89 = arith.constant dense<0.000000e+00> : vector<2x65xf32>
    %233 = tpu.matmul %232, %229, %cst_89 {dimension_numbers = #tpu.dot_dimension_numbers<[1], [0], [0], [1], [0, 0, 1, 1], [], []>} : vector<2x64xbf16>, vector<64x65xbf16>, vector<2x65xf32> -> vector<2x65xf32>
    %234 = vector.broadcast %230 : vector<1x65xf32> to vector<2x65xf32>
    %235 = arith.addf %233, %234 : vector<2x65xf32>
    %236 = vector.extract_strided_slice %235 {offsets = [0, 0], sizes = [2, 32], strides = [1, 1]} : vector<2x65xf32> to vector<2x32xf32>
    %237 = vector.extract_strided_slice %235 {offsets = [0, 32], sizes = [2, 1], strides = [1, 1]} : vector<2x65xf32> to vector<2x1xf32>
    %238 = vector.extract_strided_slice %235 {offsets = [0, 33], sizes = [2, 32], strides = [1, 1]} : vector<2x65xf32> to vector<2x32xf32>
    %cst_90 = arith.constant 0.000000e+00 : f32
    %239 = vector.broadcast %cst_90 : f32 to vector<2x32xf32>
    %240 = arith.maximumf %238, %239 : vector<2x32xf32>
    %c1_91 = arith.constant 1 : index
    %c0_92 = arith.constant 0 : index
    %c0_93 = arith.constant 0 : index
    %241 = vector.load %arg4[%c1_91, %c0_92, %c0_93] : memref<6x2x64xf32, #tpu.memory_space<vmem>>, vector<1x2x32xf32>
    %242 = vector.shape_cast %241 : vector<1x2x32xf32> to vector<2x32xf32>
    %243 = arith.mulf %240, %242 : vector<2x32xf32>
    %c0_94 = arith.constant 0 : index
    %c1_95 = arith.constant 1 : index
    %c0_96 = arith.constant 0 : index
    %244 = vector.load %arg5[%c0_94, %c1_95, %c0_96] : memref<2x6x32xf32, #tpu.memory_space<vmem>>, vector<2x1x32xf32>
    %245 = vector.shape_cast %244 : vector<2x1x32xf32> to vector<2x32xf32>
    %246 = vector.shape_cast %236 : vector<2x32xf32> to vector<2x1x32xf32>
    tpu.vector_store %arg5[%c0_94, %c1_95, %c0_96], %246 {strides = array<i32>} : memref<2x6x32xf32, #tpu.memory_space<vmem>>, vector<2x1x32xf32>,
    %c0_97 = arith.constant 0 : index
    %c1_98 = arith.constant 1 : index
    %c0_99 = arith.constant 0 : index
    %247 = vector.load %arg6[%c0_97, %c1_98, %c0_99] : memref<2x6x8xf32, #tpu.memory_space<vmem>>, vector<2x1x8xf32>
    %248 = vector.shape_cast %247 : vector<2x1x8xf32> to vector<2x8xf32>
    %249 = vector.shape_cast %188 : vector<2x8xf32> to vector<2x1x8xf32>
    tpu.vector_store %arg6[%c0_97, %c1_98, %c0_99], %249 {strides = array<i32>} : memref<2x6x8xf32, #tpu.memory_space<vmem>>, vector<2x1x8xf32>,
    %c0_100 = arith.constant 0 : index
    %c1_101 = arith.constant 1 : index
    %c0_102 = arith.constant 0 : index
    %250 = vector.load %arg7[%c0_100, %c1_101, %c0_102] : memref<2x6x1xf32, #tpu.memory_space<vmem>>, vector<2x1x1xf32>
    %251 = vector.shape_cast %250 : vector<2x1x1xf32> to vector<2x1xf32>
    %252 = vector.shape_cast %237 : vector<2x1xf32> to vector<2x1x1xf32>
    tpu.vector_store %arg7[%c0_100, %c1_101, %c0_102], %252 {strides = array<i32>} : memref<2x6x1xf32, #tpu.memory_space<vmem>>, vector<2x1x1xf32>,
    %c560_103 = arith.constant 560 : index
    %c0_104 = arith.constant 0 : index
    %253 = vector.load %arg0[%c560_103, %c0_104] : memref<592x256xbf16, #tpu.memory_space<vmem>>, vector<32x32xbf16>
    %254 = arith.truncf %243 : vector<2x32xf32> to vector<2x32xbf16>
    %cst_105 = arith.constant dense<0.000000e+00> : vector<2x32xf32>
    %255 = tpu.matmul %254, %253, %cst_105 {dimension_numbers = #tpu.dot_dimension_numbers<[1], [0], [0], [1], [0, 0, 1, 1], [], []>} : vector<2x32xbf16>, vector<32x32xbf16>, vector<2x32xf32> -> vector<2x32xf32>
    %cst_106 = arith.constant 0.000000e+00 : f32
    %256 = vector.broadcast %cst_106 : f32 to vector<2x32xf32>
    %257 = arith.maximumf %255, %256 : vector<2x32xf32>
    %c1_107 = arith.constant 1 : index
    %c0_108 = arith.constant 0 : index
    %c32_109 = arith.constant 32 : index
    %258 = vector.load %arg4[%c1_107, %c0_108, %c32_109] : memref<6x2x64xf32, #tpu.memory_space<vmem>>, vector<1x2x32xf32>
    %259 = vector.shape_cast %258 : vector<1x2x32xf32> to vector<2x32xf32>
    %260 = arith.mulf %257, %259 : vector<2x32xf32>
    %261 = tpu.concatenate %260, %192, %169 in 1 : vector<2x32xf32>, vector<2x32xf32>, vector<2x32xf32> -> vector<2x96xf32>
    %c0_110 = arith.constant 0 : index
    %c0_111 = arith.constant 0 : index
    %262 = vector.load %arg0[%c0_110, %c0_111] : memref<592x256xbf16, #tpu.memory_space<vmem>>, vector<96x192xbf16>
    %c0_112 = arith.constant 0 : index
    %c0_113 = arith.constant 0 : index
    %263 = vector.load %arg1[%c0_112, %c0_113] : memref<3x256xf32, #tpu.memory_space<vmem>>, vector<1x192xf32>
    %264 = arith.truncf %261 : vector<2x96xf32> to vector<2x96xbf16>
    %cst_114 = arith.constant dense<0.000000e+00> : vector<2x192xf32>
    %265 = tpu.matmul %264, %262, %cst_114 {dimension_numbers = #tpu.dot_dimension_numbers<[1], [0], [0], [1], [0, 0, 1, 1], [], []>} : vector<2x96xbf16>, vector<96x192xbf16>, vector<2x192xf32> -> vector<2x192xf32>
    %266 = vector.broadcast %263 : vector<1x192xf32> to vector<2x192xf32>
    %267 = arith.addf %265, %266 : vector<2x192xf32>
    %268 = vector.extract_strided_slice %267 {offsets = [0, 0], sizes = [2, 96], strides = [1, 1]} : vector<2x192xf32> to vector<2x96xf32>
    %269 = vector.extract_strided_slice %267 {offsets = [0, 96], sizes = [2, 96], strides = [1, 1]} : vector<2x192xf32> to vector<2x96xf32>
    %270 = vector.extract_strided_slice %268 {offsets = [0, 0], sizes = [2, 32], strides = [1, 1]} : vector<2x96xf32> to vector<2x32xf32>
    %271 = vector.extract_strided_slice %269 {offsets = [0, 0], sizes = [2, 32], strides = [1, 1]} : vector<2x96xf32> to vector<2x32xf32>
    %272 = arith.addf %270, %271 : vector<2x32xf32>
    %273 = math.tanh %272 : vector<2x32xf32>
    %cst_115 = arith.constant 5.000000e-01 : f32
    %274 = vector.broadcast %cst_115 : f32 to vector<2x32xf32>
    %275 = arith.mulf %274, %273 : vector<2x32xf32>
    %cst_116 = arith.constant 5.000000e-01 : f32
    %276 = vector.broadcast %cst_116 : f32 to vector<2x32xf32>
    %277 = arith.addf %275, %276 : vector<2x32xf32>
    %278 = vector.extract_strided_slice %268 {offsets = [0, 32], sizes = [2, 32], strides = [1, 1]} : vector<2x96xf32> to vector<2x32xf32>
    %279 = vector.extract_strided_slice %269 {offsets = [0, 32], sizes = [2, 32], strides = [1, 1]} : vector<2x96xf32> to vector<2x32xf32>
    %280 = arith.addf %278, %279 : vector<2x32xf32>
    %281 = math.tanh %280 : vector<2x32xf32>
    %cst_117 = arith.constant 5.000000e-01 : f32
    %282 = vector.broadcast %cst_117 : f32 to vector<2x32xf32>
    %283 = arith.mulf %282, %281 : vector<2x32xf32>
    %cst_118 = arith.constant 5.000000e-01 : f32
    %284 = vector.broadcast %cst_118 : f32 to vector<2x32xf32>
    %285 = arith.addf %283, %284 : vector<2x32xf32>
    %286 = vector.extract_strided_slice %268 {offsets = [0, 64], sizes = [2, 32], strides = [1, 1]} : vector<2x96xf32> to vector<2x32xf32>
    %287 = vector.extract_strided_slice %269 {offsets = [0, 64], sizes = [2, 32], strides = [1, 1]} : vector<2x96xf32> to vector<2x32xf32>
    %288 = arith.mulf %277, %287 : vector<2x32xf32>
    %289 = arith.addf %286, %288 : vector<2x32xf32>
    %290 = math.tanh %289 : vector<2x32xf32>
    %cst_119 = arith.constant 1.000000e+00 : f32
    %291 = vector.broadcast %cst_119 : f32 to vector<2x32xf32>
    %292 = arith.subf %291, %285 : vector<2x32xf32>
    %293 = arith.mulf %292, %290 : vector<2x32xf32>
    %294 = arith.mulf %285, %169 : vector<2x32xf32>
    %295 = arith.addf %293, %294 : vector<2x32xf32>
    %296 = tpu.concatenate %295, %188, %193 in 1 : vector<2x32xf32>, vector<2x8xf32>, vector<2x8xf32> -> vector<2x48xf32>
    %c192_120 = arith.constant 192 : index
    %c0_121 = arith.constant 0 : index
    %297 = vector.load %arg0[%c192_120, %c0_121] : memref<592x256xbf16, #tpu.memory_space<vmem>>, vector<48x256xbf16>
    %298 = arith.truncf %296 : vector<2x48xf32> to vector<2x48xbf16>
    %cst_122 = arith.constant dense<0.000000e+00> : vector<2x256xf32>
    %299 = tpu.matmul %298, %297, %cst_122 {dimension_numbers = #tpu.dot_dimension_numbers<[1], [0], [0], [1], [0, 0, 1, 1], [], []>} : vector<2x48xbf16>, vector<48x256xbf16>, vector<2x256xf32> -> vector<2x256xf32>
    %300 = arith.addf %299, %0 : vector<2x256xf32>
    %301 = math.tanh %300 : vector<2x256xf32>
    %c240_123 = arith.constant 240 : index
    %c0_124 = arith.constant 0 : index
    %302 = vector.load %arg0[%c240_123, %c0_124] : memref<592x256xbf16, #tpu.memory_space<vmem>>, vector<256x8xbf16>
    %303 = arith.truncf %301 : vector<2x256xf32> to vector<2x256xbf16>
    %cst_125 = arith.constant dense<0.000000e+00> : vector<2x8xf32>
    %304 = tpu.matmul %303, %302, %cst_125 {dimension_numbers = #tpu.dot_dimension_numbers<[1], [0], [0], [1], [0, 0, 1, 1], [], []>} : vector<2x256xbf16>, vector<256x8xbf16>, vector<2x8xf32> -> vector<2x8xf32>
    %305 = arith.addf %304, %1 : vector<2x8xf32>
    %cst_126 = arith.constant dense<0xFF800000> : vector<2xf32>
    %306 = vector.multi_reduction <maximumf>, %305, %cst_126 [1] : vector<2x8xf32> to vector<2xf32>
    %307 = vector.shape_cast %306 : vector<2xf32> to vector<2x1xf32>
    %308 = vector.broadcast %307 : vector<2x1xf32> to vector<2x8xf32>
    %309 = arith.subf %305, %308 : vector<2x8xf32>
    %310 = math.exp %309 : vector<2x8xf32>
    %cst_127 = arith.constant dense<0.000000e+00> : vector<2xf32>
    %311 = vector.multi_reduction <add>, %310, %cst_127 [1] : vector<2x8xf32> to vector<2xf32>
    %312 = vector.shape_cast %311 : vector<2xf32> to vector<2x1xf32>
    %313 = vector.broadcast %312 : vector<2x1xf32> to vector<2x8xf32>
    %314 = arith.divf %310, %313 : vector<2x8xf32>
    %315 = vector.shape_cast %314 : vector<2x8xf32> to vector<2x8x1xf32>
    %316 = vector.broadcast %315 : vector<2x8x1xf32> to vector<2x8x32xf32>
    %317 = arith.mulf %316, %2 : vector<2x8x32xf32>
    %cst_128 = arith.constant dense<0.000000e+00> : vector<2x32xf32>
    %318 = vector.multi_reduction <add>, %317, %cst_128 [1] : vector<2x8x32xf32> to vector<2x32xf32>
    %319 = arith.addf %193, %314 : vector<2x8xf32>
    %320 = tpu.concatenate %295, %318, %228 in 1 : vector<2x32xf32>, vector<2x32xf32>, vector<2x32xf32> -> vector<2x96xf32>
    %c96_129 = arith.constant 96 : index
    %c0_130 = arith.constant 0 : index
    %321 = vector.load %arg0[%c96_129, %c0_130] : memref<592x256xbf16, #tpu.memory_space<vmem>>, vector<96x192xbf16>
    %c1_131 = arith.constant 1 : index
    %c0_132 = arith.constant 0 : index
    %322 = vector.load %arg1[%c1_131, %c0_132] : memref<3x256xf32, #tpu.memory_space<vmem>>, vector<1x192xf32>
    %323 = arith.truncf %320 : vector<2x96xf32> to vector<2x96xbf16>
    %cst_133 = arith.constant dense<0.000000e+00> : vector<2x192xf32>
    %324 = tpu.matmul %323, %321, %cst_133 {dimension_numbers = #tpu.dot_dimension_numbers<[1], [0], [0], [1], [0, 0, 1, 1], [], []>} : vector<2x96xbf16>, vector<96x192xbf16>, vector<2x192xf32> -> vector<2x192xf32>
    %325 = vector.broadcast %322 : vector<1x192xf32> to vector<2x192xf32>
    %326 = arith.addf %324, %325 : vector<2x192xf32>
    %327 = vector.extract_strided_slice %326 {offsets = [0, 0], sizes = [2, 96], strides = [1, 1]} : vector<2x192xf32> to vector<2x96xf32>
    %328 = vector.extract_strided_slice %326 {offsets = [0, 96], sizes = [2, 96], strides = [1, 1]} : vector<2x192xf32> to vector<2x96xf32>
    %329 = vector.extract_strided_slice %327 {offsets = [0, 0], sizes = [2, 32], strides = [1, 1]} : vector<2x96xf32> to vector<2x32xf32>
    %330 = vector.extract_strided_slice %328 {offsets = [0, 0], sizes = [2, 32], strides = [1, 1]} : vector<2x96xf32> to vector<2x32xf32>
    %331 = arith.addf %329, %330 : vector<2x32xf32>
    %332 = math.tanh %331 : vector<2x32xf32>
    %cst_134 = arith.constant 5.000000e-01 : f32
    %333 = vector.broadcast %cst_134 : f32 to vector<2x32xf32>
    %334 = arith.mulf %333, %332 : vector<2x32xf32>
    %cst_135 = arith.constant 5.000000e-01 : f32
    %335 = vector.broadcast %cst_135 : f32 to vector<2x32xf32>
    %336 = arith.addf %334, %335 : vector<2x32xf32>
    %337 = vector.extract_strided_slice %327 {offsets = [0, 32], sizes = [2, 32], strides = [1, 1]} : vector<2x96xf32> to vector<2x32xf32>
    %338 = vector.extract_strided_slice %328 {offsets = [0, 32], sizes = [2, 32], strides = [1, 1]} : vector<2x96xf32> to vector<2x32xf32>
    %339 = arith.addf %337, %338 : vector<2x32xf32>
    %340 = math.tanh %339 : vector<2x32xf32>
    %cst_136 = arith.constant 5.000000e-01 : f32
    %341 = vector.broadcast %cst_136 : f32 to vector<2x32xf32>
    %342 = arith.mulf %341, %340 : vector<2x32xf32>
    %cst_137 = arith.constant 5.000000e-01 : f32
    %343 = vector.broadcast %cst_137 : f32 to vector<2x32xf32>
    %344 = arith.addf %342, %343 : vector<2x32xf32>
    %345 = vector.extract_strided_slice %327 {offsets = [0, 64], sizes = [2, 32], strides = [1, 1]} : vector<2x96xf32> to vector<2x32xf32>
    %346 = vector.extract_strided_slice %328 {offsets = [0, 64], sizes = [2, 32], strides = [1, 1]} : vector<2x96xf32> to vector<2x32xf32>
    %347 = arith.mulf %336, %346 : vector<2x32xf32>
    %348 = arith.addf %345, %347 : vector<2x32xf32>
    %349 = math.tanh %348 : vector<2x32xf32>
    %cst_138 = arith.constant 1.000000e+00 : f32
    %350 = vector.broadcast %cst_138 : f32 to vector<2x32xf32>
    %351 = arith.subf %350, %344 : vector<2x32xf32>
    %352 = arith.mulf %351, %349 : vector<2x32xf32>
    %353 = arith.mulf %344, %228 : vector<2x32xf32>
    %354 = arith.addf %352, %353 : vector<2x32xf32>
    %c496_139 = arith.constant 496 : index
    %c0_140 = arith.constant 0 : index
    %355 = vector.load %arg0[%c496_139, %c0_140] : memref<592x256xbf16, #tpu.memory_space<vmem>>, vector<64x65xbf16>
    %c2_141 = arith.constant 2 : index
    %c0_142 = arith.constant 0 : index
    %356 = vector.load %arg1[%c2_141, %c0_142] : memref<3x256xf32, #tpu.memory_space<vmem>>, vector<1x65xf32>
    %357 = tpu.concatenate %354, %318 in 1 : vector<2x32xf32>, vector<2x32xf32> -> vector<2x64xf32>
    %358 = arith.truncf %357 : vector<2x64xf32> to vector<2x64xbf16>
    %cst_143 = arith.constant dense<0.000000e+00> : vector<2x65xf32>
    %359 = tpu.matmul %358, %355, %cst_143 {dimension_numbers = #tpu.dot_dimension_numbers<[1], [0], [0], [1], [0, 0, 1, 1], [], []>} : vector<2x64xbf16>, vector<64x65xbf16>, vector<2x65xf32> -> vector<2x65xf32>
    %360 = vector.broadcast %356 : vector<1x65xf32> to vector<2x65xf32>
    %361 = arith.addf %359, %360 : vector<2x65xf32>
    %362 = vector.extract_strided_slice %361 {offsets = [0, 0], sizes = [2, 32], strides = [1, 1]} : vector<2x65xf32> to vector<2x32xf32>
    %363 = vector.extract_strided_slice %361 {offsets = [0, 32], sizes = [2, 1], strides = [1, 1]} : vector<2x65xf32> to vector<2x1xf32>
    %364 = vector.extract_strided_slice %361 {offsets = [0, 33], sizes = [2, 32], strides = [1, 1]} : vector<2x65xf32> to vector<2x32xf32>
    %cst_144 = arith.constant 0.000000e+00 : f32
    %365 = vector.broadcast %cst_144 : f32 to vector<2x32xf32>
    %366 = arith.maximumf %364, %365 : vector<2x32xf32>
    %c2_145 = arith.constant 2 : index
    %c0_146 = arith.constant 0 : index
    %c0_147 = arith.constant 0 : index
    %367 = vector.load %arg4[%c2_145, %c0_146, %c0_147] : memref<6x2x64xf32, #tpu.memory_space<vmem>>, vector<1x2x32xf32>
    %368 = vector.shape_cast %367 : vector<1x2x32xf32> to vector<2x32xf32>
    %369 = arith.mulf %366, %368 : vector<2x32xf32>
    %c0_148 = arith.constant 0 : index
    %c2_149 = arith.constant 2 : index
    %c0_150 = arith.constant 0 : index
    %370 = vector.load %arg5[%c0_148, %c2_149, %c0_150] : memref<2x6x32xf32, #tpu.memory_space<vmem>>, vector<2x1x32xf32>
    %371 = vector.shape_cast %370 : vector<2x1x32xf32> to vector<2x32xf32>
    %372 = vector.shape_cast %362 : vector<2x32xf32> to vector<2x1x32xf32>
    tpu.vector_store %arg5[%c0_148, %c2_149, %c0_150], %372 {strides = array<i32>} : memref<2x6x32xf32, #tpu.memory_space<vmem>>, vector<2x1x32xf32>,
    %c0_151 = arith.constant 0 : index
    %c2_152 = arith.constant 2 : index
    %c0_153 = arith.constant 0 : index
    %373 = vector.load %arg6[%c0_151, %c2_152, %c0_153] : memref<2x6x8xf32, #tpu.memory_space<vmem>>, vector<2x1x8xf32>
    %374 = vector.shape_cast %373 : vector<2x1x8xf32> to vector<2x8xf32>
    %375 = vector.shape_cast %314 : vector<2x8xf32> to vector<2x1x8xf32>
    tpu.vector_store %arg6[%c0_151, %c2_152, %c0_153], %375 {strides = array<i32>} : memref<2x6x8xf32, #tpu.memory_space<vmem>>, vector<2x1x8xf32>,
    %c0_154 = arith.constant 0 : index
    %c2_155 = arith.constant 2 : index
    %c0_156 = arith.constant 0 : index
    %376 = vector.load %arg7[%c0_154, %c2_155, %c0_156] : memref<2x6x1xf32, #tpu.memory_space<vmem>>, vector<2x1x1xf32>
    %377 = vector.shape_cast %376 : vector<2x1x1xf32> to vector<2x1xf32>
    %378 = vector.shape_cast %363 : vector<2x1xf32> to vector<2x1x1xf32>
    tpu.vector_store %arg7[%c0_154, %c2_155, %c0_156], %378 {strides = array<i32>} : memref<2x6x1xf32, #tpu.memory_space<vmem>>, vector<2x1x1xf32>,
    %c560_157 = arith.constant 560 : index
    %c0_158 = arith.constant 0 : index
    %379 = vector.load %arg0[%c560_157, %c0_158] : memref<592x256xbf16, #tpu.memory_space<vmem>>, vector<32x32xbf16>
    %380 = arith.truncf %369 : vector<2x32xf32> to vector<2x32xbf16>
    %cst_159 = arith.constant dense<0.000000e+00> : vector<2x32xf32>
    %381 = tpu.matmul %380, %379, %cst_159 {dimension_numbers = #tpu.dot_dimension_numbers<[1], [0], [0], [1], [0, 0, 1, 1], [], []>} : vector<2x32xbf16>, vector<32x32xbf16>, vector<2x32xf32> -> vector<2x32xf32>
    %cst_160 = arith.constant 0.000000e+00 : f32
    %382 = vector.broadcast %cst_160 : f32 to vector<2x32xf32>
    %383 = arith.maximumf %381, %382 : vector<2x32xf32>
    %c2_161 = arith.constant 2 : index
    %c0_162 = arith.constant 0 : index
    %c32_163 = arith.constant 32 : index
    %384 = vector.load %arg4[%c2_161, %c0_162, %c32_163] : memref<6x2x64xf32, #tpu.memory_space<vmem>>, vector<1x2x32xf32>
    %385 = vector.shape_cast %384 : vector<1x2x32xf32> to vector<2x32xf32>
    %386 = arith.mulf %383, %385 : vector<2x32xf32>
    %387 = tpu.concatenate %386, %318, %295 in 1 : vector<2x32xf32>, vector<2x32xf32>, vector<2x32xf32> -> vector<2x96xf32>
    %c0_164 = arith.constant 0 : index
    %c0_165 = arith.constant 0 : index
    %388 = vector.load %arg0[%c0_164, %c0_165] : memref<592x256xbf16, #tpu.memory_space<vmem>>, vector<96x192xbf16>
    %c0_166 = arith.constant 0 : index
    %c0_167 = arith.constant 0 : index
    %389 = vector.load %arg1[%c0_166, %c0_167] : memref<3x256xf32, #tpu.memory_space<vmem>>, vector<1x192xf32>
    %390 = arith.truncf %387 : vector<2x96xf32> to vector<2x96xbf16>
    %cst_168 = arith.constant dense<0.000000e+00> : vector<2x192xf32>
    %391 = tpu.matmul %390, %388, %cst_168 {dimension_numbers = #tpu.dot_dimension_numbers<[1], [0], [0], [1], [0, 0, 1, 1], [], []>} : vector<2x96xbf16>, vector<96x192xbf16>, vector<2x192xf32> -> vector<2x192xf32>
    %392 = vector.broadcast %389 : vector<1x192xf32> to vector<2x192xf32>
    %393 = arith.addf %391, %392 : vector<2x192xf32>
    %394 = vector.extract_strided_slice %393 {offsets = [0, 0], sizes = [2, 96], strides = [1, 1]} : vector<2x192xf32> to vector<2x96xf32>
    %395 = vector.extract_strided_slice %393 {offsets = [0, 96], sizes = [2, 96], strides = [1, 1]} : vector<2x192xf32> to vector<2x96xf32>
    %396 = vector.extract_strided_slice %394 {offsets = [0, 0], sizes = [2, 32], strides = [1, 1]} : vector<2x96xf32> to vector<2x32xf32>
    %397 = vector.extract_strided_slice %395 {offsets = [0, 0], sizes = [2, 32], strides = [1, 1]} : vector<2x96xf32> to vector<2x32xf32>
    %398 = arith.addf %396, %397 : vector<2x32xf32>
    %399 = math.tanh %398 : vector<2x32xf32>
    %cst_169 = arith.constant 5.000000e-01 : f32
    %400 = vector.broadcast %cst_169 : f32 to vector<2x32xf32>
    %401 = arith.mulf %400, %399 : vector<2x32xf32>
    %cst_170 = arith.constant 5.000000e-01 : f32
    %402 = vector.broadcast %cst_170 : f32 to vector<2x32xf32>
    %403 = arith.addf %401, %402 : vector<2x32xf32>
    %404 = vector.extract_strided_slice %394 {offsets = [0, 32], sizes = [2, 32], strides = [1, 1]} : vector<2x96xf32> to vector<2x32xf32>
    %405 = vector.extract_strided_slice %395 {offsets = [0, 32], sizes = [2, 32], strides = [1, 1]} : vector<2x96xf32> to vector<2x32xf32>
    %406 = arith.addf %404, %405 : vector<2x32xf32>
    %407 = math.tanh %406 : vector<2x32xf32>
    %cst_171 = arith.constant 5.000000e-01 : f32
    %408 = vector.broadcast %cst_171 : f32 to vector<2x32xf32>
    %409 = arith.mulf %408, %407 : vector<2x32xf32>
    %cst_172 = arith.constant 5.000000e-01 : f32
    %410 = vector.broadcast %cst_172 : f32 to vector<2x32xf32>
    %411 = arith.addf %409, %410 : vector<2x32xf32>
    %412 = vector.extract_strided_slice %394 {offsets = [0, 64], sizes = [2, 32], strides = [1, 1]} : vector<2x96xf32> to vector<2x32xf32>
    %413 = vector.extract_strided_slice %395 {offsets = [0, 64], sizes = [2, 32], strides = [1, 1]} : vector<2x96xf32> to vector<2x32xf32>
    %414 = arith.mulf %403, %413 : vector<2x32xf32>
    %415 = arith.addf %412, %414 : vector<2x32xf32>
    %416 = math.tanh %415 : vector<2x32xf32>
    %cst_173 = arith.constant 1.000000e+00 : f32
    %417 = vector.broadcast %cst_173 : f32 to vector<2x32xf32>
    %418 = arith.subf %417, %411 : vector<2x32xf32>
    %419 = arith.mulf %418, %416 : vector<2x32xf32>
    %420 = arith.mulf %411, %295 : vector<2x32xf32>
    %421 = arith.addf %419, %420 : vector<2x32xf32>
    %422 = tpu.concatenate %421, %314, %319 in 1 : vector<2x32xf32>, vector<2x8xf32>, vector<2x8xf32> -> vector<2x48xf32>
    %c192_174 = arith.constant 192 : index
    %c0_175 = arith.constant 0 : index
    %423 = vector.load %arg0[%c192_174, %c0_175] : memref<592x256xbf16, #tpu.memory_space<vmem>>, vector<48x256xbf16>
    %424 = arith.truncf %422 : vector<2x48xf32> to vector<2x48xbf16>
    %cst_176 = arith.constant dense<0.000000e+00> : vector<2x256xf32>
    %425 = tpu.matmul %424, %423, %cst_176 {dimension_numbers = #tpu.dot_dimension_numbers<[1], [0], [0], [1], [0, 0, 1, 1], [], []>} : vector<2x48xbf16>, vector<48x256xbf16>, vector<2x256xf32> -> vector<2x256xf32>
    %426 = arith.addf %425, %0 : vector<2x256xf32>
    %427 = math.tanh %426 : vector<2x256xf32>
    %c240_177 = arith.constant 240 : index
    %c0_178 = arith.constant 0 : index
    %428 = vector.load %arg0[%c240_177, %c0_178] : memref<592x256xbf16, #tpu.memory_space<vmem>>, vector<256x8xbf16>
    %429 = arith.truncf %427 : vector<2x256xf32> to vector<2x256xbf16>
    %cst_179 = arith.constant dense<0.000000e+00> : vector<2x8xf32>
    %430 = tpu.matmul %429, %428, %cst_179 {dimension_numbers = #tpu.dot_dimension_numbers<[1], [0], [0], [1], [0, 0, 1, 1], [], []>} : vector<2x256xbf16>, vector<256x8xbf16>, vector<2x8xf32> -> vector<2x8xf32>
    %431 = arith.addf %430, %1 : vector<2x8xf32>
    %cst_180 = arith.constant dense<0xFF800000> : vector<2xf32>
    %432 = vector.multi_reduction <maximumf>, %431, %cst_180 [1] : vector<2x8xf32> to vector<2xf32>
    %433 = vector.shape_cast %432 : vector<2xf32> to vector<2x1xf32>
    %434 = vector.broadcast %433 : vector<2x1xf32> to vector<2x8xf32>
    %435 = arith.subf %431, %434 : vector<2x8xf32>
    %436 = math.exp %435 : vector<2x8xf32>
    %cst_181 = arith.constant dense<0.000000e+00> : vector<2xf32>
    %437 = vector.multi_reduction <add>, %436, %cst_181 [1] : vector<2x8xf32> to vector<2xf32>
    %438 = vector.shape_cast %437 : vector<2xf32> to vector<2x1xf32>
    %439 = vector.broadcast %438 : vector<2x1xf32> to vector<2x8xf32>
    %440 = arith.divf %436, %439 : vector<2x8xf32>
    %441 = vector.shape_cast %440 : vector<2x8xf32> to vector<2x8x1xf32>
    %442 = vector.broadcast %441 : vector<2x8x1xf32> to vector<2x8x32xf32>
    %443 = arith.mulf %442, %2 : vector<2x8x32xf32>
    %cst_182 = arith.constant dense<0.000000e+00> : vector<2x32xf32>
    %444 = vector.multi_reduction <add>, %443, %cst_182 [1] : vector<2x8x32xf32> to vector<2x32xf32>
    %445 = arith.addf %319, %440 : vector<2x8xf32>
    %446 = tpu.concatenate %421, %444, %354 in 1 : vector<2x32xf32>, vector<2x32xf32>, vector<2x32xf32> -> vector<2x96xf32>
    %c96_183 = arith.constant 96 : index
    %c0_184 = arith.constant 0 : index
    %447 = vector.load %arg0[%c96_183, %c0_184] : memref<592x256xbf16, #tpu.memory_space<vmem>>, vector<96x192xbf16>
    %c1_185 = arith.constant 1 : index
    %c0_186 = arith.constant 0 : index
    %448 = vector.load %arg1[%c1_185, %c0_186] : memref<3x256xf32, #tpu.memory_space<vmem>>, vector<1x192xf32>
    %449 = arith.truncf %446 : vector<2x96xf32> to vector<2x96xbf16>
    %cst_187 = arith.constant dense<0.000000e+00> : vector<2x192xf32>
    %450 = tpu.matmul %449, %447, %cst_187 {dimension_numbers = #tpu.dot_dimension_numbers<[1], [0], [0], [1], [0, 0, 1, 1], [], []>} : vector<2x96xbf16>, vector<96x192xbf16>, vector<2x192xf32> -> vector<2x192xf32>
    %451 = vector.broadcast %448 : vector<1x192xf32> to vector<2x192xf32>
    %452 = arith.addf %450, %451 : vector<2x192xf32>
    %453 = vector.extract_strided_slice %452 {offsets = [0, 0], sizes = [2, 96], strides = [1, 1]} : vector<2x192xf32> to vector<2x96xf32>
    %454 = vector.extract_strided_slice %452 {offsets = [0, 96], sizes = [2, 96], strides = [1, 1]} : vector<2x192xf32> to vector<2x96xf32>
    %455 = vector.extract_strided_slice %453 {offsets = [0, 0], sizes = [2, 32], strides = [1, 1]} : vector<2x96xf32> to vector<2x32xf32>
    %456 = vector.extract_strided_slice %454 {offsets = [0, 0], sizes = [2, 32], strides = [1, 1]} : vector<2x96xf32> to vector<2x32xf32>
    %457 = arith.addf %455, %456 : vector<2x32xf32>
    %458 = math.tanh %457 : vector<2x32xf32>
    %cst_188 = arith.constant 5.000000e-01 : f32
    %459 = vector.broadcast %cst_188 : f32 to vector<2x32xf32>
    %460 = arith.mulf %459, %458 : vector<2x32xf32>
    %cst_189 = arith.constant 5.000000e-01 : f32
    %461 = vector.broadcast %cst_189 : f32 to vector<2x32xf32>
    %462 = arith.addf %460, %461 : vector<2x32xf32>
    %463 = vector.extract_strided_slice %453 {offsets = [0, 32], sizes = [2, 32], strides = [1, 1]} : vector<2x96xf32> to vector<2x32xf32>
    %464 = vector.extract_strided_slice %454 {offsets = [0, 32], sizes = [2, 32], strides = [1, 1]} : vector<2x96xf32> to vector<2x32xf32>
    %465 = arith.addf %463, %464 : vector<2x32xf32>
    %466 = math.tanh %465 : vector<2x32xf32>
    %cst_190 = arith.constant 5.000000e-01 : f32
    %467 = vector.broadcast %cst_190 : f32 to vector<2x32xf32>
    %468 = arith.mulf %467, %466 : vector<2x32xf32>
    %cst_191 = arith.constant 5.000000e-01 : f32
    %469 = vector.broadcast %cst_191 : f32 to vector<2x32xf32>
    %470 = arith.addf %468, %469 : vector<2x32xf32>
    %471 = vector.extract_strided_slice %453 {offsets = [0, 64], sizes = [2, 32], strides = [1, 1]} : vector<2x96xf32> to vector<2x32xf32>
    %472 = vector.extract_strided_slice %454 {offsets = [0, 64], sizes = [2, 32], strides = [1, 1]} : vector<2x96xf32> to vector<2x32xf32>
    %473 = arith.mulf %462, %472 : vector<2x32xf32>
    %474 = arith.addf %471, %473 : vector<2x32xf32>
    %475 = math.tanh %474 : vector<2x32xf32>
    %cst_192 = arith.constant 1.000000e+00 : f32
    %476 = vector.broadcast %cst_192 : f32 to vector<2x32xf32>
    %477 = arith.subf %476, %470 : vector<2x32xf32>
    %478 = arith.mulf %477, %475 : vector<2x32xf32>
    %479 = arith.mulf %470, %354 : vector<2x32xf32>
    %480 = arith.addf %478, %479 : vector<2x32xf32>
    %c496_193 = arith.constant 496 : index
    %c0_194 = arith.constant 0 : index
    %481 = vector.load %arg0[%c496_193, %c0_194] : memref<592x256xbf16, #tpu.memory_space<vmem>>, vector<64x65xbf16>
    %c2_195 = arith.constant 2 : index
    %c0_196 = arith.constant 0 : index
    %482 = vector.load %arg1[%c2_195, %c0_196] : memref<3x256xf32, #tpu.memory_space<vmem>>, vector<1x65xf32>
    %483 = tpu.concatenate %480, %444 in 1 : vector<2x32xf32>, vector<2x32xf32> -> vector<2x64xf32>
    %484 = arith.truncf %483 : vector<2x64xf32> to vector<2x64xbf16>
    %cst_197 = arith.constant dense<0.000000e+00> : vector<2x65xf32>
    %485 = tpu.matmul %484, %481, %cst_197 {dimension_numbers = #tpu.dot_dimension_numbers<[1], [0], [0], [1], [0, 0, 1, 1], [], []>} : vector<2x64xbf16>, vector<64x65xbf16>, vector<2x65xf32> -> vector<2x65xf32>
    %486 = vector.broadcast %482 : vector<1x65xf32> to vector<2x65xf32>
    %487 = arith.addf %485, %486 : vector<2x65xf32>
    %488 = vector.extract_strided_slice %487 {offsets = [0, 0], sizes = [2, 32], strides = [1, 1]} : vector<2x65xf32> to vector<2x32xf32>
    %489 = vector.extract_strided_slice %487 {offsets = [0, 32], sizes = [2, 1], strides = [1, 1]} : vector<2x65xf32> to vector<2x1xf32>
    %490 = vector.extract_strided_slice %487 {offsets = [0, 33], sizes = [2, 32], strides = [1, 1]} : vector<2x65xf32> to vector<2x32xf32>
    %cst_198 = arith.constant 0.000000e+00 : f32
    %491 = vector.broadcast %cst_198 : f32 to vector<2x32xf32>
    %492 = arith.maximumf %490, %491 : vector<2x32xf32>
    %c3 = arith.constant 3 : index
    %c0_199 = arith.constant 0 : index
    %c0_200 = arith.constant 0 : index
    %493 = vector.load %arg4[%c3, %c0_199, %c0_200] : memref<6x2x64xf32, #tpu.memory_space<vmem>>, vector<1x2x32xf32>
    %494 = vector.shape_cast %493 : vector<1x2x32xf32> to vector<2x32xf32>
    %495 = arith.mulf %492, %494 : vector<2x32xf32>
    %c0_201 = arith.constant 0 : index
    %c3_202 = arith.constant 3 : index
    %c0_203 = arith.constant 0 : index
    %496 = vector.load %arg5[%c0_201, %c3_202, %c0_203] : memref<2x6x32xf32, #tpu.memory_space<vmem>>, vector<2x1x32xf32>
    %497 = vector.shape_cast %496 : vector<2x1x32xf32> to vector<2x32xf32>
    %498 = vector.shape_cast %488 : vector<2x32xf32> to vector<2x1x32xf32>
    tpu.vector_store %arg5[%c0_201, %c3_202, %c0_203], %498 {strides = array<i32>} : memref<2x6x32xf32, #tpu.memory_space<vmem>>, vector<2x1x32xf32>,
    %c0_204 = arith.constant 0 : index
    %c3_205 = arith.constant 3 : index
    %c0_206 = arith.constant 0 : index
    %499 = vector.load %arg6[%c0_204, %c3_205, %c0_206] : memref<2x6x8xf32, #tpu.memory_space<vmem>>, vector<2x1x8xf32>
    %500 = vector.shape_cast %499 : vector<2x1x8xf32> to vector<2x8xf32>
    %501 = vector.shape_cast %440 : vector<2x8xf32> to vector<2x1x8xf32>
    tpu.vector_store %arg6[%c0_204, %c3_205, %c0_206], %501 {strides = array<i32>} : memref<2x6x8xf32, #tpu.memory_space<vmem>>, vector<2x1x8xf32>,
    %c0_207 = arith.constant 0 : index
    %c3_208 = arith.constant 3 : index
    %c0_209 = arith.constant 0 : index
    %502 = vector.load %arg7[%c0_207, %c3_208, %c0_209] : memref<2x6x1xf32, #tpu.memory_space<vmem>>, vector<2x1x1xf32>
    %503 = vector.shape_cast %502 : vector<2x1x1xf32> to vector<2x1xf32>
    %504 = vector.shape_cast %489 : vector<2x1xf32> to vector<2x1x1xf32>
    tpu.vector_store %arg7[%c0_207, %c3_208, %c0_209], %504 {strides = array<i32>} : memref<2x6x1xf32, #tpu.memory_space<vmem>>, vector<2x1x1xf32>,
    %c560_210 = arith.constant 560 : index
    %c0_211 = arith.constant 0 : index
    %505 = vector.load %arg0[%c560_210, %c0_211] : memref<592x256xbf16, #tpu.memory_space<vmem>>, vector<32x32xbf16>
    %506 = arith.truncf %495 : vector<2x32xf32> to vector<2x32xbf16>
    %cst_212 = arith.constant dense<0.000000e+00> : vector<2x32xf32>
    %507 = tpu.matmul %506, %505, %cst_212 {dimension_numbers = #tpu.dot_dimension_numbers<[1], [0], [0], [1], [0, 0, 1, 1], [], []>} : vector<2x32xbf16>, vector<32x32xbf16>, vector<2x32xf32> -> vector<2x32xf32>
    %cst_213 = arith.constant 0.000000e+00 : f32
    %508 = vector.broadcast %cst_213 : f32 to vector<2x32xf32>
    %509 = arith.maximumf %507, %508 : vector<2x32xf32>
    %c3_214 = arith.constant 3 : index
    %c0_215 = arith.constant 0 : index
    %c32_216 = arith.constant 32 : index
    %510 = vector.load %arg4[%c3_214, %c0_215, %c32_216] : memref<6x2x64xf32, #tpu.memory_space<vmem>>, vector<1x2x32xf32>
    %511 = vector.shape_cast %510 : vector<1x2x32xf32> to vector<2x32xf32>
    %512 = arith.mulf %509, %511 : vector<2x32xf32>
    %513 = tpu.concatenate %512, %444, %421 in 1 : vector<2x32xf32>, vector<2x32xf32>, vector<2x32xf32> -> vector<2x96xf32>
    %c0_217 = arith.constant 0 : index
    %c0_218 = arith.constant 0 : index
    %514 = vector.load %arg0[%c0_217, %c0_218] : memref<592x256xbf16, #tpu.memory_space<vmem>>, vector<96x192xbf16>
    %c0_219 = arith.constant 0 : index
    %c0_220 = arith.constant 0 : index
    %515 = vector.load %arg1[%c0_219, %c0_220] : memref<3x256xf32, #tpu.memory_space<vmem>>, vector<1x192xf32>
    %516 = arith.truncf %513 : vector<2x96xf32> to vector<2x96xbf16>
    %cst_221 = arith.constant dense<0.000000e+00> : vector<2x192xf32>
    %517 = tpu.matmul %516, %514, %cst_221 {dimension_numbers = #tpu.dot_dimension_numbers<[1], [0], [0], [1], [0, 0, 1, 1], [], []>} : vector<2x96xbf16>, vector<96x192xbf16>, vector<2x192xf32> -> vector<2x192xf32>
    %518 = vector.broadcast %515 : vector<1x192xf32> to vector<2x192xf32>
    %519 = arith.addf %517, %518 : vector<2x192xf32>
    %520 = vector.extract_strided_slice %519 {offsets = [0, 0], sizes = [2, 96], strides = [1, 1]} : vector<2x192xf32> to vector<2x96xf32>
    %521 = vector.extract_strided_slice %519 {offsets = [0, 96], sizes = [2, 96], strides = [1, 1]} : vector<2x192xf32> to vector<2x96xf32>
    %522 = vector.extract_strided_slice %520 {offsets = [0, 0], sizes = [2, 32], strides = [1, 1]} : vector<2x96xf32> to vector<2x32xf32>
    %523 = vector.extract_strided_slice %521 {offsets = [0, 0], sizes = [2, 32], strides = [1, 1]} : vector<2x96xf32> to vector<2x32xf32>
    %524 = arith.addf %522, %523 : vector<2x32xf32>
    %525 = math.tanh %524 : vector<2x32xf32>
    %cst_222 = arith.constant 5.000000e-01 : f32
    %526 = vector.broadcast %cst_222 : f32 to vector<2x32xf32>
    %527 = arith.mulf %526, %525 : vector<2x32xf32>
    %cst_223 = arith.constant 5.000000e-01 : f32
    %528 = vector.broadcast %cst_223 : f32 to vector<2x32xf32>
    %529 = arith.addf %527, %528 : vector<2x32xf32>
    %530 = vector.extract_strided_slice %520 {offsets = [0, 32], sizes = [2, 32], strides = [1, 1]} : vector<2x96xf32> to vector<2x32xf32>
    %531 = vector.extract_strided_slice %521 {offsets = [0, 32], sizes = [2, 32], strides = [1, 1]} : vector<2x96xf32> to vector<2x32xf32>
    %532 = arith.addf %530, %531 : vector<2x32xf32>
    %533 = math.tanh %532 : vector<2x32xf32>
    %cst_224 = arith.constant 5.000000e-01 : f32
    %534 = vector.broadcast %cst_224 : f32 to vector<2x32xf32>
    %535 = arith.mulf %534, %533 : vector<2x32xf32>
    %cst_225 = arith.constant 5.000000e-01 : f32
    %536 = vector.broadcast %cst_225 : f32 to vector<2x32xf32>
    %537 = arith.addf %535, %536 : vector<2x32xf32>
    %538 = vector.extract_strided_slice %520 {offsets = [0, 64], sizes = [2, 32], strides = [1, 1]} : vector<2x96xf32> to vector<2x32xf32>
    %539 = vector.extract_strided_slice %521 {offsets = [0, 64], sizes = [2, 32], strides = [1, 1]} : vector<2x96xf32> to vector<2x32xf32>
    %540 = arith.mulf %529, %539 : vector<2x32xf32>
    %541 = arith.addf %538, %540 : vector<2x32xf32>
    %542 = math.tanh %541 : vector<2x32xf32>
    %cst_226 = arith.constant 1.000000e+00 : f32
    %543 = vector.broadcast %cst_226 : f32 to vector<2x32xf32>
    %544 = arith.subf %543, %537 : vector<2x32xf32>
    %545 = arith.mulf %544, %542 : vector<2x32xf32>
    %546 = arith.mulf %537, %421 : vector<2x32xf32>
    %547 = arith.addf %545, %546 : vector<2x32xf32>
    %548 = tpu.concatenate %547, %440, %445 in 1 : vector<2x32xf32>, vector<2x8xf32>, vector<2x8xf32> -> vector<2x48xf32>
    %c192_227 = arith.constant 192 : index
    %c0_228 = arith.constant 0 : index
    %549 = vector.load %arg0[%c192_227, %c0_228] : memref<592x256xbf16, #tpu.memory_space<vmem>>, vector<48x256xbf16>
    %550 = arith.truncf %548 : vector<2x48xf32> to vector<2x48xbf16>
    %cst_229 = arith.constant dense<0.000000e+00> : vector<2x256xf32>
    %551 = tpu.matmul %550, %549, %cst_229 {dimension_numbers = #tpu.dot_dimension_numbers<[1], [0], [0], [1], [0, 0, 1, 1], [], []>} : vector<2x48xbf16>, vector<48x256xbf16>, vector<2x256xf32> -> vector<2x256xf32>
    %552 = arith.addf %551, %0 : vector<2x256xf32>
    %553 = math.tanh %552 : vector<2x256xf32>
    %c240_230 = arith.constant 240 : index
    %c0_231 = arith.constant 0 : index
    %554 = vector.load %arg0[%c240_230, %c0_231] : memref<592x256xbf16, #tpu.memory_space<vmem>>, vector<256x8xbf16>
    %555 = arith.truncf %553 : vector<2x256xf32> to vector<2x256xbf16>
    %cst_232 = arith.constant dense<0.000000e+00> : vector<2x8xf32>
    %556 = tpu.matmul %555, %554, %cst_232 {dimension_numbers = #tpu.dot_dimension_numbers<[1], [0], [0], [1], [0, 0, 1, 1], [], []>} : vector<2x256xbf16>, vector<256x8xbf16>, vector<2x8xf32> -> vector<2x8xf32>
    %557 = arith.addf %556, %1 : vector<2x8xf32>
    %cst_233 = arith.constant dense<0xFF800000> : vector<2xf32>
    %558 = vector.multi_reduction <maximumf>, %557, %cst_233 [1] : vector<2x8xf32> to vector<2xf32>
    %559 = vector.shape_cast %558 : vector<2xf32> to vector<2x1xf32>
    %560 = vector.broadcast %559 : vector<2x1xf32> to vector<2x8xf32>
    %561 = arith.subf %557, %560 : vector<2x8xf32>
    %562 = math.exp %561 : vector<2x8xf32>
    %cst_234 = arith.constant dense<0.000000e+00> : vector<2xf32>
    %563 = vector.multi_reduction <add>, %562, %cst_234 [1] : vector<2x8xf32> to vector<2xf32>
    %564 = vector.shape_cast %563 : vector<2xf32> to vector<2x1xf32>
    %565 = vector.broadcast %564 : vector<2x1xf32> to vector<2x8xf32>
    %566 = arith.divf %562, %565 : vector<2x8xf32>
    %567 = vector.shape_cast %566 : vector<2x8xf32> to vector<2x8x1xf32>
    %568 = vector.broadcast %567 : vector<2x8x1xf32> to vector<2x8x32xf32>
    %569 = arith.mulf %568, %2 : vector<2x8x32xf32>
    %cst_235 = arith.constant dense<0.000000e+00> : vector<2x32xf32>
    %570 = vector.multi_reduction <add>, %569, %cst_235 [1] : vector<2x8x32xf32> to vector<2x32xf32>
    %571 = arith.addf %445, %566 : vector<2x8xf32>
    %572 = tpu.concatenate %547, %570, %480 in 1 : vector<2x32xf32>, vector<2x32xf32>, vector<2x32xf32> -> vector<2x96xf32>
    %c96_236 = arith.constant 96 : index
    %c0_237 = arith.constant 0 : index
    %573 = vector.load %arg0[%c96_236, %c0_237] : memref<592x256xbf16, #tpu.memory_space<vmem>>, vector<96x192xbf16>
    %c1_238 = arith.constant 1 : index
    %c0_239 = arith.constant 0 : index
    %574 = vector.load %arg1[%c1_238, %c0_239] : memref<3x256xf32, #tpu.memory_space<vmem>>, vector<1x192xf32>
    %575 = arith.truncf %572 : vector<2x96xf32> to vector<2x96xbf16>
    %cst_240 = arith.constant dense<0.000000e+00> : vector<2x192xf32>
    %576 = tpu.matmul %575, %573, %cst_240 {dimension_numbers = #tpu.dot_dimension_numbers<[1], [0], [0], [1], [0, 0, 1, 1], [], []>} : vector<2x96xbf16>, vector<96x192xbf16>, vector<2x192xf32> -> vector<2x192xf32>
    %577 = vector.broadcast %574 : vector<1x192xf32> to vector<2x192xf32>
    %578 = arith.addf %576, %577 : vector<2x192xf32>
    %579 = vector.extract_strided_slice %578 {offsets = [0, 0], sizes = [2, 96], strides = [1, 1]} : vector<2x192xf32> to vector<2x96xf32>
    %580 = vector.extract_strided_slice %578 {offsets = [0, 96], sizes = [2, 96], strides = [1, 1]} : vector<2x192xf32> to vector<2x96xf32>
    %581 = vector.extract_strided_slice %579 {offsets = [0, 0], sizes = [2, 32], strides = [1, 1]} : vector<2x96xf32> to vector<2x32xf32>
    %582 = vector.extract_strided_slice %580 {offsets = [0, 0], sizes = [2, 32], strides = [1, 1]} : vector<2x96xf32> to vector<2x32xf32>
    %583 = arith.addf %581, %582 : vector<2x32xf32>
    %584 = math.tanh %583 : vector<2x32xf32>
    %cst_241 = arith.constant 5.000000e-01 : f32
    %585 = vector.broadcast %cst_241 : f32 to vector<2x32xf32>
    %586 = arith.mulf %585, %584 : vector<2x32xf32>
    %cst_242 = arith.constant 5.000000e-01 : f32
    %587 = vector.broadcast %cst_242 : f32 to vector<2x32xf32>
    %588 = arith.addf %586, %587 : vector<2x32xf32>
    %589 = vector.extract_strided_slice %579 {offsets = [0, 32], sizes = [2, 32], strides = [1, 1]} : vector<2x96xf32> to vector<2x32xf32>
    %590 = vector.extract_strided_slice %580 {offsets = [0, 32], sizes = [2, 32], strides = [1, 1]} : vector<2x96xf32> to vector<2x32xf32>
    %591 = arith.addf %589, %590 : vector<2x32xf32>
    %592 = math.tanh %591 : vector<2x32xf32>
    %cst_243 = arith.constant 5.000000e-01 : f32
    %593 = vector.broadcast %cst_243 : f32 to vector<2x32xf32>
    %594 = arith.mulf %593, %592 : vector<2x32xf32>
    %cst_244 = arith.constant 5.000000e-01 : f32
    %595 = vector.broadcast %cst_244 : f32 to vector<2x32xf32>
    %596 = arith.addf %594, %595 : vector<2x32xf32>
    %597 = vector.extract_strided_slice %579 {offsets = [0, 64], sizes = [2, 32], strides = [1, 1]} : vector<2x96xf32> to vector<2x32xf32>
    %598 = vector.extract_strided_slice %580 {offsets = [0, 64], sizes = [2, 32], strides = [1, 1]} : vector<2x96xf32> to vector<2x32xf32>
    %599 = arith.mulf %588, %598 : vector<2x32xf32>
    %600 = arith.addf %597, %599 : vector<2x32xf32>
    %601 = math.tanh %600 : vector<2x32xf32>
    %cst_245 = arith.constant 1.000000e+00 : f32
    %602 = vector.broadcast %cst_245 : f32 to vector<2x32xf32>
    %603 = arith.subf %602, %596 : vector<2x32xf32>
    %604 = arith.mulf %603, %601 : vector<2x32xf32>
    %605 = arith.mulf %596, %480 : vector<2x32xf32>
    %606 = arith.addf %604, %605 : vector<2x32xf32>
    %c496_246 = arith.constant 496 : index
    %c0_247 = arith.constant 0 : index
    %607 = vector.load %arg0[%c496_246, %c0_247] : memref<592x256xbf16, #tpu.memory_space<vmem>>, vector<64x65xbf16>
    %c2_248 = arith.constant 2 : index
    %c0_249 = arith.constant 0 : index
    %608 = vector.load %arg1[%c2_248, %c0_249] : memref<3x256xf32, #tpu.memory_space<vmem>>, vector<1x65xf32>
    %609 = tpu.concatenate %606, %570 in 1 : vector<2x32xf32>, vector<2x32xf32> -> vector<2x64xf32>
    %610 = arith.truncf %609 : vector<2x64xf32> to vector<2x64xbf16>
    %cst_250 = arith.constant dense<0.000000e+00> : vector<2x65xf32>
    %611 = tpu.matmul %610, %607, %cst_250 {dimension_numbers = #tpu.dot_dimension_numbers<[1], [0], [0], [1], [0, 0, 1, 1], [], []>} : vector<2x64xbf16>, vector<64x65xbf16>, vector<2x65xf32> -> vector<2x65xf32>
    %612 = vector.broadcast %608 : vector<1x65xf32> to vector<2x65xf32>
    %613 = arith.addf %611, %612 : vector<2x65xf32>
    %614 = vector.extract_strided_slice %613 {offsets = [0, 0], sizes = [2, 32], strides = [1, 1]} : vector<2x65xf32> to vector<2x32xf32>
    %615 = vector.extract_strided_slice %613 {offsets = [0, 32], sizes = [2, 1], strides = [1, 1]} : vector<2x65xf32> to vector<2x1xf32>
    %616 = vector.extract_strided_slice %613 {offsets = [0, 33], sizes = [2, 32], strides = [1, 1]} : vector<2x65xf32> to vector<2x32xf32>
    %cst_251 = arith.constant 0.000000e+00 : f32
    %617 = vector.broadcast %cst_251 : f32 to vector<2x32xf32>
    %618 = arith.maximumf %616, %617 : vector<2x32xf32>
    %c4 = arith.constant 4 : index
    %c0_252 = arith.constant 0 : index
    %c0_253 = arith.constant 0 : index
    %619 = vector.load %arg4[%c4, %c0_252, %c0_253] : memref<6x2x64xf32, #tpu.memory_space<vmem>>, vector<1x2x32xf32>
    %620 = vector.shape_cast %619 : vector<1x2x32xf32> to vector<2x32xf32>
    %621 = arith.mulf %618, %620 : vector<2x32xf32>
    %c0_254 = arith.constant 0 : index
    %c4_255 = arith.constant 4 : index
    %c0_256 = arith.constant 0 : index
    %622 = vector.load %arg5[%c0_254, %c4_255, %c0_256] : memref<2x6x32xf32, #tpu.memory_space<vmem>>, vector<2x1x32xf32>
    %623 = vector.shape_cast %622 : vector<2x1x32xf32> to vector<2x32xf32>
    %624 = vector.shape_cast %614 : vector<2x32xf32> to vector<2x1x32xf32>
    tpu.vector_store %arg5[%c0_254, %c4_255, %c0_256], %624 {strides = array<i32>} : memref<2x6x32xf32, #tpu.memory_space<vmem>>, vector<2x1x32xf32>,
    %c0_257 = arith.constant 0 : index
    %c4_258 = arith.constant 4 : index
    %c0_259 = arith.constant 0 : index
    %625 = vector.load %arg6[%c0_257, %c4_258, %c0_259] : memref<2x6x8xf32, #tpu.memory_space<vmem>>, vector<2x1x8xf32>
    %626 = vector.shape_cast %625 : vector<2x1x8xf32> to vector<2x8xf32>
    %627 = vector.shape_cast %566 : vector<2x8xf32> to vector<2x1x8xf32>
    tpu.vector_store %arg6[%c0_257, %c4_258, %c0_259], %627 {strides = array<i32>} : memref<2x6x8xf32, #tpu.memory_space<vmem>>, vector<2x1x8xf32>,
    %c0_260 = arith.constant 0 : index
    %c4_261 = arith.constant 4 : index
    %c0_262 = arith.constant 0 : index
    %628 = vector.load %arg7[%c0_260, %c4_261, %c0_262] : memref<2x6x1xf32, #tpu.memory_space<vmem>>, vector<2x1x1xf32>
    %629 = vector.shape_cast %628 : vector<2x1x1xf32> to vector<2x1xf32>
    %630 = vector.shape_cast %615 : vector<2x1xf32> to vector<2x1x1xf32>
    tpu.vector_store %arg7[%c0_260, %c4_261, %c0_262], %630 {strides = array<i32>} : memref<2x6x1xf32, #tpu.memory_space<vmem>>, vector<2x1x1xf32>,
    %c560_263 = arith.constant 560 : index
    %c0_264 = arith.constant 0 : index
    %631 = vector.load %arg0[%c560_263, %c0_264] : memref<592x256xbf16, #tpu.memory_space<vmem>>, vector<32x32xbf16>
    %632 = arith.truncf %621 : vector<2x32xf32> to vector<2x32xbf16>
    %cst_265 = arith.constant dense<0.000000e+00> : vector<2x32xf32>
    %633 = tpu.matmul %632, %631, %cst_265 {dimension_numbers = #tpu.dot_dimension_numbers<[1], [0], [0], [1], [0, 0, 1, 1], [], []>} : vector<2x32xbf16>, vector<32x32xbf16>, vector<2x32xf32> -> vector<2x32xf32>
    %cst_266 = arith.constant 0.000000e+00 : f32
    %634 = vector.broadcast %cst_266 : f32 to vector<2x32xf32>
    %635 = arith.maximumf %633, %634 : vector<2x32xf32>
    %c4_267 = arith.constant 4 : index
    %c0_268 = arith.constant 0 : index
    %c32_269 = arith.constant 32 : index
    %636 = vector.load %arg4[%c4_267, %c0_268, %c32_269] : memref<6x2x64xf32, #tpu.memory_space<vmem>>, vector<1x2x32xf32>
    %637 = vector.shape_cast %636 : vector<1x2x32xf32> to vector<2x32xf32>
    %638 = arith.mulf %635, %637 : vector<2x32xf32>
    %639 = tpu.concatenate %638, %570, %547 in 1 : vector<2x32xf32>, vector<2x32xf32>, vector<2x32xf32> -> vector<2x96xf32>
    %c0_270 = arith.constant 0 : index
    %c0_271 = arith.constant 0 : index
    %640 = vector.load %arg0[%c0_270, %c0_271] : memref<592x256xbf16, #tpu.memory_space<vmem>>, vector<96x192xbf16>
    %c0_272 = arith.constant 0 : index
    %c0_273 = arith.constant 0 : index
    %641 = vector.load %arg1[%c0_272, %c0_273] : memref<3x256xf32, #tpu.memory_space<vmem>>, vector<1x192xf32>
    %642 = arith.truncf %639 : vector<2x96xf32> to vector<2x96xbf16>
    %cst_274 = arith.constant dense<0.000000e+00> : vector<2x192xf32>
    %643 = tpu.matmul %642, %640, %cst_274 {dimension_numbers = #tpu.dot_dimension_numbers<[1], [0], [0], [1], [0, 0, 1, 1], [], []>} : vector<2x96xbf16>, vector<96x192xbf16>, vector<2x192xf32> -> vector<2x192xf32>
    %644 = vector.broadcast %641 : vector<1x192xf32> to vector<2x192xf32>
    %645 = arith.addf %643, %644 : vector<2x192xf32>
    %646 = vector.extract_strided_slice %645 {offsets = [0, 0], sizes = [2, 96], strides = [1, 1]} : vector<2x192xf32> to vector<2x96xf32>
    %647 = vector.extract_strided_slice %645 {offsets = [0, 96], sizes = [2, 96], strides = [1, 1]} : vector<2x192xf32> to vector<2x96xf32>
    %648 = vector.extract_strided_slice %646 {offsets = [0, 0], sizes = [2, 32], strides = [1, 1]} : vector<2x96xf32> to vector<2x32xf32>
    %649 = vector.extract_strided_slice %647 {offsets = [0, 0], sizes = [2, 32], strides = [1, 1]} : vector<2x96xf32> to vector<2x32xf32>
    %650 = arith.addf %648, %649 : vector<2x32xf32>
    %651 = math.tanh %650 : vector<2x32xf32>
    %cst_275 = arith.constant 5.000000e-01 : f32
    %652 = vector.broadcast %cst_275 : f32 to vector<2x32xf32>
    %653 = arith.mulf %652, %651 : vector<2x32xf32>
    %cst_276 = arith.constant 5.000000e-01 : f32
    %654 = vector.broadcast %cst_276 : f32 to vector<2x32xf32>
    %655 = arith.addf %653, %654 : vector<2x32xf32>
    %656 = vector.extract_strided_slice %646 {offsets = [0, 32], sizes = [2, 32], strides = [1, 1]} : vector<2x96xf32> to vector<2x32xf32>
    %657 = vector.extract_strided_slice %647 {offsets = [0, 32], sizes = [2, 32], strides = [1, 1]} : vector<2x96xf32> to vector<2x32xf32>
    %658 = arith.addf %656, %657 : vector<2x32xf32>
    %659 = math.tanh %658 : vector<2x32xf32>
    %cst_277 = arith.constant 5.000000e-01 : f32
    %660 = vector.broadcast %cst_277 : f32 to vector<2x32xf32>
    %661 = arith.mulf %660, %659 : vector<2x32xf32>
    %cst_278 = arith.constant 5.000000e-01 : f32
    %662 = vector.broadcast %cst_278 : f32 to vector<2x32xf32>
    %663 = arith.addf %661, %662 : vector<2x32xf32>
    %664 = vector.extract_strided_slice %646 {offsets = [0, 64], sizes = [2, 32], strides = [1, 1]} : vector<2x96xf32> to vector<2x32xf32>
    %665 = vector.extract_strided_slice %647 {offsets = [0, 64], sizes = [2, 32], strides = [1, 1]} : vector<2x96xf32> to vector<2x32xf32>
    %666 = arith.mulf %655, %665 : vector<2x32xf32>
    %667 = arith.addf %664, %666 : vector<2x32xf32>
    %668 = math.tanh %667 : vector<2x32xf32>
    %cst_279 = arith.constant 1.000000e+00 : f32
    %669 = vector.broadcast %cst_279 : f32 to vector<2x32xf32>
    %670 = arith.subf %669, %663 : vector<2x32xf32>
    %671 = arith.mulf %670, %668 : vector<2x32xf32>
    %672 = arith.mulf %663, %547 : vector<2x32xf32>
    %673 = arith.addf %671, %672 : vector<2x32xf32>
    %674 = tpu.concatenate %673, %566, %571 in 1 : vector<2x32xf32>, vector<2x8xf32>, vector<2x8xf32> -> vector<2x48xf32>
    %c192_280 = arith.constant 192 : index
    %c0_281 = arith.constant 0 : index
    %675 = vector.load %arg0[%c192_280, %c0_281] : memref<592x256xbf16, #tpu.memory_space<vmem>>, vector<48x256xbf16>
    %676 = arith.truncf %674 : vector<2x48xf32> to vector<2x48xbf16>
    %cst_282 = arith.constant dense<0.000000e+00> : vector<2x256xf32>
    %677 = tpu.matmul %676, %675, %cst_282 {dimension_numbers = #tpu.dot_dimension_numbers<[1], [0], [0], [1], [0, 0, 1, 1], [], []>} : vector<2x48xbf16>, vector<48x256xbf16>, vector<2x256xf32> -> vector<2x256xf32>
    %678 = arith.addf %677, %0 : vector<2x256xf32>
    %679 = math.tanh %678 : vector<2x256xf32>
    %c240_283 = arith.constant 240 : index
    %c0_284 = arith.constant 0 : index
    %680 = vector.load %arg0[%c240_283, %c0_284] : memref<592x256xbf16, #tpu.memory_space<vmem>>, vector<256x8xbf16>
    %681 = arith.truncf %679 : vector<2x256xf32> to vector<2x256xbf16>
    %cst_285 = arith.constant dense<0.000000e+00> : vector<2x8xf32>
    %682 = tpu.matmul %681, %680, %cst_285 {dimension_numbers = #tpu.dot_dimension_numbers<[1], [0], [0], [1], [0, 0, 1, 1], [], []>} : vector<2x256xbf16>, vector<256x8xbf16>, vector<2x8xf32> -> vector<2x8xf32>
    %683 = arith.addf %682, %1 : vector<2x8xf32>
    %cst_286 = arith.constant dense<0xFF800000> : vector<2xf32>
    %684 = vector.multi_reduction <maximumf>, %683, %cst_286 [1] : vector<2x8xf32> to vector<2xf32>
    %685 = vector.shape_cast %684 : vector<2xf32> to vector<2x1xf32>
    %686 = vector.broadcast %685 : vector<2x1xf32> to vector<2x8xf32>
    %687 = arith.subf %683, %686 : vector<2x8xf32>
    %688 = math.exp %687 : vector<2x8xf32>
    %cst_287 = arith.constant dense<0.000000e+00> : vector<2xf32>
    %689 = vector.multi_reduction <add>, %688, %cst_287 [1] : vector<2x8xf32> to vector<2xf32>
    %690 = vector.shape_cast %689 : vector<2xf32> to vector<2x1xf32>
    %691 = vector.broadcast %690 : vector<2x1xf32> to vector<2x8xf32>
    %692 = arith.divf %688, %691 : vector<2x8xf32>
    %693 = vector.shape_cast %692 : vector<2x8xf32> to vector<2x8x1xf32>
    %694 = vector.broadcast %693 : vector<2x8x1xf32> to vector<2x8x32xf32>
    %695 = arith.mulf %694, %2 : vector<2x8x32xf32>
    %cst_288 = arith.constant dense<0.000000e+00> : vector<2x32xf32>
    %696 = vector.multi_reduction <add>, %695, %cst_288 [1] : vector<2x8x32xf32> to vector<2x32xf32>
    %697 = tpu.concatenate %673, %696, %606 in 1 : vector<2x32xf32>, vector<2x32xf32>, vector<2x32xf32> -> vector<2x96xf32>
    %c96_289 = arith.constant 96 : index
    %c0_290 = arith.constant 0 : index
    %698 = vector.load %arg0[%c96_289, %c0_290] : memref<592x256xbf16, #tpu.memory_space<vmem>>, vector<96x192xbf16>
    %c1_291 = arith.constant 1 : index
    %c0_292 = arith.constant 0 : index
    %699 = vector.load %arg1[%c1_291, %c0_292] : memref<3x256xf32, #tpu.memory_space<vmem>>, vector<1x192xf32>
    %700 = arith.truncf %697 : vector<2x96xf32> to vector<2x96xbf16>
    %cst_293 = arith.constant dense<0.000000e+00> : vector<2x192xf32>
    %701 = tpu.matmul %700, %698, %cst_293 {dimension_numbers = #tpu.dot_dimension_numbers<[1], [0], [0], [1], [0, 0, 1, 1], [], []>} : vector<2x96xbf16>, vector<96x192xbf16>, vector<2x192xf32> -> vector<2x192xf32>
    %702 = vector.broadcast %699 : vector<1x192xf32> to vector<2x192xf32>
    %703 = arith.addf %701, %702 : vector<2x192xf32>
    %704 = vector.extract_strided_slice %703 {offsets = [0, 0], sizes = [2, 96], strides = [1, 1]} : vector<2x192xf32> to vector<2x96xf32>
    %705 = vector.extract_strided_slice %703 {offsets = [0, 96], sizes = [2, 96], strides = [1, 1]} : vector<2x192xf32> to vector<2x96xf32>
    %706 = vector.extract_strided_slice %704 {offsets = [0, 0], sizes = [2, 32], strides = [1, 1]} : vector<2x96xf32> to vector<2x32xf32>
    %707 = vector.extract_strided_slice %705 {offsets = [0, 0], sizes = [2, 32], strides = [1, 1]} : vector<2x96xf32> to vector<2x32xf32>
    %708 = arith.addf %706, %707 : vector<2x32xf32>
    %709 = math.tanh %708 : vector<2x32xf32>
    %cst_294 = arith.constant 5.000000e-01 : f32
    %710 = vector.broadcast %cst_294 : f32 to vector<2x32xf32>
    %711 = arith.mulf %710, %709 : vector<2x32xf32>
    %cst_295 = arith.constant 5.000000e-01 : f32
    %712 = vector.broadcast %cst_295 : f32 to vector<2x32xf32>
    %713 = arith.addf %711, %712 : vector<2x32xf32>
    %714 = vector.extract_strided_slice %704 {offsets = [0, 32], sizes = [2, 32], strides = [1, 1]} : vector<2x96xf32> to vector<2x32xf32>
    %715 = vector.extract_strided_slice %705 {offsets = [0, 32], sizes = [2, 32], strides = [1, 1]} : vector<2x96xf32> to vector<2x32xf32>
    %716 = arith.addf %714, %715 : vector<2x32xf32>
    %717 = math.tanh %716 : vector<2x32xf32>
    %cst_296 = arith.constant 5.000000e-01 : f32
    %718 = vector.broadcast %cst_296 : f32 to vector<2x32xf32>
    %719 = arith.mulf %718, %717 : vector<2x32xf32>
    %cst_297 = arith.constant 5.000000e-01 : f32
    %720 = vector.broadcast %cst_297 : f32 to vector<2x32xf32>
    %721 = arith.addf %719, %720 : vector<2x32xf32>
    %722 = vector.extract_strided_slice %704 {offsets = [0, 64], sizes = [2, 32], strides = [1, 1]} : vector<2x96xf32> to vector<2x32xf32>
    %723 = vector.extract_strided_slice %705 {offsets = [0, 64], sizes = [2, 32], strides = [1, 1]} : vector<2x96xf32> to vector<2x32xf32>
    %724 = arith.mulf %713, %723 : vector<2x32xf32>
    %725 = arith.addf %722, %724 : vector<2x32xf32>
    %726 = math.tanh %725 : vector<2x32xf32>
    %cst_298 = arith.constant 1.000000e+00 : f32
    %727 = vector.broadcast %cst_298 : f32 to vector<2x32xf32>
    %728 = arith.subf %727, %721 : vector<2x32xf32>
    %729 = arith.mulf %728, %726 : vector<2x32xf32>
    %730 = arith.mulf %721, %606 : vector<2x32xf32>
    %731 = arith.addf %729, %730 : vector<2x32xf32>
    %c496_299 = arith.constant 496 : index
    %c0_300 = arith.constant 0 : index
    %732 = vector.load %arg0[%c496_299, %c0_300] : memref<592x256xbf16, #tpu.memory_space<vmem>>, vector<64x65xbf16>
    %c2_301 = arith.constant 2 : index
    %c0_302 = arith.constant 0 : index
    %733 = vector.load %arg1[%c2_301, %c0_302] : memref<3x256xf32, #tpu.memory_space<vmem>>, vector<1x65xf32>
    %734 = tpu.concatenate %731, %696 in 1 : vector<2x32xf32>, vector<2x32xf32> -> vector<2x64xf32>
    %735 = arith.truncf %734 : vector<2x64xf32> to vector<2x64xbf16>
    %cst_303 = arith.constant dense<0.000000e+00> : vector<2x65xf32>
    %736 = tpu.matmul %735, %732, %cst_303 {dimension_numbers = #tpu.dot_dimension_numbers<[1], [0], [0], [1], [0, 0, 1, 1], [], []>} : vector<2x64xbf16>, vector<64x65xbf16>, vector<2x65xf32> -> vector<2x65xf32>
    %737 = vector.broadcast %733 : vector<1x65xf32> to vector<2x65xf32>
    %738 = arith.addf %736, %737 : vector<2x65xf32>
    %739 = vector.extract_strided_slice %738 {offsets = [0, 0], sizes = [2, 32], strides = [1, 1]} : vector<2x65xf32> to vector<2x32xf32>
    %740 = vector.extract_strided_slice %738 {offsets = [0, 32], sizes = [2, 1], strides = [1, 1]} : vector<2x65xf32> to vector<2x1xf32>
    %c0_304 = arith.constant 0 : index
    %c5 = arith.constant 5 : index
    %c0_305 = arith.constant 0 : index
    %741 = vector.load %arg5[%c0_304, %c5, %c0_305] : memref<2x6x32xf32, #tpu.memory_space<vmem>>, vector<2x1x32xf32>
    %742 = vector.shape_cast %741 : vector<2x1x32xf32> to vector<2x32xf32>
    %743 = vector.shape_cast %739 : vector<2x32xf32> to vector<2x1x32xf32>
    tpu.vector_store %arg5[%c0_304, %c5, %c0_305], %743 {strides = array<i32>} : memref<2x6x32xf32, #tpu.memory_space<vmem>>, vector<2x1x32xf32>,
    %c0_306 = arith.constant 0 : index
    %c5_307 = arith.constant 5 : index
    %c0_308 = arith.constant 0 : index
    %744 = vector.load %arg6[%c0_306, %c5_307, %c0_308] : memref<2x6x8xf32, #tpu.memory_space<vmem>>, vector<2x1x8xf32>
    %745 = vector.shape_cast %744 : vector<2x1x8xf32> to vector<2x8xf32>
    %746 = vector.shape_cast %692 : vector<2x8xf32> to vector<2x1x8xf32>
    tpu.vector_store %arg6[%c0_306, %c5_307, %c0_308], %746 {strides = array<i32>} : memref<2x6x8xf32, #tpu.memory_space<vmem>>, vector<2x1x8xf32>,
    %c0_309 = arith.constant 0 : index
    %c5_310 = arith.constant 5 : index
    %c0_311 = arith.constant 0 : index
    %747 = vector.load %arg7[%c0_309, %c5_310, %c0_311] : memref<2x6x1xf32, #tpu.memory_space<vmem>>, vector<2x1x1xf32>
    %748 = vector.shape_cast %747 : vector<2x1x1xf32> to vector<2x1xf32>
    %749 = vector.shape_cast %740 : vector<2x1xf32> to vector<2x1x1xf32>
    tpu.vector_store %arg7[%c0_309, %c5_310, %c0_311], %749 {strides = array<i32>} : memref<2x6x1xf32, #tpu.memory_space<vmem>>, vector<2x1x1xf32>,
    return
  }
}

</mosaic_0001>

<llo_original>
// kernel: decoder_forward.1
$region0: #{decoder_forward.1}
  #allocation0 [shape = 'u32[]', space=smem, size = 0x4, offset = 0x4, fixed_abs, tag = 'smem constant byte address 0x4 - core index']
  #allocation1 [shape = 'u32[144,128]{1,0:T(1,128)}', space=vmem, size = 0x12000, scoped, tag = 'internal scratch']
  %s0 = inlined_call_operand.hbm [shape: bf16[592,256], index: 0, kind: input, shape index: {}]
  %s1 = inlined_call_operand.vmem [shape: f32[3,256], index: 1, kind: input, shape index: {}]
  %s2 = inlined_call_operand.vmem [shape: f32[2,264], index: 2, kind: input, shape index: {}]
  %s3 = inlined_call_operand.vmem [shape: f32[2,8,32], index: 3, kind: input, shape index: {}]
  %s4 = inlined_call_operand.vmem [shape: f32[6,2,64], index: 4, kind: input, shape index: {}]
  %s5 = inlined_call_operand.vmem [shape: f32[2,6,32], index: 5, kind: output, shape index: {0}]
  %s6 = inlined_call_operand.vmem [shape: f32[2,6,8], index: 6, kind: output, shape index: {1}]
  %s7 = inlined_call_operand.vmem [shape: f32[2,6,1], index: 7, kind: output, shape index: {2}]
  %8 = xla_tuple %s5, %s6, %s7
  %s9 = sld [smem:[#allocation0]]
  $region50: #{decoder_forward.1} parent=0
    _
  %s11 = ssub.s32 1, %s9
  %s12 = scalar_select 0, %s11, %s9
  $region1: #{decoder_forward.1} parent=0
    #allocation2 [shape = 'u8[303104]{0}', space=vmem, size = 0x4a000, scoped, tag = 'input window, operand 0, single buffered']
    #allocation3 [shape = 's32[1]{0}', space=sflag, size = 0x4, scoped, tag = 'scoped memory for decoder_forward.1']
    %13 = vsyncpa [#allocation3], 0
    // Predicated region
    $region2: #{decoder_forward.1} parent=1 // pred_check
      _
    $region3: #{decoder_forward.1} parent=1 // pred_check_branch
      %15 = sbr.rel (0) target = $region5
    $region4: #{decoder_forward.1} parent=1 // pred_region
      %s17 = ssub.s32 9472, 9472
      %18 = vsyncadd [#allocation3], %s17
      %s19 = sshll.u32 [#allocation2], 4
      %s20 = int_to_ptr.vmem [resolvable:$true] %s19
      %25 = dma.hbm_to_vmem [thread:$0]  %s0, 9472, %s20, [#allocation3], 128, 128, 8
    $region5: #{decoder_forward.1} parent=1 // pred_fallthru
      _
    // Predicated region
    $region6: #{decoder_forward.1} parent=1 // pred_check
      _
    $region7: #{decoder_forward.1} parent=1 // pred_check_branch
      %27 = sbr.rel (0) target = $region9
    $region8: #{decoder_forward.1} parent=1 // pred_region
      _
    $region9: #{decoder_forward.1} parent=1 // pred_fallthru
      _
    // Predicated region
    $region10: #{decoder_forward.1} parent=1 // pred_check
      _
    $region11: #{decoder_forward.1} parent=1 // pred_check_branch
      %29 = sbr.rel (0) target = $region13
    $region12: #{decoder_forward.1} parent=1 // pred_region
      _
    $region13: #{decoder_forward.1} parent=1 // pred_fallthru
      _
    // Predicated region
    $region14: #{decoder_forward.1} parent=1 // pred_check
      _
    $region15: #{decoder_forward.1} parent=1 // pred_check_branch
      %31 = sbr.rel (0) target = $region17
    $region16: #{decoder_forward.1} parent=1 // pred_region
      _
    $region17: #{decoder_forward.1} parent=1 // pred_fallthru
      _
    // Predicated region
    $region18: #{decoder_forward.1} parent=1 // pred_check
      _
    $region19: #{decoder_forward.1} parent=1 // pred_check_branch
      %33 = sbr.rel (0) target = $region21
    $region20: #{decoder_forward.1} parent=1 // pred_region
      _
    $region21: #{decoder_forward.1} parent=1 // pred_fallthru
      _
    // Predicated region
    $region22: #{decoder_forward.1} parent=1 // pred_check
      _
    $region23: #{decoder_forward.1} parent=1 // pred_check_branch
      %35 = sbr.rel (0) target = $region25
    $region24: #{decoder_forward.1} parent=1 // pred_region
      %36 = dma.done [#allocation3], 9472
    $region25: #{decoder_forward.1} parent=1 // pred_fallthru
      _
    %v38 = vld [vmem:[%s2] sm:$0xf]
    %v39 = vld [vmem:[%s2 + $0x4] sm:$0x3]
    %v40 = vld [vmem:[%s3] sm:$0xff]
    %v41 = vld [vmem:[%s3 + $0x8] sm:$0xff]
    %v42 = vld [vmem:[#allocation2] sm:$0xff]
    %v43 = vld [vmem:[#allocation2 + $0x8] sm:$0xff]
    %v44 = vld [vmem:[#allocation2 + $0x10] sm:$0xff]
    %v45 = vld [vmem:[#allocation2 + $0x18] sm:$0xff]
    %v46 = vld [vmem:[#allocation2 + $0x20] sm:$0xff]
    %v47 = vld [vmem:[#allocation2 + $0x28] sm:$0xff]
    %v48 = vld [vmem:[#allocation2 + $0x30] sm:$0xff]
    %v49 = vld [vmem:[#allocation2 + $0x38] sm:$0xff]
    %v50 = vld [vmem:[#allocation2 + $0x40] sm:$0xff]
    %v51 = vld [vmem:[#allocation2 + $0x48] sm:$0xff]
    %v52 = vld [vmem:[#allocation2 + $0x50] sm:$0xff]
    %v53 = vld [vmem:[#allocation2 + $0x58] sm:$0xff]
    %v54 = vld [vmem:[%s1] ss:$4 sm:$0x3]
    %v55 = vpack.c.bf16 0.0, 0.0
    %v57 = vlaneseq
    %v58 = vshrl.u32 %v57, 7
    %v59 = vsub.s32 0, %v58
    %v60 = vrot.slane %v54, %v59
    %v61 = vlaneseq
    %v62 = vshrl.u32 %v61, 7
    %v63 = vsub.s32 1, %v62
    %v64 = vrot.slane %v54, %v63
    %v79 = vunpack.c.l.b16 %v42
    %v80 = vunpack.c.h.b16 %v42
    %v81 = vunpack.c.l.b16 %v43
    %v82 = vunpack.c.h.b16 %v43
    %v83 = vunpack.c.l.b16 %v44
    %v84 = vunpack.c.h.b16 %v44
    %v85 = vunpack.c.l.b16 %v45
    %v86 = vunpack.c.h.b16 %v45
    %v87 = vunpack.c.l.b16 %v46
    %v88 = vunpack.c.h.b16 %v46
    %v89 = vunpack.c.l.b16 %v47
    %v90 = vunpack.c.h.b16 %v47
    %v91 = vunpack.c.l.b16 %v48
    %v92 = vunpack.c.h.b16 %v48
    %v93 = vunpack.c.l.b16 %v49
    %v94 = vunpack.c.h.b16 %v49
    %v95 = vunpack.c.l.b16 %v50
    %v96 = vunpack.c.h.b16 %v50
    %v97 = vunpack.c.l.b16 %v51
    %v98 = vunpack.c.h.b16 %v51
    %v99 = vunpack.c.l.b16 %v52
    %v100 = vunpack.c.h.b16 %v52
    %v101 = vunpack.c.l.b16 %v53
    %v102 = vunpack.c.h.b16 %v53
    %v103 = vpack.c.b16 %v81, %v79
    %v104 = vpack.c.b16 %v82, %v80
    %v105 = vpack.c.b16 %v85, %v83
    %v106 = vpack.c.b16 %v86, %v84
    %v107 = vpack.c.b16 %v89, %v87
    %v108 = vpack.c.b16 %v90, %v88
    %v109 = vpack.c.b16 %v93, %v91
    %v110 = vpack.c.b16 %v94, %v92
    %v111 = vpack.c.b16 %v97, %v95
    %v112 = vpack.c.b16 %v98, %v96
    %v113 = vpack.c.b16 %v101, %v99
    %v114 = vpack.c.b16 %v102, %v100
    %vm127 = vcmask 785408
    %v129 = vsel %vm127, %v55, 0
    %131 = vmatprep.subr.bf16.mxu0 %v104
    %132 = vmatpush1.bf16.msra.mxu0 %v103
    %133 = vmatprep.subr.bf16.mxu0 %v106
    %134 = vmatpush1.bf16.msra.mxu0 %v105
    %135 = vmatprep.subr.bf16.mxu0 %v108
    %136 = vmatpush1.bf16.msra.mxu0 %v107
    %137 = vmatprep.subr.bf16.mxu0 %v110
    %138 = vmatpush1.bf16.msra.mxu0 %v109
    %139 = vmatprep.subr.bf16.mxu0 %v112
    %140 = vmatpush1.bf16.msra.mxu0 %v111
    %141 = vmatprep.subr.bf16.mxu0 %v114
    %142 = vmatpush1.bf16.msra.mxu0 %v113
    %143 = vmatprep.subr.bf16.mxu0 0
    %144 = vmatpush1.bf16.msra.mxu0 0
    %145 = vmatprep.subr.bf16.mxu0 0
    %146 = vmatpush1.bf16.msra.mxu0 0
    %147 = vmatprep.subr.bf16.mxu0 0
    %148 = vmatpush1.bf16.msra.mxu0 0
    %149 = vmatprep.subr.bf16.mxu0 0
    %150 = vmatpush1.bf16.msra.mxu0 0
    %151 = vmatprep.subr.bf16.mxu0 0
    %152 = vmatpush1.bf16.msra.mxu0 0
    %153 = vmatprep.subr.bf16.mxu0 0
    %154 = vmatpush1.bf16.msra.mxu0 0
    %155 = vmatprep.subr.bf16.mxu0 0
    %156 = vmatpush1.bf16.msra.mxu0 0
    %157 = vmatprep.subr.bf16.mxu0 0
    %158 = vmatpush1.bf16.msra.mxu0 0
    %159 = vmatprep.subr.bf16.mxu0 0
    %160 = vmatpush1.bf16.msra.mxu0 0
    %161 = vmatprep.subr.bf16.mxu0 0
    %162 = vmatpush1.bf16.msra.mxu0 0
    %163 = vmatprep.mubr.bf16.mxu0 0
    %164 = vmatmul.mubr.bf16.gmra.mrb[0].mxu0 %v129
    %v165 = vpop.f32.mrb[0].mxu0
    %v166 = vadd.f32 %v60, %v165
    %v167 = vpop.f32.mrb[0].mxu0
    %v168 = vadd.f32 %v64, %v167
    %v169 = vpop.f32.mrb[0].mxu0
    %v170 = vpop.f32.mrb[0].mxu0
    %171 = vdwg.mxu0
    %173 = vrot.lane.b32.xlu0 %v166, 32
    %v174 = vpop.permute.xlu0 %173
    %v176 = vadd.f32 %v166, %v174
    %v177 = vtanh.pop %v176
    %v178 = vmul.f32 %v177, 0.5
    %v179 = vadd.f32 %v178, 0.5
    %181 = vrot.lane.b32.xlu0 %v168, 32
    %v182 = vpop.permute.xlu0 %181
    %v184 = vadd.f32 %v166, %v182
    %v185 = vtanh.pop %v184
    %v186 = vmul.f32 %v185, 0.5
    %v187 = vadd.f32 %v186, 0.5
    %188 = vrot.lane.b32.xlu0 %v168, 96
    %v189 = vpop.permute.xlu0 %188
    %v191 = vmul.f32 %v179, %v189
    %193 = vrot.lane.b32.xlu0 %v191, 64
    %v194 = vpop.permute.xlu0 %193
    %v196 = vadd.f32 %v166, %v194
    %v197 = vtanh.pop %v196
    %v198 = vsub.f32 1.0, %v187
    %200 = vrot.lane.b32.xlu0 %v197, 96
    %v201 = vpop.permute.xlu0 %200
    %v203 = vmul.f32 %v198, %v201
    %v204 = vmul.f32 %v187, 0.0
    %v205 = vadd.f32 %v203, %v204
    %207 = vrot.lane.b32.xlu0 %v205, 96
    %v208 = vpop.permute.xlu0 %207
    %vm210 = vcmask 261120
    %v211 = vsel %vm210, %v208, 0.0
    %vm212 = vcmask 326656
    %v213 = vsel %vm212, %v211, 0.0
    %v214 = vld [vmem:[#allocation2 + $0xc0] sm:$0xff]
    %v215 = vld [vmem:[#allocation2 + $0xc8] sm:$0xff]
    %v216 = vld [vmem:[#allocation2 + $0xd0] sm:$0xff]
    %v217 = vld [vmem:[#allocation2 + $0xd8] sm:$0xff]
    %v218 = vld [vmem:[#allocation2 + $0xe0] sm:$0xff]
    %v219 = vld [vmem:[#allocation2 + $0xe8] sm:$0xff]
    %v220 = vpack.c.bf16 %v213, %v213
    %v227 = vunpack.c.l.b16 %v214
    %v228 = vunpack.c.h.b16 %v214
    %v229 = vunpack.c.l.b16 %v215
    %v230 = vunpack.c.h.b16 %v215
    %v231 = vunpack.c.l.b16 %v216
    %v232 = vunpack.c.h.b16 %v216
    %v233 = vunpack.c.l.b16 %v217
    %v234 = vunpack.c.h.b16 %v217
    %v235 = vunpack.c.l.b16 %v218
    %v236 = vunpack.c.h.b16 %v218
    %v237 = vunpack.c.l.b16 %v219
    %v238 = vunpack.c.h.b16 %v219
    %v239 = vpack.c.b16 %v229, %v227
    %v240 = vpack.c.b16 %v230, %v228
    %v241 = vpack.c.b16 %v233, %v231
    %v242 = vpack.c.b16 %v234, %v232
    %v243 = vpack.c.b16 %v237, %v235
    %v244 = vpack.c.b16 %v238, %v236
    %v253 = vunpack.c.l.s4 1983009808
    %v254 = vunpack.c.0.s8 %v253
    %v255 = vlaneseq
    %v256 = vshrl.u32 %v255, 7
    %v257 = vsub.s32 %v254, %v256
    %v258 = vrot.slane %v38, %v257
    %v259 = vcombine.high %v258, %v258
    %vm262 = vcmask 392192
    %v264 = vsel %vm262, %v220, 0
    %266 = vmatprep.subr.bf16.mxu0 %v240
    %267 = vmatpush1.bf16.msra.mxu0 %v239
    %268 = vmatprep.subr.bf16.mxu0 %v242
    %269 = vmatpush1.bf16.msra.mxu0 %v241
    %270 = vmatprep.subr.bf16.mxu0 %v244
    %271 = vmatpush1.bf16.msra.mxu0 %v243
    %272 = vmatprep.subr.bf16.mxu0 0
    %273 = vmatpush1.bf16.msra.mxu0 0
    %274 = vmatprep.subr.bf16.mxu0 0
    %275 = vmatpush1.bf16.msra.mxu0 0
    %276 = vmatprep.subr.bf16.mxu0 0
    %277 = vmatpush1.bf16.msra.mxu0 0
    %278 = vmatprep.subr.bf16.mxu0 0
    %279 = vmatpush1.bf16.msra.mxu0 0
    %280 = vmatprep.subr.bf16.mxu0 0
    %281 = vmatpush1.bf16.msra.mxu0 0
    %282 = vmatprep.subr.bf16.mxu0 0
    %283 = vmatpush1.bf16.msra.mxu0 0
    %284 = vmatprep.subr.bf16.mxu0 0
    %285 = vmatpush1.bf16.msra.mxu0 0
    %286 = vmatprep.subr.bf16.mxu0 0
    %287 = vmatpush1.bf16.msra.mxu0 0
    %288 = vmatprep.subr.bf16.mxu0 0
    %289 = vmatpush1.bf16.msra.mxu0 0
    %290 = vmatprep.subr.bf16.mxu0 0
    %291 = vmatpush1.bf16.msra.mxu0 0
    %292 = vmatprep.subr.bf16.mxu0 0
    %293 = vmatpush1.bf16.msra.mxu0 0
    %294 = vmatprep.subr.bf16.mxu0 0
    %295 = vmatpush1.bf16.msra.mxu0 0
    %296 = vmatprep.subr.bf16.mxu0 0
    %297 = vmatpush1.bf16.msra.mxu0 0
    %298 = vmatprep.mubr.bf16.mxu0 0
    %299 = vmatmul.mubr.bf16.gmra.mrb[0].mxu0 %v264
    %v300 = vpop.f32.mrb[0].mxu0
    %v301 = vadd.f32 %v258, %v300
    %v302 = vpop.f32.mrb[0].mxu0
    %v303 = vadd.f32 %v259, %v302
    %v304 = vpop.f32.mrb[0].mxu0
    %v305 = vpop.f32.mrb[0].mxu0
    %306 = vdwg.mxu0
    %v307 = vtanh.pop %v301
    %v308 = vtanh.pop %v303
    %v309 = vld [vmem:[#allocation2 + $0xf0] sm:$0xf]
    %v310 = vld [vmem:[#allocation2 + $0xf8] sm:$0xf]
    %v311 = vld [vmem:[#allocation2 + $0x100] sm:$0xf]
    %v312 = vld [vmem:[#allocation2 + $0x108] sm:$0xf]
    %v313 = vld [vmem:[#allocation2 + $0x110] sm:$0xf]
    %v314 = vld [vmem:[#allocation2 + $0x118] sm:$0xf]
    %v315 = vld [vmem:[#allocation2 + $0x120] sm:$0xf]
    %v316 = vld [vmem:[#allocation2 + $0x128] sm:$0xf]
    %v317 = vld [vmem:[#allocation2 + $0x130] sm:$0xf]
    %v318 = vld [vmem:[#allocation2 + $0x138] sm:$0xf]
    %v319 = vld [vmem:[#allocation2 + $0x140] sm:$0xf]
    %v320 = vld [vmem:[#allocation2 + $0x148] sm:$0xf]
    %v321 = vld [vmem:[#allocation2 + $0x150] sm:$0xf]
    %v322 = vld [vmem:[#allocation2 + $0x158] sm:$0xf]
    %v323 = vld [vmem:[#allocation2 + $0x160] sm:$0xf]
    %v324 = vld [vmem:[#allocation2 + $0x168] sm:$0xf]
    %v325 = vld [vmem:[#allocation2 + $0x170] sm:$0xf]
    %v326 = vld [vmem:[#allocation2 + $0x178] sm:$0xf]
    %v327 = vld [vmem:[#allocation2 + $0x180] sm:$0xf]
    %v328 = vld [vmem:[#allocation2 + $0x188] sm:$0xf]
    %v329 = vld [vmem:[#allocation2 + $0x190] sm:$0xf]
    %v330 = vld [vmem:[#allocation2 + $0x198] sm:$0xf]
    %v331 = vld [vmem:[#allocation2 + $0x1a0] sm:$0xf]
    %v332 = vld [vmem:[#allocation2 + $0x1a8] sm:$0xf]
    %v333 = vld [vmem:[#allocation2 + $0x1b0] sm:$0xf]
    %v334 = vld [vmem:[#allocation2 + $0x1b8] sm:$0xf]
    %v335 = vld [vmem:[#allocation2 + $0x1c0] sm:$0xf]
    %v336 = vld [vmem:[#allocation2 + $0x1c8] sm:$0xf]
    %v337 = vld [vmem:[#allocation2 + $0x1d0] sm:$0xf]
    %v338 = vld [vmem:[#allocation2 + $0x1d8] sm:$0xf]
    %v339 = vld [vmem:[#allocation2 + $0x1e0] sm:$0xf]
    %v340 = vld [vmem:[#allocation2 + $0x1e8] sm:$0xf]
    %v341 = vpack.c.bf16 %v307, %v307
    %v342 = vpack.c.bf16 %v308, %v308
    %v375 = vunpack.c.l.b16 %v309
    %v376 = vunpack.c.l.b16 %v310
    %v377 = vunpack.c.l.b16 %v311
    %v378 = vunpack.c.l.b16 %v312
    %v379 = vunpack.c.l.b16 %v313
    %v380 = vunpack.c.l.b16 %v314
    %v381 = vunpack.c.l.b16 %v315
    %v382 = vunpack.c.l.b16 %v316
    %v383 = vunpack.c.l.b16 %v317
    %v384 = vunpack.c.l.b16 %v318
    %v385 = vunpack.c.l.b16 %v319
    %v386 = vunpack.c.l.b16 %v320
    %v387 = vunpack.c.l.b16 %v321
    %v388 = vunpack.c.l.b16 %v322
    %v389 = vunpack.c.l.b16 %v323
    %v390 = vunpack.c.l.b16 %v324
    %v391 = vunpack.c.l.b16 %v325
    %v392 = vunpack.c.l.b16 %v326
    %v393 = vunpack.c.l.b16 %v327
    %v394 = vunpack.c.l.b16 %v328
    %v395 = vunpack.c.l.b16 %v329
    %v396 = vunpack.c.l.b16 %v330
    %v397 = vunpack.c.l.b16 %v331
    %v398 = vunpack.c.l.b16 %v332
    %v399 = vunpack.c.l.b16 %v333
    %v400 = vunpack.c.l.b16 %v334
    %v401 = vunpack.c.l.b16 %v335
    %v402 = vunpack.c.l.b16 %v336
    %v403 = vunpack.c.l.b16 %v337
    %v404 = vunpack.c.l.b16 %v338
    %v405 = vunpack.c.l.b16 %v339
    %v406 = vunpack.c.l.b16 %v340
    %v407 = vpack.c.b16 %v376, %v375
    %v408 = vpack.c.b16 %v378, %v377
    %v409 = vpack.c.b16 %v380, %v379
    %v410 = vpack.c.b16 %v382, %v381
    %v411 = vpack.c.b16 %v384, %v383
    %v412 = vpack.c.b16 %v386, %v385
    %v413 = vpack.c.b16 %v388, %v387
    %v414 = vpack.c.b16 %v390, %v389
    %v415 = vpack.c.b16 %v392, %v391
    %v416 = vpack.c.b16 %v394, %v393
    %v417 = vpack.c.b16 %v396, %v395
    %v418 = vpack.c.b16 %v398, %v397
    %v419 = vpack.c.b16 %v400, %v399
    %v420 = vpack.c.b16 %v402, %v401
    %v421 = vpack.c.b16 %v404, %v403
    %v422 = vpack.c.b16 %v406, %v405
    %439 = vmatprep.subr.bf16.mxu0 0
    %440 = vmatpush1.bf16.msra.mxu0 %v407
    %441 = vmatprep.subr.bf16.mxu0 0
    %442 = vmatpush1.bf16.msra.mxu0 %v408
    %443 = vmatprep.subr.bf16.mxu0 0
    %444 = vmatpush1.bf16.msra.mxu0 %v409
    %445 = vmatprep.subr.bf16.mxu0 0
    %446 = vmatpush1.bf16.msra.mxu0 %v410
    %447 = vmatprep.subr.bf16.mxu0 0
    %448 = vmatpush1.bf16.msra.mxu0 %v411
    %449 = vmatprep.subr.bf16.mxu0 0
    %450 = vmatpush1.bf16.msra.mxu0 %v412
    %451 = vmatprep.subr.bf16.mxu0 0
    %452 = vmatpush1.bf16.msra.mxu0 %v413
    %453 = vmatprep.subr.bf16.mxu0 0
    %454 = vmatpush1.bf16.msra.mxu0 %v414
    %455 = vmatprep.subr.bf16.mxu0 0
    %456 = vmatpush1.bf16.msra.mxu0 %v415
    %457 = vmatprep.subr.bf16.mxu0 0
    %458 = vmatpush1.bf16.msra.mxu0 %v416
    %459 = vmatprep.subr.bf16.mxu0 0
    %460 = vmatpush1.bf16.msra.mxu0 %v417
    %461 = vmatprep.subr.bf16.mxu0 0
    %462 = vmatpush1.bf16.msra.mxu0 %v418
    %463 = vmatprep.subr.bf16.mxu0 0
    %464 = vmatpush1.bf16.msra.mxu0 %v419
    %465 = vmatprep.subr.bf16.mxu0 0
    %466 = vmatpush1.bf16.msra.mxu0 %v420
    %467 = vmatprep.subr.bf16.mxu0 0
    %468 = vmatpush1.bf16.msra.mxu0 %v421
    %469 = vmatprep.subr.bf16.mxu0 0
    %470 = vmatpush1.bf16.msra.mxu0 %v422
    %471 = vmatprep.mubr.bf16.mxu0 %v342
    %472 = vmatmul.mubr.bf16.gmra.mrb[0].mxu0 %v341
    %v473 = vpop.f32.mrb[0].mxu0
    %v474 = vadd.f32 %v39, %v473
    %v475 = vpop.f32.mrb[0].mxu0
    %v476 = vpop.f32.mrb[0].mxu0
    %v477 = vpop.f32.mrb[0].mxu0
    %478 = vdwg.mxu0
    %vm479 = vcmask 58368
    %v480 = vsel %vm479, %v474, -inf
    %481 = vmax.xlane.f32.xlu0 %v480
    %v482 = vpop.xlane.xlu0 %481
    %v483 = vsub.f32 %v474, %v482
    %v484 = vmul.f32 %v483, 1.442695
    %v485 = vpow.pop %v484
    %v486 = vsel %vm479, %v485, 0.0
    %487 = vadd.xlane.f32.xlu0 %v486
    %v488 = vpop.xlane.xlu0 %487
    %v489 = vrcp.pop %v488
    %v490 = vmul.f32 %v485, %v489
    %v491 = vlaneseq
    %v492 = vshrl.u32 %v491, 7
    %v493 = vsub.s32 0, %v492
    %v494 = vrot.slane %v490, %v493
    %496 = vbcast.lane.b32.xlu0 %v494, 256
    %v497 = vpop.permute.xlu0 %496
    %v498 = vlaneseq
    %v499 = vshrl.u32 %v498, 7
    %v500 = vsub.s32 1, %v499
    %v501 = vrot.slane %v490, %v500
    %503 = vbcast.lane.b32.xlu0 %v501, 256
    %v504 = vpop.permute.xlu0 %503
    %v505 = vmul.f32 %v497, %v40
    %v506 = vmul.f32 %v504, %v41
    %v507 = vsel %vm210, %v505, 0.0
    %v508 = vrot.slane %v507, 4
    %v509 = vadd.f32 %v507, %v508
    %v510 = vrot.slane %v509, 2
    %v511 = vadd.f32 %v509, %v510
    %v512 = vrot.slane %v511, 1
    %v513 = vadd.f32 %v511, %v512
    %v514 = vsel %vm210, %v506, 0.0
    %v515 = vrot.slane %v514, 4
    %v516 = vadd.f32 %v514, %v515
    %v517 = vrot.slane %v516, 2
    %v518 = vadd.f32 %v516, %v517
    %v519 = vrot.slane %v518, 1
    %v520 = vadd.f32 %v518, %v519
    %v521 = vadd.f32 %v490, 0.0
    %vm524 = vcmask 1041409
    %v525 = vsel %vm524, %v520, %v513
    %526 = vrot.lane.b32.xlu0 %v525, 32
    %v527 = vpop.permute.xlu0 %526
    %v529 = vsel %vm210, %v208, %v527
    %vm530 = vcmask 523264
    %v531 = vsel %vm530, %v529, 0.0
    %v532 = vld [vmem:[#allocation2 + $0x60] sm:$0xff]
    %v533 = vld [vmem:[#allocation2 + $0x68] sm:$0xff]
    %v534 = vld [vmem:[#allocation2 + $0x70] sm:$0xff]
    %v535 = vld [vmem:[#allocation2 + $0x78] sm:$0xff]
    %v536 = vld [vmem:[#allocation2 + $0x80] sm:$0xff]
    %v537 = vld [vmem:[#allocation2 + $0x88] sm:$0xff]
    %v538 = vld [vmem:[#allocation2 + $0x90] sm:$0xff]
    %v539 = vld [vmem:[#allocation2 + $0x98] sm:$0xff]
    %v540 = vld [vmem:[#allocation2 + $0xa0] sm:$0xff]
    %v541 = vld [vmem:[#allocation2 + $0xa8] sm:$0xff]
    %v542 = vld [vmem:[#allocation2 + $0xb0] sm:$0xff]
    %v543 = vld [vmem:[#allocation2 + $0xb8] sm:$0xff]
    %s544 = scalar_lea.vmem %s1, 1
    %v545 = vld [vmem:[%s544] ss:$4 sm:$0x3]
    %v546 = vpack.c.bf16 %v531, %v531
    %v548 = vlaneseq
    %v549 = vshrl.u32 %v548, 7
    %v550 = vsub.s32 0, %v549
    %v551 = vrot.slane %v545, %v550
    %v552 = vlaneseq
    %v553 = vshrl.u32 %v552, 7
    %v554 = vsub.s32 1, %v553
    %v555 = vrot.slane %v545, %v554
    %v570 = vunpack.c.l.b16 %v532
    %v571 = vunpack.c.h.b16 %v532
    %v572 = vunpack.c.l.b16 %v533
    %v573 = vunpack.c.h.b16 %v533
    %v574 = vunpack.c.l.b16 %v534
    %v575 = vunpack.c.h.b16 %v534
    %v576 = vunpack.c.l.b16 %v535
    %v577 = vunpack.c.h.b16 %v535
    %v578 = vunpack.c.l.b16 %v536
    %v579 = vunpack.c.h.b16 %v536
    %v580 = vunpack.c.l.b16 %v537
    %v581 = vunpack.c.h.b16 %v537
    %v582 = vunpack.c.l.b16 %v538
    %v583 = vunpack.c.h.b16 %v538
    %v584 = vunpack.c.l.b16 %v539
    %v585 = vunpack.c.h.b16 %v539
    %v586 = vunpack.c.l.b16 %v540
    %v587 = vunpack.c.h.b16 %v540
    %v588 = vunpack.c.l.b16 %v541
    %v589 = vunpack.c.h.b16 %v541
    %v590 = vunpack.c.l.b16 %v542
    %v591 = vunpack.c.h.b16 %v542
    %v592 = vunpack.c.l.b16 %v543
    %v593 = vunpack.c.h.b16 %v543
    %v594 = vpack.c.b16 %v572, %v570
    %v595 = vpack.c.b16 %v573, %v571
    %v596 = vpack.c.b16 %v576, %v574
    %v597 = vpack.c.b16 %v577, %v575
    %v598 = vpack.c.b16 %v580, %v578
    %v599 = vpack.c.b16 %v581, %v579
    %v600 = vpack.c.b16 %v584, %v582
    %v601 = vpack.c.b16 %v585, %v583
    %v602 = vpack.c.b16 %v588, %v586
    %v603 = vpack.c.b16 %v589, %v587
    %v604 = vpack.c.b16 %v592, %v590
    %v605 = vpack.c.b16 %v593, %v591
    %v619 = vsel %vm127, %v546, 0
    %621 = vmatprep.subr.bf16.mxu0 %v595
    %622 = vmatpush1.bf16.msra.mxu0 %v594
    %623 = vmatprep.subr.bf16.mxu0 %v597
    %624 = vmatpush1.bf16.msra.mxu0 %v596
    %625 = vmatprep.subr.bf16.mxu0 %v599
    %626 = vmatpush1.bf16.msra.mxu0 %v598
    %627 = vmatprep.subr.bf16.mxu0 %v601
    %628 = vmatpush1.bf16.msra.mxu0 %v600
    %629 = vmatprep.subr.bf16.mxu0 %v603
    %630 = vmatpush1.bf16.msra.mxu0 %v602
    %631 = vmatprep.subr.bf16.mxu0 %v605
    %632 = vmatpush1.bf16.msra.mxu0 %v604
    %633 = vmatprep.subr.bf16.mxu0 0
    %634 = vmatpush1.bf16.msra.mxu0 0
    %635 = vmatprep.subr.bf16.mxu0 0
    %636 = vmatpush1.bf16.msra.mxu0 0
    %637 = vmatprep.subr.bf16.mxu0 0
    %638 = vmatpush1.bf16.msra.mxu0 0
    %639 = vmatprep.subr.bf16.mxu0 0
    %640 = vmatpush1.bf16.msra.mxu0 0
    %641 = vmatprep.subr.bf16.mxu0 0
    %642 = vmatpush1.bf16.msra.mxu0 0
    %643 = vmatprep.subr.bf16.mxu0 0
    %644 = vmatpush1.bf16.msra.mxu0 0
    %645 = vmatprep.subr.bf16.mxu0 0
    %646 = vmatpush1.bf16.msra.mxu0 0
    %647 = vmatprep.subr.bf16.mxu0 0
    %648 = vmatpush1.bf16.msra.mxu0 0
    %649 = vmatprep.subr.bf16.mxu0 0
    %650 = vmatpush1.bf16.msra.mxu0 0
    %651 = vmatprep.subr.bf16.mxu0 0
    %652 = vmatpush1.bf16.msra.mxu0 0
    %653 = vmatprep.mubr.bf16.mxu0 0
    %654 = vmatmul.mubr.bf16.gmra.mrb[0].mxu0 %v619
    %v655 = vpop.f32.mrb[0].mxu0
    %v656 = vadd.f32 %v551, %v655
    %v657 = vpop.f32.mrb[0].mxu0
    %v658 = vadd.f32 %v555, %v657
    %v659 = vpop.f32.mrb[0].mxu0
    %v660 = vpop.f32.mrb[0].mxu0
    %661 = vdwg.mxu0
    %663 = vrot.lane.b32.xlu0 %v656, 32
    %v664 = vpop.permute.xlu0 %663
    %v666 = vadd.f32 %v656, %v664
    %v667 = vtanh.pop %v666
    %v668 = vmul.f32 %v667, 0.5
    %v669 = vadd.f32 %v668, 0.5
    %671 = vrot.lane.b32.xlu0 %v658, 32
    %v672 = vpop.permute.xlu0 %671
    %v674 = vadd.f32 %v656, %v672
    %v675 = vtanh.pop %v674
    %v676 = vmul.f32 %v675, 0.5
    %v677 = vadd.f32 %v676, 0.5
    %678 = vrot.lane.b32.xlu0 %v658, 96
    %v679 = vpop.permute.xlu0 %678
    %v681 = vmul.f32 %v669, %v679
    %683 = vrot.lane.b32.xlu0 %v681, 64
    %v684 = vpop.permute.xlu0 %683
    %v686 = vadd.f32 %v656, %v684
    %v687 = vtanh.pop %v686
    %v688 = vsub.f32 1.0, %v677
    %690 = vrot.lane.b32.xlu0 %v687, 96
    %v691 = vpop.permute.xlu0 %690
    %v693 = vmul.f32 %v688, %v691
    %v694 = vmul.f32 %v677, 0.0
    %v695 = vadd.f32 %v693, %v694
    %v696 = vld [vmem:[#allocation2 + $0x1f0] sm:$0xf]
    %v697 = vld [vmem:[#allocation2 + $0x1f8] sm:$0xf]
    %v698 = vld [vmem:[#allocation2 + $0x200] sm:$0xf]
    %v699 = vld [vmem:[#allocation2 + $0x208] sm:$0xf]
    %v700 = vld [vmem:[#allocation2 + $0x210] sm:$0xf]
    %v701 = vld [vmem:[#allocation2 + $0x218] sm:$0xf]
    %v702 = vld [vmem:[#allocation2 + $0x220] sm:$0xf]
    %v703 = vld [vmem:[#allocation2 + $0x228] sm:$0xf]
    %v704 = vld [vmem:[%s1 + $0x2] sm:$0x1]
    %706 = vrot.lane.b32.xlu0 %v695, 96
    %v707 = vpop.permute.xlu0 %706
    %v709 = vsel %vm210, %v707, %v527
    %v710 = vpack.c.bf16 %v709, %v709
    %v711 = vlaneseq
    %v712 = vshrl.u32 %v711, 7
    %v713 = vsub.s32 0, %v712
    %v714 = vrot.slane %v704, %v713
    %v723 = vunpack.c.l.b16 %v696
    %v724 = vunpack.c.l.b16 %v697
    %v725 = vunpack.c.l.b16 %v698
    %v726 = vunpack.c.l.b16 %v699
    %v727 = vunpack.c.l.b16 %v700
    %v728 = vunpack.c.l.b16 %v701
    %v729 = vunpack.c.l.b16 %v702
    %v730 = vunpack.c.l.b16 %v703
    %v731 = vpack.c.b16 %v724, %v723
    %v732 = vpack.c.b16 %v726, %v725
    %v733 = vpack.c.b16 %v728, %v727
    %v734 = vpack.c.b16 %v730, %v729
    %v740 = vsel %vm530, %v710, 0
    %742 = vmatprep.subr.bf16.mxu0 0
    %743 = vmatpush1.bf16.msra.mxu0 %v731
    %744 = vmatprep.subr.bf16.mxu0 0
    %745 = vmatpush1.bf16.msra.mxu0 %v732
    %746 = vmatprep.subr.bf16.mxu0 0
    %747 = vmatpush1.bf16.msra.mxu0 %v733
    %748 = vmatprep.subr.bf16.mxu0 0
    %749 = vmatpush1.bf16.msra.mxu0 %v734
    %750 = vmatprep.subr.bf16.mxu0 0
    %751 = vmatpush1.bf16.msra.mxu0 0
    %752 = vmatprep.subr.bf16.mxu0 0
    %753 = vmatpush1.bf16.msra.mxu0 0
    %754 = vmatprep.subr.bf16.mxu0 0
    %755 = vmatpush1.bf16.msra.mxu0 0
    %756 = vmatprep.subr.bf16.mxu0 0
    %757 = vmatpush1.bf16.msra.mxu0 0
    %758 = vmatprep.subr.bf16.mxu0 0
    %759 = vmatpush1.bf16.msra.mxu0 0
    %760 = vmatprep.subr.bf16.mxu0 0
    %761 = vmatpush1.bf16.msra.mxu0 0
    %762 = vmatprep.subr.bf16.mxu0 0
    %763 = vmatpush1.bf16.msra.mxu0 0
    %764 = vmatprep.subr.bf16.mxu0 0
    %765 = vmatpush1.bf16.msra.mxu0 0
    %766 = vmatprep.subr.bf16.mxu0 0
    %767 = vmatpush1.bf16.msra.mxu0 0
    %768 = vmatprep.subr.bf16.mxu0 0
    %769 = vmatpush1.bf16.msra.mxu0 0
    %770 = vmatprep.subr.bf16.mxu0 0
    %771 = vmatpush1.bf16.msra.mxu0 0
    %772 = vmatprep.subr.bf16.mxu0 0
    %773 = vmatpush1.bf16.msra.mxu0 0
    %774 = vmatprep.mubr.bf16.mxu0 0
    %775 = vmatmul.mubr.bf16.gmra.mrb[0].mxu0 %v740
    %v776 = vpop.f32.mrb[0].mxu0
    %v777 = vadd.f32 %v714, %v776
    %v778 = vpop.f32.mrb[0].mxu0
    %v779 = vpop.f32.mrb[0].mxu0
    %v780 = vpop.f32.mrb[0].mxu0
    %781 = vdwg.mxu0
    %v782 = vmax.f32 %v777, 0.0
    %v783 = vld [vmem:[%s4] sm:$0x3]
    %785 = vrot.lane.b32.xlu0 %v783, 33
    %v786 = vpop.permute.xlu0 %785
    %v788 = vmul.f32 %v782, %v786
    %v791 = vunpack.c.l.s4 1966171168
    %v792 = vunpack.c.0.s8 %v791
    %v793 = vlaneseq
    %v794 = vshrl.u32 %v793, 7
    %v795 = vsub.s32 %v792, %v794
    %v796 = vrot.slane %v777, %v795
    %v797 = vcombine.high %v796, %v796
    %v799 = vunpack.c.l.s4 1966171168
    %v800 = vunpack.c.0.s8 %v799
    %v801 = vlaneseq
    %v802 = vshrl.u32 %v801, 7
    %v803 = vsub.s32 %v800, %v802
    %v804 = vrot.slane %v796, %v803
    %v806 = vunpack.c.l.s4 1966171168
    %v807 = vunpack.c.0.s8 %v806
    %v808 = vlaneseq
    %v809 = vshrl.u32 %v808, 7
    %v810 = vsub.s32 %v807, %v809
    %v811 = vrot.slane %v797, %v810
    %vm814 = vcmask 253952
    %815 = vst.msk [vmem:[%s5] sm:$0x1] %vm814, %v804
    %816 = vst.msk [vmem:[%s5 + $0x8] sm:$0x1] %vm814, %v811
    %v819 = vunpack.c.l.s4 1966171168
    %v820 = vunpack.c.0.s8 %v819
    %v821 = vlaneseq
    %v822 = vshrl.u32 %v821, 7
    %v823 = vsub.s32 %v820, %v822
    %v824 = vrot.slane %v490, %v823
    %v825 = vcombine.high %v824, %v824
    %v827 = vunpack.c.l.s4 1966171168
    %v828 = vunpack.c.0.s8 %v827
    %v829 = vlaneseq
    %v830 = vshrl.u32 %v829, 7
    %v831 = vsub.s32 %v828, %v830
    %v832 = vrot.slane %v824, %v831
    %v834 = vunpack.c.l.s4 1966171168
    %v835 = vunpack.c.0.s8 %v834
    %v836 = vlaneseq
    %v837 = vshrl.u32 %v836, 7
    %v838 = vsub.s32 %v835, %v837
    %v839 = vrot.slane %v825, %v838
    %vm842 = vcmask 57344
    %843 = vst.msk [vmem:[%s6] sm:$0x1] %vm842, %v832
    %844 = vst.msk [vmem:[%s6 + $0x8] sm:$0x1] %vm842, %v839
    %v845 = vlaneseq
    %v846 = vshrl.u32 %v845, 7
    %v847 = vsub.s32 0, %v846
    %v848 = vrot.slane %v804, %v847
    %v849 = vlaneseq
    %v850 = vshrl.u32 %v849, 7
    %v851 = vsub.s32 0, %v850
    %v852 = vrot.slane %v811, %v851
    %853 = vrot.lane.b32.xlu0 %v848, 96
    %v854 = vpop.permute.xlu0 %853
    %855 = vrot.lane.b32.xlu0 %v852, 96
    %v856 = vpop.permute.xlu0 %855
    %vm859 = vcmask 0
    %860 = vst.msk [vmem:[%s7] sm:$0x1] %vm859, %v854
    %861 = vst.msk [vmem:[%s7 + $0x8] sm:$0x1] %vm859, %v856
    %v862 = vld [vmem:[#allocation2 + $0x230] sm:$0xf]
    %v863 = vld [vmem:[#allocation2 + $0x238] sm:$0xf]
    %v864 = vld [vmem:[#allocation2 + $0x240] sm:$0xf]
    %v865 = vld [vmem:[#allocation2 + $0x248] sm:$0xf]
    %v866 = vpack.c.bf16 %v788, %v788
    %868 = vrot.lane.b32.xlu0 %v866, 95
    %v869 = vpop.permute.xlu0 %868
    %v874 = vunpack.c.l.b16 %v862
    %v875 = vunpack.c.l.b16 %v863
    %v876 = vunpack.c.l.b16 %v864
    %v877 = vunpack.c.l.b16 %v865
    %v878 = vpack.c.b16 %v875, %v874
    %v879 = vpack.c.b16 %v877, %v876
    %v883 = vsel %vm210, %v869, 0
    %885 = vmatprep.subr.bf16.mxu0 0
    %886 = vmatpush1.bf16.msra.mxu0 %v878
    %887 = vmatprep.subr.bf16.mxu0 0
    %888 = vmatpush1.bf16.msra.mxu0 %v879
    %889 = vmatprep.subr.bf16.mxu0 0
    %890 = vmatpush1.bf16.msra.mxu0 0
    %891 = vmatprep.subr.bf16.mxu0 0
    %892 = vmatpush1.bf16.msra.mxu0 0
    %893 = vmatprep.subr.bf16.mxu0 0
    %894 = vmatpush1.bf16.msra.mxu0 0
    %895 = vmatprep.subr.bf16.mxu0 0
    %896 = vmatpush1.bf16.msra.mxu0 0
    %897 = vmatprep.subr.bf16.mxu0 0
    %898 = vmatpush1.bf16.msra.mxu0 0
    %899 = vmatprep.subr.bf16.mxu0 0
    %900 = vmatpush1.bf16.msra.mxu0 0
    %901 = vmatprep.subr.bf16.mxu0 0
    %902 = vmatpush1.bf16.msra.mxu0 0
    %903 = vmatprep.subr.bf16.mxu0 0
    %904 = vmatpush1.bf16.msra.mxu0 0
    %905 = vmatprep.subr.bf16.mxu0 0
    %906 = vmatpush1.bf16.msra.mxu0 0
    %907 = vmatprep.subr.bf16.mxu0 0
    %908 = vmatpush1.bf16.msra.mxu0 0
    %909 = vmatprep.subr.bf16.mxu0 0
    %910 = vmatpush1.bf16.msra.mxu0 0
    %911 = vmatprep.subr.bf16.mxu0 0
    %912 = vmatpush1.bf16.msra.mxu0 0
    %913 = vmatprep.subr.bf16.mxu0 0
    %914 = vmatpush1.bf16.msra.mxu0 0
    %915 = vmatprep.subr.bf16.mxu0 0
    %916 = vmatpush1.bf16.msra.mxu0 0
    %917 = vmatprep.mubr.bf16.mxu0 0
    %918 = vmatmul.mubr.bf16.gmra.mrb[0].mxu0 %v883
    %v919 = vpop.f32.mrb[0].mxu0
    %v920 = vadd.f32 0.0, %v919
    %v921 = vpop.f32.mrb[0].mxu0
    %v922 = vpop.f32.mrb[0].mxu0
    %v923 = vpop.f32.mrb[0].mxu0
    %924 = vdwg.mxu0
    %v925 = vmax.f32 %v920, 0.0
    %v926 = vld [vmem:[%s4] sm:$0x3]
    %928 = vrot.lane.b32.xlu0 %v926, 96
    %v929 = vpop.permute.xlu0 %928
    %v931 = vmul.f32 %v925, %v929
    %932 = vrot.lane.b32.xlu0 %v205, 32
    %v933 = vpop.permute.xlu0 %932
    %v935 = vsel %vm210, %v931, %v527
    %v936 = vsel %vm530, %v935, %v933
    %v937 = vld [vmem:[#allocation2] sm:$0xff]
    %v938 = vld [vmem:[#allocation2 + $0x8] sm:$0xff]
    %v939 = vld [vmem:[#allocation2 + $0x10] sm:$0xff]
    %v940 = vld [vmem:[#allocation2 + $0x18] sm:$0xff]
    %v941 = vld [vmem:[#allocation2 + $0x20] sm:$0xff]
    %v942 = vld [vmem:[#allocation2 + $0x28] sm:$0xff]
    %v943 = vld [vmem:[#allocation2 + $0x30] sm:$0xff]
    %v944 = vld [vmem:[#allocation2 + $0x38] sm:$0xff]
    %v945 = vld [vmem:[#allocation2 + $0x40] sm:$0xff]
    %v946 = vld [vmem:[#allocation2 + $0x48] sm:$0xff]
    %v947 = vld [vmem:[#allocation2 + $0x50] sm:$0xff]
    %v948 = vld [vmem:[#allocation2 + $0x58] sm:$0xff]
    %v949 = vld [vmem:[%s1] ss:$4 sm:$0x3]
    %v950 = vpack.c.bf16 %v936, %v936
    %v952 = vlaneseq
    %v953 = vshrl.u32 %v952, 7
    %v954 = vsub.s32 0, %v953
    %v955 = vrot.slane %v949, %v954
    %v956 = vlaneseq
    %v957 = vshrl.u32 %v956, 7
    %v958 = vsub.s32 1, %v957
    %v959 = vrot.slane %v949, %v958
    %v974 = vunpack.c.l.b16 %v937
    %v975 = vunpack.c.h.b16 %v937
    %v976 = vunpack.c.l.b16 %v938
    %v977 = vunpack.c.h.b16 %v938
    %v978 = vunpack.c.l.b16 %v939
    %v979 = vunpack.c.h.b16 %v939
    %v980 = vunpack.c.l.b16 %v940
    %v981 = vunpack.c.h.b16 %v940
    %v982 = vunpack.c.l.b16 %v941
    %v983 = vunpack.c.h.b16 %v941
    %v984 = vunpack.c.l.b16 %v942
    %v985 = vunpack.c.h.b16 %v942
    %v986 = vunpack.c.l.b16 %v943
    %v987 = vunpack.c.h.b16 %v943
    %v988 = vunpack.c.l.b16 %v944
    %v989 = vunpack.c.h.b16 %v944
    %v990 = vunpack.c.l.b16 %v945
    %v991 = vunpack.c.h.b16 %v945
    %v992 = vunpack.c.l.b16 %v946
    %v993 = vunpack.c.h.b16 %v946
    %v994 = vunpack.c.l.b16 %v947
    %v995 = vunpack.c.h.b16 %v947
    %v996 = vunpack.c.l.b16 %v948
    %v997 = vunpack.c.h.b16 %v948
    %v998 = vpack.c.b16 %v976, %v974
    %v999 = vpack.c.b16 %v977, %v975
    %v1000 = vpack.c.b16 %v980, %v978
    %v1001 = vpack.c.b16 %v981, %v979
    %v1002 = vpack.c.b16 %v984, %v982
    %v1003 = vpack.c.b16 %v985, %v983
    %v1004 = vpack.c.b16 %v988, %v986
    %v1005 = vpack.c.b16 %v989, %v987
    %v1006 = vpack.c.b16 %v992, %v990
    %v1007 = vpack.c.b16 %v993, %v991
    %v1008 = vpack.c.b16 %v996, %v994
    %v1009 = vpack.c.b16 %v997, %v995
    %v1023 = vsel %vm127, %v950, 0
    %1025 = vmatprep.subr.bf16.mxu0 %v999
    %1026 = vmatpush1.bf16.msra.mxu0 %v998
    %1027 = vmatprep.subr.bf16.mxu0 %v1001
    %1028 = vmatpush1.bf16.msra.mxu0 %v1000
    %1029 = vmatprep.subr.bf16.mxu0 %v1003
    %1030 = vmatpush1.bf16.msra.mxu0 %v1002
    %1031 = vmatprep.subr.bf16.mxu0 %v1005
    %1032 = vmatpush1.bf16.msra.mxu0 %v1004
    %1033 = vmatprep.subr.bf16.mxu0 %v1007
    %1034 = vmatpush1.bf16.msra.mxu0 %v1006
    %1035 = vmatprep.subr.bf16.mxu0 %v1009
    %1036 = vmatpush1.bf16.msra.mxu0 %v1008
    %1037 = vmatprep.subr.bf16.mxu0 0
    %1038 = vmatpush1.bf16.msra.mxu0 0
    %1039 = vmatprep.subr.bf16.mxu0 0
    %1040 = vmatpush1.bf16.msra.mxu0 0
    %1041 = vmatprep.subr.bf16.mxu0 0
    %1042 = vmatpush1.bf16.msra.mxu0 0
    %1043 = vmatprep.subr.bf16.mxu0 0
    %1044 = vmatpush1.bf16.msra.mxu0 0
    %1045 = vmatprep.subr.bf16.mxu0 0
    %1046 = vmatpush1.bf16.msra.mxu0 0
    %1047 = vmatprep.subr.bf16.mxu0 0
    %1048 = vmatpush1.bf16.msra.mxu0 0
    %1049 = vmatprep.subr.bf16.mxu0 0
    %1050 = vmatpush1.bf16.msra.mxu0 0
    %1051 = vmatprep.subr.bf16.mxu0 0
    %1052 = vmatpush1.bf16.msra.mxu0 0
    %1053 = vmatprep.subr.bf16.mxu0 0
    %1054 = vmatpush1.bf16.msra.mxu0 0
    %1055 = vmatprep.subr.bf16.mxu0 0
    %1056 = vmatpush1.bf16.msra.mxu0 0
    %1057 = vmatprep.mubr.bf16.mxu0 0
    %1058 = vmatmul.mubr.bf16.gmra.mrb[0].mxu0 %v1023
    %v1059 = vpop.f32.mrb[0].mxu0
    %v1060 = vadd.f32 %v955, %v1059
    %v1061 = vpop.f32.mrb[0].mxu0
    %v1062 = vadd.f32 %v959, %v1061
    %v1063 = vpop.f32.mrb[0].mxu0
    %v1064 = vpop.f32.mrb[0].mxu0
    %1065 = vdwg.mxu0
    %1067 = vrot.lane.b32.xlu0 %v1060, 32
    %v1068 = vpop.permute.xlu0 %1067
    %v1070 = vadd.f32 %v1060, %v1068
    %v1071 = vtanh.pop %v1070
    %v1072 = vmul.f32 %v1071, 0.5
    %v1073 = vadd.f32 %v1072, 0.5
    %1075 = vrot.lane.b32.xlu0 %v1062, 32
    %v1076 = vpop.permute.xlu0 %1075
    %v1078 = vadd.f32 %v1060, %v1076
    %v1079 = vtanh.pop %v1078
    %v1080 = vmul.f32 %v1079, 0.5
    %v1081 = vadd.f32 %v1080, 0.5
    %1082 = vrot.lane.b32.xlu0 %v1062, 96
    %v1083 = vpop.permute.xlu0 %1082
    %v1085 = vmul.f32 %v1073, %v1083
    %1087 = vrot.lane.b32.xlu0 %v1085, 64
    %v1088 = vpop.permute.xlu0 %1087
    %v1090 = vadd.f32 %v1060, %v1088
    %v1091 = vtanh.pop %v1090
    %v1092 = vsub.f32 1.0, %v1081
    %1094 = vrot.lane.b32.xlu0 %v1091, 96
    %v1095 = vpop.permute.xlu0 %1094
    %v1097 = vmul.f32 %v1092, %v1095
    %v1098 = vmul.f32 %v1081, %v205
    %v1099 = vadd.f32 %v1097, %v1098
    %1101 = vrot.lane.b32.xlu0 %v1099, 96
    %v1102 = vpop.permute.xlu0 %1101
    %1104 = vrot.lane.b32.xlu0 %v490, 32
    %v1105 = vpop.permute.xlu0 %1104
    %1108 = vrot.lane.b32.xlu0 %v521, 40
    %v1109 = vpop.permute.xlu0 %1108
    %v1111 = vsel %vm210, %v1102, %v1105
    %v1112 = vsel %vm212, %v1111, %v1109
    %v1113 = vld [vmem:[#allocation2 + $0xc0] sm:$0xff]
    %v1114 = vld [vmem:[#allocation2 + $0xc8] sm:$0xff]
    %v1115 = vld [vmem:[#allocation2 + $0xd0] sm:$0xff]
    %v1116 = vld [vmem:[#allocation2 + $0xd8] sm:$0xff]
    %v1117 = vld [vmem:[#allocation2 + $0xe0] sm:$0xff]
    %v1118 = vld [vmem:[#allocation2 + $0xe8] sm:$0xff]
    %v1119 = vpack.c.bf16 %v1112, %v1112
    %v1126 = vunpack.c.l.b16 %v1113
    %v1127 = vunpack.c.h.b16 %v1113
    %v1128 = vunpack.c.l.b16 %v1114
    %v1129 = vunpack.c.h.b16 %v1114
    %v1130 = vunpack.c.l.b16 %v1115
    %v1131 = vunpack.c.h.b16 %v1115
    %v1132 = vunpack.c.l.b16 %v1116
    %v1133 = vunpack.c.h.b16 %v1116
    %v1134 = vunpack.c.l.b16 %v1117
    %v1135 = vunpack.c.h.b16 %v1117
    %v1136 = vunpack.c.l.b16 %v1118
    %v1137 = vunpack.c.h.b16 %v1118
    %v1138 = vpack.c.b16 %v1128, %v1126
    %v1139 = vpack.c.b16 %v1129, %v1127
    %v1140 = vpack.c.b16 %v1132, %v1130
    %v1141 = vpack.c.b16 %v1133, %v1131
    %v1142 = vpack.c.b16 %v1136, %v1134
    %v1143 = vpack.c.b16 %v1137, %v1135
    %v1151 = vsel %vm262, %v1119, 0
    %1153 = vmatprep.subr.bf16.mxu0 %v1139
    %1154 = vmatpush1.bf16.msra.mxu0 %v1138
    %1155 = vmatprep.subr.bf16.mxu0 %v1141
    %1156 = vmatpush1.bf16.msra.mxu0 %v1140
    %1157 = vmatprep.subr.bf16.mxu0 %v1143
    %1158 = vmatpush1.bf16.msra.mxu0 %v1142
    %1159 = vmatprep.subr.bf16.mxu0 0
    %1160 = vmatpush1.bf16.msra.mxu0 0
    %1161 = vmatprep.subr.bf16.mxu0 0
    %1162 = vmatpush1.bf16.msra.mxu0 0
    %1163 = vmatprep.subr.bf16.mxu0 0
    %1164 = vmatpush1.bf16.msra.mxu0 0
    %1165 = vmatprep.subr.bf16.mxu0 0
    %1166 = vmatpush1.bf16.msra.mxu0 0
    %1167 = vmatprep.subr.bf16.mxu0 0
    %1168 = vmatpush1.bf16.msra.mxu0 0
    %1169 = vmatprep.subr.bf16.mxu0 0
    %1170 = vmatpush1.bf16.msra.mxu0 0
    %1171 = vmatprep.subr.bf16.mxu0 0
    %1172 = vmatpush1.bf16.msra.mxu0 0
    %1173 = vmatprep.subr.bf16.mxu0 0
    %1174 = vmatpush1.bf16.msra.mxu0 0
    %1175 = vmatprep.subr.bf16.mxu0 0
    %1176 = vmatpush1.bf16.msra.mxu0 0
    %1177 = vmatprep.subr.bf16.mxu0 0
    %1178 = vmatpush1.bf16.msra.mxu0 0
    %1179 = vmatprep.subr.bf16.mxu0 0
    %1180 = vmatpush1.bf16.msra.mxu0 0
    %1181 = vmatprep.subr.bf16.mxu0 0
    %1182 = vmatpush1.bf16.msra.mxu0 0
    %1183 = vmatprep.subr.bf16.mxu0 0
    %1184 = vmatpush1.bf16.msra.mxu0 0
    %1185 = vmatprep.mubr.bf16.mxu0 0
    %1186 = vmatmul.mubr.bf16.gmra.mrb[0].mxu0 %v1151
    %v1187 = vpop.f32.mrb[0].mxu0
    %v1188 = vadd.f32 %v258, %v1187
    %v1189 = vpop.f32.mrb[0].mxu0
    %v1190 = vadd.f32 %v259, %v1189
    %v1191 = vpop.f32.mrb[0].mxu0
    %v1192 = vpop.f32.mrb[0].mxu0
    %1193 = vdwg.mxu0
    %v1194 = vtanh.pop %v1188
    %v1195 = vtanh.pop %v1190
    %v1196 = vld [vmem:[#allocation2 + $0xf0] sm:$0xf]
    %v1197 = vld [vmem:[#allocation2 + $0xf8] sm:$0xf]
    %v1198 = vld [vmem:[#allocation2 + $0x100] sm:$0xf]
    %v1199 = vld [vmem:[#allocation2 + $0x108] sm:$0xf]
    %v1200 = vld [vmem:[#allocation2 + $0x110] sm:$0xf]
    %v1201 = vld [vmem:[#allocation2 + $0x118] sm:$0xf]
    %v1202 = vld [vmem:[#allocation2 + $0x120] sm:$0xf]
    %v1203 = vld [vmem:[#allocation2 + $0x128] sm:$0xf]
    %v1204 = vld [vmem:[#allocation2 + $0x130] sm:$0xf]
    %v1205 = vld [vmem:[#allocation2 + $0x138] sm:$0xf]
    %v1206 = vld [vmem:[#allocation2 + $0x140] sm:$0xf]
    %v1207 = vld [vmem:[#allocation2 + $0x148] sm:$0xf]
    %v1208 = vld [vmem:[#allocation2 + $0x150] sm:$0xf]
    %v1209 = vld [vmem:[#allocation2 + $0x158] sm:$0xf]
    %v1210 = vld [vmem:[#allocation2 + $0x160] sm:$0xf]
    %v1211 = vld [vmem:[#allocation2 + $0x168] sm:$0xf]
    %v1212 = vld [vmem:[#allocation2 + $0x170] sm:$0xf]
    %v1213 = vld [vmem:[#allocation2 + $0x178] sm:$0xf]
    %v1214 = vld [vmem:[#allocation2 + $0x180] sm:$0xf]
    %v1215 = vld [vmem:[#allocation2 + $0x188] sm:$0xf]
    %v1216 = vld [vmem:[#allocation2 + $0x190] sm:$0xf]
    %v1217 = vld [vmem:[#allocation2 + $0x198] sm:$0xf]
    %v1218 = vld [vmem:[#allocation2 + $0x1a0] sm:$0xf]
    %v1219 = vld [vmem:[#allocation2 + $0x1a8] sm:$0xf]
    %v1220 = vld [vmem:[#allocation2 + $0x1b0] sm:$0xf]
    %v1221 = vld [vmem:[#allocation2 + $0x1b8] sm:$0xf]
    %v1222 = vld [vmem:[#allocation2 + $0x1c0] sm:$0xf]
    %v1223 = vld [vmem:[#allocation2 + $0x1c8] sm:$0xf]
    %v1224 = vld [vmem:[#allocation2 + $0x1d0] sm:$0xf]
    %v1225 = vld [vmem:[#allocation2 + $0x1d8] sm:$0xf]
    %v1226 = vld [vmem:[#allocation2 + $0x1e0] sm:$0xf]
    %v1227 = vld [vmem:[#allocation2 + $0x1e8] sm:$0xf]
    %v1228 = vpack.c.bf16 %v1194, %v1194
    %v1229 = vpack.c.bf16 %v1195, %v1195
    %v1262 = vunpack.c.l.b16 %v1196
    %v1263 = vunpack.c.l.b16 %v1197
    %v1264 = vunpack.c.l.b16 %v1198
    %v1265 = vunpack.c.l.b16 %v1199
    %v1266 = vunpack.c.l.b16 %v1200
    %v1267 = vunpack.c.l.b16 %v1201
    %v1268 = vunpack.c.l.b16 %v1202
    %v1269 = vunpack.c.l.b16 %v1203
    %v1270 = vunpack.c.l.b16 %v1204
    %v1271 = vunpack.c.l.b16 %v1205
    %v1272 = vunpack.c.l.b16 %v1206
    %v1273 = vunpack.c.l.b16 %v1207
    %v1274 = vunpack.c.l.b16 %v1208
    %v1275 = vunpack.c.l.b16 %v1209
    %v1276 = vunpack.c.l.b16 %v1210
    %v1277 = vunpack.c.l.b16 %v1211
    %v1278 = vunpack.c.l.b16 %v1212
    %v1279 = vunpack.c.l.b16 %v1213
    %v1280 = vunpack.c.l.b16 %v1214
    %v1281 = vunpack.c.l.b16 %v1215
    %v1282 = vunpack.c.l.b16 %v1216
    %v1283 = vunpack.c.l.b16 %v1217
    %v1284 = vunpack.c.l.b16 %v1218
    %v1285 = vunpack.c.l.b16 %v1219
    %v1286 = vunpack.c.l.b16 %v1220
    %v1287 = vunpack.c.l.b16 %v1221
    %v1288 = vunpack.c.l.b16 %v1222
    %v1289 = vunpack.c.l.b16 %v1223
    %v1290 = vunpack.c.l.b16 %v1224
    %v1291 = vunpack.c.l.b16 %v1225
    %v1292 = vunpack.c.l.b16 %v1226
    %v1293 = vunpack.c.l.b16 %v1227
    %v1294 = vpack.c.b16 %v1263, %v1262
    %v1295 = vpack.c.b16 %v1265, %v1264
    %v1296 = vpack.c.b16 %v1267, %v1266
    %v1297 = vpack.c.b16 %v1269, %v1268
    %v1298 = vpack.c.b16 %v1271, %v1270
    %v1299 = vpack.c.b16 %v1273, %v1272
    %v1300 = vpack.c.b16 %v1275, %v1274
    %v1301 = vpack.c.b16 %v1277, %v1276
    %v1302 = vpack.c.b16 %v1279, %v1278
    %v1303 = vpack.c.b16 %v1281, %v1280
    %v1304 = vpack.c.b16 %v1283, %v1282
    %v1305 = vpack.c.b16 %v1285, %v1284
    %v1306 = vpack.c.b16 %v1287, %v1286
    %v1307 = vpack.c.b16 %v1289, %v1288
    %v1308 = vpack.c.b16 %v1291, %v1290
    %v1309 = vpack.c.b16 %v1293, %v1292
    %1326 = vmatprep.subr.bf16.mxu0 0
    %1327 = vmatpush1.bf16.msra.mxu0 %v1294
    %1328 = vmatprep.subr.bf16.mxu0 0
    %1329 = vmatpush1.bf16.msra.mxu0 %v1295
    %1330 = vmatprep.subr.bf16.mxu0 0
    %1331 = vmatpush1.bf16.msra.mxu0 %v1296
    %1332 = vmatprep.subr.bf16.mxu0 0
    %1333 = vmatpush1.bf16.msra.mxu0 %v1297
    %1334 = vmatprep.subr.bf16.mxu0 0
    %1335 = vmatpush1.bf16.msra.mxu0 %v1298
    %1336 = vmatprep.subr.bf16.mxu0 0
    %1337 = vmatpush1.bf16.msra.mxu0 %v1299
    %1338 = vmatprep.subr.bf16.mxu0 0
    %1339 = vmatpush1.bf16.msra.mxu0 %v1300
    %1340 = vmatprep.subr.bf16.mxu0 0
    %1341 = vmatpush1.bf16.msra.mxu0 %v1301
    %1342 = vmatprep.subr.bf16.mxu0 0
    %1343 = vmatpush1.bf16.msra.mxu0 %v1302
    %1344 = vmatprep.subr.bf16.mxu0 0
    %1345 = vmatpush1.bf16.msra.mxu0 %v1303
    %1346 = vmatprep.subr.bf16.mxu0 0
    %1347 = vmatpush1.bf16.msra.mxu0 %v1304
    %1348 = vmatprep.subr.bf16.mxu0 0
    %1349 = vmatpush1.bf16.msra.mxu0 %v1305
    %1350 = vmatprep.subr.bf16.mxu0 0
    %1351 = vmatpush1.bf16.msra.mxu0 %v1306
    %1352 = vmatprep.subr.bf16.mxu0 0
    %1353 = vmatpush1.bf16.msra.mxu0 %v1307
    %1354 = vmatprep.subr.bf16.mxu0 0
    %1355 = vmatpush1.bf16.msra.mxu0 %v1308
    %1356 = vmatprep.subr.bf16.mxu0 0
    %1357 = vmatpush1.bf16.msra.mxu0 %v1309
    %1358 = vmatprep.mubr.bf16.mxu0 %v1229
    %1359 = vmatmul.mubr.bf16.gmra.mrb[0].mxu0 %v1228
    %v1360 = vpop.f32.mrb[0].mxu0
    %v1361 = vadd.f32 %v39, %v1360
    %v1362 = vpop.f32.mrb[0].mxu0
    %v1363 = vpop.f32.mrb[0].mxu0
    %v1364 = vpop.f32.mrb[0].mxu0
    %1365 = vdwg.mxu0
    %v1366 = vsel %vm479, %v1361, -inf
    %1367 = vmax.xlane.f32.xlu0 %v1366
    %v1368 = vpop.xlane.xlu0 %1367
    %v1369 = vsub.f32 %v1361, %v1368
    %v1370 = vmul.f32 %v1369, 1.442695
    %v1371 = vpow.pop %v1370
    %v1372 = vsel %vm479, %v1371, 0.0
    %1373 = vadd.xlane.f32.xlu0 %v1372
    %v1374 = vpop.xlane.xlu0 %1373
    %v1375 = vrcp.pop %v1374
    %v1376 = vmul.f32 %v1371, %v1375
    %v1377 = vlaneseq
    %v1378 = vshrl.u32 %v1377, 7
    %v1379 = vsub.s32 0, %v1378
    %v1380 = vrot.slane %v1376, %v1379
    %1382 = vbcast.lane.b32.xlu0 %v1380, 256
    %v1383 = vpop.permute.xlu0 %1382
    %v1384 = vlaneseq
    %v1385 = vshrl.u32 %v1384, 7
    %v1386 = vsub.s32 1, %v1385
    %v1387 = vrot.slane %v1376, %v1386
    %1389 = vbcast.lane.b32.xlu0 %v1387, 256
    %v1390 = vpop.permute.xlu0 %1389
    %v1391 = vmul.f32 %v1383, %v40
    %v1392 = vmul.f32 %v1390, %v41
    %v1393 = vsel %vm210, %v1391, 0.0
    %v1394 = vrot.slane %v1393, 4
    %v1395 = vadd.f32 %v1393, %v1394
    %v1396 = vrot.slane %v1395, 2
    %v1397 = vadd.f32 %v1395, %v1396
    %v1398 = vrot.slane %v1397, 1
    %v1399 = vadd.f32 %v1397, %v1398
    %v1400 = vsel %vm210, %v1392, 0.0
    %v1401 = vrot.slane %v1400, 4
    %v1402 = vadd.f32 %v1400, %v1401
    %v1403 = vrot.slane %v1402, 2
    %v1404 = vadd.f32 %v1402, %v1403
    %v1405 = vrot.slane %v1404, 1
    %v1406 = vadd.f32 %v1404, %v1405
    %v1407 = vadd.f32 %v521, %v1376
    %v1410 = vsel %vm524, %v1406, %v1399
    %1411 = vrot.lane.b32.xlu0 %v1410, 32
    %v1412 = vpop.permute.xlu0 %1411
    %1414 = vrot.lane.b32.xlu0 %v695, 32
    %v1415 = vpop.permute.xlu0 %1414
    %v1417 = vsel %vm210, %v1102, %v1412
    %v1418 = vsel %vm530, %v1417, %v1415
    %v1419 = vld [vmem:[#allocation2 + $0x60] sm:$0xff]
    %v1420 = vld [vmem:[#allocation2 + $0x68] sm:$0xff]
    %v1421 = vld [vmem:[#allocation2 + $0x70] sm:$0xff]
    %v1422 = vld [vmem:[#allocation2 + $0x78] sm:$0xff]
    %v1423 = vld [vmem:[#allocation2 + $0x80] sm:$0xff]
    %v1424 = vld [vmem:[#allocation2 + $0x88] sm:$0xff]
    %v1425 = vld [vmem:[#allocation2 + $0x90] sm:$0xff]
    %v1426 = vld [vmem:[#allocation2 + $0x98] sm:$0xff]
    %v1427 = vld [vmem:[#allocation2 + $0xa0] sm:$0xff]
    %v1428 = vld [vmem:[#allocation2 + $0xa8] sm:$0xff]
    %v1429 = vld [vmem:[#allocation2 + $0xb0] sm:$0xff]
    %v1430 = vld [vmem:[#allocation2 + $0xb8] sm:$0xff]
    %v1431 = vld [vmem:[%s544] ss:$4 sm:$0x3]
    %v1432 = vpack.c.bf16 %v1418, %v1418
    %v1434 = vlaneseq
    %v1435 = vshrl.u32 %v1434, 7
    %v1436 = vsub.s32 0, %v1435
    %v1437 = vrot.slane %v1431, %v1436
    %v1438 = vlaneseq
    %v1439 = vshrl.u32 %v1438, 7
    %v1440 = vsub.s32 1, %v1439
    %v1441 = vrot.slane %v1431, %v1440
    %v1456 = vunpack.c.l.b16 %v1419
    %v1457 = vunpack.c.h.b16 %v1419
    %v1458 = vunpack.c.l.b16 %v1420
    %v1459 = vunpack.c.h.b16 %v1420
    %v1460 = vunpack.c.l.b16 %v1421
    %v1461 = vunpack.c.h.b16 %v1421
    %v1462 = vunpack.c.l.b16 %v1422
    %v1463 = vunpack.c.h.b16 %v1422
    %v1464 = vunpack.c.l.b16 %v1423
    %v1465 = vunpack.c.h.b16 %v1423
    %v1466 = vunpack.c.l.b16 %v1424
    %v1467 = vunpack.c.h.b16 %v1424
    %v1468 = vunpack.c.l.b16 %v1425
    %v1469 = vunpack.c.h.b16 %v1425
    %v1470 = vunpack.c.l.b16 %v1426
    %v1471 = vunpack.c.h.b16 %v1426
    %v1472 = vunpack.c.l.b16 %v1427
    %v1473 = vunpack.c.h.b16 %v1427
    %v1474 = vunpack.c.l.b16 %v1428
    %v1475 = vunpack.c.h.b16 %v1428
    %v1476 = vunpack.c.l.b16 %v1429
    %v1477 = vunpack.c.h.b16 %v1429
    %v1478 = vunpack.c.l.b16 %v1430
    %v1479 = vunpack.c.h.b16 %v1430
    %v1480 = vpack.c.b16 %v1458, %v1456
    %v1481 = vpack.c.b16 %v1459, %v1457
    %v1482 = vpack.c.b16 %v1462, %v1460
    %v1483 = vpack.c.b16 %v1463, %v1461
    %v1484 = vpack.c.b16 %v1466, %v1464
    %v1485 = vpack.c.b16 %v1467, %v1465
    %v1486 = vpack.c.b16 %v1470, %v1468
    %v1487 = vpack.c.b16 %v1471, %v1469
    %v1488 = vpack.c.b16 %v1474, %v1472
    %v1489 = vpack.c.b16 %v1475, %v1473
    %v1490 = vpack.c.b16 %v1478, %v1476
    %v1491 = vpack.c.b16 %v1479, %v1477
    %v1505 = vsel %vm127, %v1432, 0
    %1507 = vmatprep.subr.bf16.mxu0 %v1481
    %1508 = vmatpush1.bf16.msra.mxu0 %v1480
    %1509 = vmatprep.subr.bf16.mxu0 %v1483
    %1510 = vmatpush1.bf16.msra.mxu0 %v1482
    %1511 = vmatprep.subr.bf16.mxu0 %v1485
    %1512 = vmatpush1.bf16.msra.mxu0 %v1484
    %1513 = vmatprep.subr.bf16.mxu0 %v1487
    %1514 = vmatpush1.bf16.msra.mxu0 %v1486
    %1515 = vmatprep.subr.bf16.mxu0 %v1489
    %1516 = vmatpush1.bf16.msra.mxu0 %v1488
    %1517 = vmatprep.subr.bf16.mxu0 %v1491
    %1518 = vmatpush1.bf16.msra.mxu0 %v1490
    %1519 = vmatprep.subr.bf16.mxu0 0
    %1520 = vmatpush1.bf16.msra.mxu0 0
    %1521 = vmatprep.subr.bf16.mxu0 0
    %1522 = vmatpush1.bf16.msra.mxu0 0
    %1523 = vmatprep.subr.bf16.mxu0 0
    %1524 = vmatpush1.bf16.msra.mxu0 0
    %1525 = vmatprep.subr.bf16.mxu0 0
    %1526 = vmatpush1.bf16.msra.mxu0 0
    %1527 = vmatprep.subr.bf16.mxu0 0
    %1528 = vmatpush1.bf16.msra.mxu0 0
    %1529 = vmatprep.subr.bf16.mxu0 0
    %1530 = vmatpush1.bf16.msra.mxu0 0
    %1531 = vmatprep.subr.bf16.mxu0 0
    %1532 = vmatpush1.bf16.msra.mxu0 0
    %1533 = vmatprep.subr.bf16.mxu0 0
    %1534 = vmatpush1.bf16.msra.mxu0 0
    %1535 = vmatprep.subr.bf16.mxu0 0
    %1536 = vmatpush1.bf16.msra.mxu0 0
    %1537 = vmatprep.subr.bf16.mxu0 0
    %1538 = vmatpush1.bf16.msra.mxu0 0
    %1539 = vmatprep.mubr.bf16.mxu0 0
    %1540 = vmatmul.mubr.bf16.gmra.mrb[0].mxu0 %v1505
    %v1541 = vpop.f32.mrb[0].mxu0
    %v1542 = vadd.f32 %v1437, %v1541
    %v1543 = vpop.f32.mrb[0].mxu0
    %v1544 = vadd.f32 %v1441, %v1543
    %v1545 = vpop.f32.mrb[0].mxu0
    %v1546 = vpop.f32.mrb[0].mxu0
    %1547 = vdwg.mxu0
    %1549 = vrot.lane.b32.xlu0 %v1542, 32
    %v1550 = vpop.permute.xlu0 %1549
    %v1552 = vadd.f32 %v1542, %v1550
    %v1553 = vtanh.pop %v1552
    %v1554 = vmul.f32 %v1553, 0.5
    %v1555 = vadd.f32 %v1554, 0.5
    %1557 = vrot.lane.b32.xlu0 %v1544, 32
    %v1558 = vpop.permute.xlu0 %1557
    %v1560 = vadd.f32 %v1542, %v1558
    %v1561 = vtanh.pop %v1560
    %v1562 = vmul.f32 %v1561, 0.5
    %v1563 = vadd.f32 %v1562, 0.5
    %1564 = vrot.lane.b32.xlu0 %v1544, 96
    %v1565 = vpop.permute.xlu0 %1564
    %v1567 = vmul.f32 %v1555, %v1565
    %1569 = vrot.lane.b32.xlu0 %v1567, 64
    %v1570 = vpop.permute.xlu0 %1569
    %v1572 = vadd.f32 %v1542, %v1570
    %v1573 = vtanh.pop %v1572
    %v1574 = vsub.f32 1.0, %v1563
    %1576 = vrot.lane.b32.xlu0 %v1573, 96
    %v1577 = vpop.permute.xlu0 %1576
    %v1579 = vmul.f32 %v1574, %v1577
    %v1580 = vmul.f32 %v1563, %v695
    %v1581 = vadd.f32 %v1579, %v1580
    %v1582 = vld [vmem:[#allocation2 + $0x1f0] sm:$0xf]
    %v1583 = vld [vmem:[#allocation2 + $0x1f8] sm:$0xf]
    %v1584 = vld [vmem:[#allocation2 + $0x200] sm:$0xf]
    %v1585 = vld [vmem:[#allocation2 + $0x208] sm:$0xf]
    %v1586 = vld [vmem:[#allocation2 + $0x210] sm:$0xf]
    %v1587 = vld [vmem:[#allocation2 + $0x218] sm:$0xf]
    %v1588 = vld [vmem:[#allocation2 + $0x220] sm:$0xf]
    %v1589 = vld [vmem:[#allocation2 + $0x228] sm:$0xf]
    %v1590 = vld [vmem:[%s1 + $0x2] sm:$0x1]
    %1592 = vrot.lane.b32.xlu0 %v1581, 96
    %v1593 = vpop.permute.xlu0 %1592
    %v1595 = vsel %vm210, %v1593, %v1412
    %v1596 = vpack.c.bf16 %v1595, %v1595
    %v1597 = vlaneseq
    %v1598 = vshrl.u32 %v1597, 7
    %v1599 = vsub.s32 0, %v1598
    %v1600 = vrot.slane %v1590, %v1599
    %v1609 = vunpack.c.l.b16 %v1582
    %v1610 = vunpack.c.l.b16 %v1583
    %v1611 = vunpack.c.l.b16 %v1584
    %v1612 = vunpack.c.l.b16 %v1585
    %v1613 = vunpack.c.l.b16 %v1586
    %v1614 = vunpack.c.l.b16 %v1587
    %v1615 = vunpack.c.l.b16 %v1588
    %v1616 = vunpack.c.l.b16 %v1589
    %v1617 = vpack.c.b16 %v1610, %v1609
    %v1618 = vpack.c.b16 %v1612, %v1611
    %v1619 = vpack.c.b16 %v1614, %v1613
    %v1620 = vpack.c.b16 %v1616, %v1615
    %v1626 = vsel %vm530, %v1596, 0
    %1628 = vmatprep.subr.bf16.mxu0 0
    %1629 = vmatpush1.bf16.msra.mxu0 %v1617
    %1630 = vmatprep.subr.bf16.mxu0 0
    %1631 = vmatpush1.bf16.msra.mxu0 %v1618
    %1632 = vmatprep.subr.bf16.mxu0 0
    %1633 = vmatpush1.bf16.msra.mxu0 %v1619
    %1634 = vmatprep.subr.bf16.mxu0 0
    %1635 = vmatpush1.bf16.msra.mxu0 %v1620
    %1636 = vmatprep.subr.bf16.mxu0 0
    %1637 = vmatpush1.bf16.msra.mxu0 0
    %1638 = vmatprep.subr.bf16.mxu0 0
    %1639 = vmatpush1.bf16.msra.mxu0 0
    %1640 = vmatprep.subr.bf16.mxu0 0
    %1641 = vmatpush1.bf16.msra.mxu0 0
    %1642 = vmatprep.subr.bf16.mxu0 0
    %1643 = vmatpush1.bf16.msra.mxu0 0
    %1644 = vmatprep.subr.bf16.mxu0 0
    %1645 = vmatpush1.bf16.msra.mxu0 0
    %1646 = vmatprep.subr.bf16.mxu0 0
    %1647 = vmatpush1.bf16.msra.mxu0 0
    %1648 = vmatprep.subr.bf16.mxu0 0
    %1649 = vmatpush1.bf16.msra.mxu0 0
    %1650 = vmatprep.subr.bf16.mxu0 0
    %1651 = vmatpush1.bf16.msra.mxu0 0
    %1652 = vmatprep.subr.bf16.mxu0 0
    %1653 = vmatpush1.bf16.msra.mxu0 0
    %1654 = vmatprep.subr.bf16.mxu0 0
    %1655 = vmatpush1.bf16.msra.mxu0 0
    %1656 = vmatprep.subr.bf16.mxu0 0
    %1657 = vmatpush1.bf16.msra.mxu0 0
    %1658 = vmatprep.subr.bf16.mxu0 0
    %1659 = vmatpush1.bf16.msra.mxu0 0
    %1660 = vmatprep.mubr.bf16.mxu0 0
    %1661 = vmatmul.mubr.bf16.gmra.mrb[0].mxu0 %v1626
    %v1662 = vpop.f32.mrb[0].mxu0
    %v1663 = vadd.f32 %v1600, %v1662
    %v1664 = vpop.f32.mrb[0].mxu0
    %v1665 = vpop.f32.mrb[0].mxu0
    %v1666 = vpop.f32.mrb[0].mxu0
    %1667 = vdwg.mxu0
    %v1668 = vmax.f32 %v1663, 0.0
    %s1669 = scalar_lea.vmem %s4, 2
    %v1670 = vld [vmem:[%s1669] sm:$0x3]
    %1672 = vrot.lane.b32.xlu0 %v1670, 33
    %v1673 = vpop.permute.xlu0 %1672
    %v1675 = vmul.f32 %v1668, %v1673
    %v1678 = vunpack.c.l.s4 1966171168
    %v1679 = vunpack.c.0.s8 %v1678
    %v1680 = vlaneseq
    %v1681 = vshrl.u32 %v1680, 7
    %v1682 = vsub.s32 %v1679, %v1681
    %v1683 = vrot.slane %v1663, %v1682
    %v1684 = vcombine.high %v1683, %v1683
    %v1686 = vunpack.c.l.s4 1966171168
    %v1687 = vunpack.c.0.s8 %v1686
    %v1688 = vlaneseq
    %v1689 = vshrl.u32 %v1688, 7
    %v1690 = vsub.s32 %v1687, %v1689
    %v1691 = vrot.slane %v1683, %v1690
    %v1693 = vunpack.c.l.s4 1966171168
    %v1694 = vunpack.c.0.s8 %v1693
    %v1695 = vlaneseq
    %v1696 = vshrl.u32 %v1695, 7
    %v1697 = vsub.s32 %v1694, %v1696
    %v1698 = vrot.slane %v1684, %v1697
    %1701 = vst.msk [vmem:[%s5 + $0x1] sm:$0x1] %vm814, %v1691
    %1702 = vst.msk [vmem:[%s5 + $0x9] sm:$0x1] %vm814, %v1698
    %v1705 = vunpack.c.l.s4 1966171168
    %v1706 = vunpack.c.0.s8 %v1705
    %v1707 = vlaneseq
    %v1708 = vshrl.u32 %v1707, 7
    %v1709 = vsub.s32 %v1706, %v1708
    %v1710 = vrot.slane %v1376, %v1709
    %v1711 = vcombine.high %v1710, %v1710
    %v1713 = vunpack.c.l.s4 1966171168
    %v1714 = vunpack.c.0.s8 %v1713
    %v1715 = vlaneseq
    %v1716 = vshrl.u32 %v1715, 7
    %v1717 = vsub.s32 %v1714, %v1716
    %v1718 = vrot.slane %v1710, %v1717
    %v1720 = vunpack.c.l.s4 1966171168
    %v1721 = vunpack.c.0.s8 %v1720
    %v1722 = vlaneseq
    %v1723 = vshrl.u32 %v1722, 7
    %v1724 = vsub.s32 %v1721, %v1723
    %v1725 = vrot.slane %v1711, %v1724
    %1728 = vst.msk [vmem:[%s6 + $0x1] sm:$0x1] %vm842, %v1718
    %1729 = vst.msk [vmem:[%s6 + $0x9] sm:$0x1] %vm842, %v1725
    %v1730 = vlaneseq
    %v1731 = vshrl.u32 %v1730, 7
    %v1732 = vsub.s32 0, %v1731
    %v1733 = vrot.slane %v1691, %v1732
    %v1734 = vlaneseq
    %v1735 = vshrl.u32 %v1734, 7
    %v1736 = vsub.s32 0, %v1735
    %v1737 = vrot.slane %v1698, %v1736
    %1738 = vrot.lane.b32.xlu0 %v1733, 96
    %v1739 = vpop.permute.xlu0 %1738
    %1740 = vrot.lane.b32.xlu0 %v1737, 96
    %v1741 = vpop.permute.xlu0 %1740
    %1744 = vst.msk [vmem:[%s7 + $0x1] sm:$0x1] %vm859, %v1739
    %1745 = vst.msk [vmem:[%s7 + $0x9] sm:$0x1] %vm859, %v1741
    %v1746 = vld [vmem:[#allocation2 + $0x230] sm:$0xf]
    %v1747 = vld [vmem:[#allocation2 + $0x238] sm:$0xf]
    %v1748 = vld [vmem:[#allocation2 + $0x240] sm:$0xf]
    %v1749 = vld [vmem:[#allocation2 + $0x248] sm:$0xf]
    %v1750 = vpack.c.bf16 %v1675, %v1675
    %1752 = vrot.lane.b32.xlu0 %v1750, 95
    %v1753 = vpop.permute.xlu0 %1752
    %v1758 = vunpack.c.l.b16 %v1746
    %v1759 = vunpack.c.l.b16 %v1747
    %v1760 = vunpack.c.l.b16 %v1748
    %v1761 = vunpack.c.l.b16 %v1749
    %v1762 = vpack.c.b16 %v1759, %v1758
    %v1763 = vpack.c.b16 %v1761, %v1760
    %v1767 = vsel %vm210, %v1753, 0
    %1769 = vmatprep.subr.bf16.mxu0 0
    %1770 = vmatpush1.bf16.msra.mxu0 %v1762
    %1771 = vmatprep.subr.bf16.mxu0 0
    %1772 = vmatpush1.bf16.msra.mxu0 %v1763
    %1773 = vmatprep.subr.bf16.mxu0 0
    %1774 = vmatpush1.bf16.msra.mxu0 0
    %1775 = vmatprep.subr.bf16.mxu0 0
    %1776 = vmatpush1.bf16.msra.mxu0 0
    %1777 = vmatprep.subr.bf16.mxu0 0
    %1778 = vmatpush1.bf16.msra.mxu0 0
    %1779 = vmatprep.subr.bf16.mxu0 0
    %1780 = vmatpush1.bf16.msra.mxu0 0
    %1781 = vmatprep.subr.bf16.mxu0 0
    %1782 = vmatpush1.bf16.msra.mxu0 0
    %1783 = vmatprep.subr.bf16.mxu0 0
    %1784 = vmatpush1.bf16.msra.mxu0 0
    %1785 = vmatprep.subr.bf16.mxu0 0
    %1786 = vmatpush1.bf16.msra.mxu0 0
    %1787 = vmatprep.subr.bf16.mxu0 0
    %1788 = vmatpush1.bf16.msra.mxu0 0
    %1789 = vmatprep.subr.bf16.mxu0 0
    %1790 = vmatpush1.bf16.msra.mxu0 0
    %1791 = vmatprep.subr.bf16.mxu0 0
    %1792 = vmatpush1.bf16.msra.mxu0 0
    %1793 = vmatprep.subr.bf16.mxu0 0
    %1794 = vmatpush1.bf16.msra.mxu0 0
    %1795 = vmatprep.subr.bf16.mxu0 0
    %1796 = vmatpush1.bf16.msra.mxu0 0
    %1797 = vmatprep.subr.bf16.mxu0 0
    %1798 = vmatpush1.bf16.msra.mxu0 0
    %1799 = vmatprep.subr.bf16.mxu0 0
    %1800 = vmatpush1.bf16.msra.mxu0 0
    %1801 = vmatprep.mubr.bf16.mxu0 0
    %1802 = vmatmul.mubr.bf16.gmra.mrb[0].mxu0 %v1767
    %v1803 = vpop.f32.mrb[0].mxu0
    %v1804 = vadd.f32 0.0, %v1803
    %v1805 = vpop.f32.mrb[0].mxu0
    %v1806 = vpop.f32.mrb[0].mxu0
    %v1807 = vpop.f32.mrb[0].mxu0
    %1808 = vdwg.mxu0
    %v1809 = vmax.f32 %v1804, 0.0
    %v1810 = vld [vmem:[%s1669] sm:$0x3]
    %1812 = vrot.lane.b32.xlu0 %v1810, 96
    %v1813 = vpop.permute.xlu0 %1812
    %v1815 = vmul.f32 %v1809, %v1813
    %1816 = vrot.lane.b32.xlu0 %v1099, 32
    %v1817 = vpop.permute.xlu0 %1816
    %v1819 = vsel %vm210, %v1815, %v1412
    %v1820 = vsel %vm530, %v1819, %v1817
    %v1821 = vld [vmem:[#allocation2] sm:$0xff]
    %v1822 = vld [vmem:[#allocation2 + $0x8] sm:$0xff]
    %v1823 = vld [vmem:[#allocation2 + $0x10] sm:$0xff]
    %v1824 = vld [vmem:[#allocation2 + $0x18] sm:$0xff]
    %v1825 = vld [vmem:[#allocation2 + $0x20] sm:$0xff]
    %v1826 = vld [vmem:[#allocation2 + $0x28] sm:$0xff]
    %v1827 = vld [vmem:[#allocation2 + $0x30] sm:$0xff]
    %v1828 = vld [vmem:[#allocation2 + $0x38] sm:$0xff]
    %v1829 = vld [vmem:[#allocation2 + $0x40] sm:$0xff]
    %v1830 = vld [vmem:[#allocation2 + $0x48] sm:$0xff]
    %v1831 = vld [vmem:[#allocation2 + $0x50] sm:$0xff]
    %v1832 = vld [vmem:[#allocation2 + $0x58] sm:$0xff]
    %v1833 = vld [vmem:[%s1] ss:$4 sm:$0x3]
    %v1834 = vpack.c.bf16 %v1820, %v1820
    %v1836 = vlaneseq
    %v1837 = vshrl.u32 %v1836, 7
    %v1838 = vsub.s32 0, %v1837
    %v1839 = vrot.slane %v1833, %v1838
    %v1840 = vlaneseq
    %v1841 = vshrl.u32 %v1840, 7
    %v1842 = vsub.s32 1, %v1841
    %v1843 = vrot.slane %v1833, %v1842
    %v1858 = vunpack.c.l.b16 %v1821
    %v1859 = vunpack.c.h.b16 %v1821
    %v1860 = vunpack.c.l.b16 %v1822
    %v1861 = vunpack.c.h.b16 %v1822
    %v1862 = vunpack.c.l.b16 %v1823
    %v1863 = vunpack.c.h.b16 %v1823
    %v1864 = vunpack.c.l.b16 %v1824
    %v1865 = vunpack.c.h.b16 %v1824
    %v1866 = vunpack.c.l.b16 %v1825
    %v1867 = vunpack.c.h.b16 %v1825
    %v1868 = vunpack.c.l.b16 %v1826
    %v1869 = vunpack.c.h.b16 %v1826
    %v1870 = vunpack.c.l.b16 %v1827
    %v1871 = vunpack.c.h.b16 %v1827
    %v1872 = vunpack.c.l.b16 %v1828
    %v1873 = vunpack.c.h.b16 %v1828
    %v1874 = vunpack.c.l.b16 %v1829
    %v1875 = vunpack.c.h.b16 %v1829
    %v1876 = vunpack.c.l.b16 %v1830
    %v1877 = vunpack.c.h.b16 %v1830
    %v1878 = vunpack.c.l.b16 %v1831
    %v1879 = vunpack.c.h.b16 %v1831
    %v1880 = vunpack.c.l.b16 %v1832
    %v1881 = vunpack.c.h.b16 %v1832
    %v1882 = vpack.c.b16 %v1860, %v1858
    %v1883 = vpack.c.b16 %v1861, %v1859
    %v1884 = vpack.c.b16 %v1864, %v1862
    %v1885 = vpack.c.b16 %v1865, %v1863
    %v1886 = vpack.c.b16 %v1868, %v1866
    %v1887 = vpack.c.b16 %v1869, %v1867
    %v1888 = vpack.c.b16 %v1872, %v1870
    %v1889 = vpack.c.b16 %v1873, %v1871
    %v1890 = vpack.c.b16 %v1876, %v1874
    %v1891 = vpack.c.b16 %v1877, %v1875
    %v1892 = vpack.c.b16 %v1880, %v1878
    %v1893 = vpack.c.b16 %v1881, %v1879
    %v1907 = vsel %vm127, %v1834, 0
    %1909 = vmatprep.subr.bf16.mxu0 %v1883
    %1910 = vmatpush1.bf16.msra.mxu0 %v1882
    %1911 = vmatprep.subr.bf16.mxu0 %v1885
    %1912 = vmatpush1.bf16.msra.mxu0 %v1884
    %1913 = vmatprep.subr.bf16.mxu0 %v1887
    %1914 = vmatpush1.bf16.msra.mxu0 %v1886
    %1915 = vmatprep.subr.bf16.mxu0 %v1889
    %1916 = vmatpush1.bf16.msra.mxu0 %v1888
    %1917 = vmatprep.subr.bf16.mxu0 %v1891
    %1918 = vmatpush1.bf16.msra.mxu0 %v1890
    %1919 = vmatprep.subr.bf16.mxu0 %v1893
    %1920 = vmatpush1.bf16.msra.mxu0 %v1892
    %1921 = vmatprep.subr.bf16.mxu0 0
    %1922 = vmatpush1.bf16.msra.mxu0 0
    %1923 = vmatprep.subr.bf16.mxu0 0
    %1924 = vmatpush1.bf16.msra.mxu0 0
    %1925 = vmatprep.subr.bf16.mxu0 0
    %1926 = vmatpush1.bf16.msra.mxu0 0
    %1927 = vmatprep.subr.bf16.mxu0 0
    %1928 = vmatpush1.bf16.msra.mxu0 0
    %1929 = vmatprep.subr.bf16.mxu0 0
    %1930 = vmatpush1.bf16.msra.mxu0 0
    %1931 = vmatprep.subr.bf16.mxu0 0
    %1932 = vmatpush1.bf16.msra.mxu0 0
    %1933 = vmatprep.subr.bf16.mxu0 0
    %1934 = vmatpush1.bf16.msra.mxu0 0
    %1935 = vmatprep.subr.bf16.mxu0 0
    %1936 = vmatpush1.bf16.msra.mxu0 0
    %1937 = vmatprep.subr.bf16.mxu0 0
    %1938 = vmatpush1.bf16.msra.mxu0 0
    %1939 = vmatprep.subr.bf16.mxu0 0
    %1940 = vmatpush1.bf16.msra.mxu0 0
    %1941 = vmatprep.mubr.bf16.mxu0 0
    %1942 = vmatmul.mubr.bf16.gmra.mrb[0].mxu0 %v1907
    %v1943 = vpop.f32.mrb[0].mxu0
    %v1944 = vadd.f32 %v1839, %v1943
    %v1945 = vpop.f32.mrb[0].mxu0
    %v1946 = vadd.f32 %v1843, %v1945
    %v1947 = vpop.f32.mrb[0].mxu0
    %v1948 = vpop.f32.mrb[0].mxu0
    %1949 = vdwg.mxu0
    %1951 = vrot.lane.b32.xlu0 %v1944, 32
    %v1952 = vpop.permute.xlu0 %1951
    %v1954 = vadd.f32 %v1944, %v1952
    %v1955 = vtanh.pop %v1954
    %v1956 = vmul.f32 %v1955, 0.5
    %v1957 = vadd.f32 %v1956, 0.5
    %1959 = vrot.lane.b32.xlu0 %v1946, 32
    %v1960 = vpop.permute.xlu0 %1959
    %v1962 = vadd.f32 %v1944, %v1960
    %v1963 = vtanh.pop %v1962
    %v1964 = vmul.f32 %v1963, 0.5
    %v1965 = vadd.f32 %v1964, 0.5
    %1966 = vrot.lane.b32.xlu0 %v1946, 96
    %v1967 = vpop.permute.xlu0 %1966
    %v1969 = vmul.f32 %v1957, %v1967
    %1971 = vrot.lane.b32.xlu0 %v1969, 64
    %v1972 = vpop.permute.xlu0 %1971
    %v1974 = vadd.f32 %v1944, %v1972
    %v1975 = vtanh.pop %v1974
    %v1976 = vsub.f32 1.0, %v1965
    %1978 = vrot.lane.b32.xlu0 %v1975, 96
    %v1979 = vpop.permute.xlu0 %1978
    %v1981 = vmul.f32 %v1976, %v1979
    %v1982 = vmul.f32 %v1965, %v1099
    %v1983 = vadd.f32 %v1981, %v1982
    %1985 = vrot.lane.b32.xlu0 %v1983, 96
    %v1986 = vpop.permute.xlu0 %1985
    %1988 = vrot.lane.b32.xlu0 %v1376, 32
    %v1989 = vpop.permute.xlu0 %1988
    %1992 = vrot.lane.b32.xlu0 %v1407, 40
    %v1993 = vpop.permute.xlu0 %1992
    %v1995 = vsel %vm210, %v1986, %v1989
    %v1996 = vsel %vm212, %v1995, %v1993
    %v1997 = vld [vmem:[#allocation2 + $0xc0] sm:$0xff]
    %v1998 = vld [vmem:[#allocation2 + $0xc8] sm:$0xff]
    %v1999 = vld [vmem:[#allocation2 + $0xd0] sm:$0xff]
    %v2000 = vld [vmem:[#allocation2 + $0xd8] sm:$0xff]
    %v2001 = vld [vmem:[#allocation2 + $0xe0] sm:$0xff]
    %v2002 = vld [vmem:[#allocation2 + $0xe8] sm:$0xff]
    %v2003 = vpack.c.bf16 %v1996, %v1996
    %v2010 = vunpack.c.l.b16 %v1997
    %v2011 = vunpack.c.h.b16 %v1997
    %v2012 = vunpack.c.l.b16 %v1998
    %v2013 = vunpack.c.h.b16 %v1998
    %v2014 = vunpack.c.l.b16 %v1999
    %v2015 = vunpack.c.h.b16 %v1999
    %v2016 = vunpack.c.l.b16 %v2000
    %v2017 = vunpack.c.h.b16 %v2000
    %v2018 = vunpack.c.l.b16 %v2001
    %v2019 = vunpack.c.h.b16 %v2001
    %v2020 = vunpack.c.l.b16 %v2002
    %v2021 = vunpack.c.h.b16 %v2002
    %v2022 = vpack.c.b16 %v2012, %v2010
    %v2023 = vpack.c.b16 %v2013, %v2011
    %v2024 = vpack.c.b16 %v2016, %v2014
    %v2025 = vpack.c.b16 %v2017, %v2015
    %v2026 = vpack.c.b16 %v2020, %v2018
    %v2027 = vpack.c.b16 %v2021, %v2019
    %v2035 = vsel %vm262, %v2003, 0
    %2037 = vmatprep.subr.bf16.mxu0 %v2023
    %2038 = vmatpush1.bf16.msra.mxu0 %v2022
    %2039 = vmatprep.subr.bf16.mxu0 %v2025
    %2040 = vmatpush1.bf16.msra.mxu0 %v2024
    %2041 = vmatprep.subr.bf16.mxu0 %v2027
    %2042 = vmatpush1.bf16.msra.mxu0 %v2026
    %2043 = vmatprep.subr.bf16.mxu0 0
    %2044 = vmatpush1.bf16.msra.mxu0 0
    %2045 = vmatprep.subr.bf16.mxu0 0
    %2046 = vmatpush1.bf16.msra.mxu0 0
    %2047 = vmatprep.subr.bf16.mxu0 0
    %2048 = vmatpush1.bf16.msra.mxu0 0
    %2049 = vmatprep.subr.bf16.mxu0 0
    %2050 = vmatpush1.bf16.msra.mxu0 0
    %2051 = vmatprep.subr.bf16.mxu0 0
    %2052 = vmatpush1.bf16.msra.mxu0 0
    %2053 = vmatprep.subr.bf16.mxu0 0
    %2054 = vmatpush1.bf16.msra.mxu0 0
    %2055 = vmatprep.subr.bf16.mxu0 0
    %2056 = vmatpush1.bf16.msra.mxu0 0
    %2057 = vmatprep.subr.bf16.mxu0 0
    %2058 = vmatpush1.bf16.msra.mxu0 0
    %2059 = vmatprep.subr.bf16.mxu0 0
    %2060 = vmatpush1.bf16.msra.mxu0 0
    %2061 = vmatprep.subr.bf16.mxu0 0
    %2062 = vmatpush1.bf16.msra.mxu0 0
    %2063 = vmatprep.subr.bf16.mxu0 0
    %2064 = vmatpush1.bf16.msra.mxu0 0
    %2065 = vmatprep.subr.bf16.mxu0 0
    %2066 = vmatpush1.bf16.msra.mxu0 0
    %2067 = vmatprep.subr.bf16.mxu0 0
    %2068 = vmatpush1.bf16.msra.mxu0 0
    %2069 = vmatprep.mubr.bf16.mxu0 0
    %2070 = vmatmul.mubr.bf16.gmra.mrb[0].mxu0 %v2035
    %v2071 = vpop.f32.mrb[0].mxu0
    %v2072 = vadd.f32 %v258, %v2071
    %v2073 = vpop.f32.mrb[0].mxu0
    %v2074 = vadd.f32 %v259, %v2073
    %v2075 = vpop.f32.mrb[0].mxu0
    %v2076 = vpop.f32.mrb[0].mxu0
    %2077 = vdwg.mxu0
    %v2078 = vtanh.pop %v2072
    %v2079 = vtanh.pop %v2074
    %v2080 = vld [vmem:[#allocation2 + $0xf0] sm:$0xf]
    %v2081 = vld [vmem:[#allocation2 + $0xf8] sm:$0xf]
    %v2082 = vld [vmem:[#allocation2 + $0x100] sm:$0xf]
    %v2083 = vld [vmem:[#allocation2 + $0x108] sm:$0xf]
    %v2084 = vld [vmem:[#allocation2 + $0x110] sm:$0xf]
    %v2085 = vld [vmem:[#allocation2 + $0x118] sm:$0xf]
    %v2086 = vld [vmem:[#allocation2 + $0x120] sm:$0xf]
    %v2087 = vld [vmem:[#allocation2 + $0x128] sm:$0xf]
    %v2088 = vld [vmem:[#allocation2 + $0x130] sm:$0xf]
    %v2089 = vld [vmem:[#allocation2 + $0x138] sm:$0xf]
    %v2090 = vld [vmem:[#allocation2 + $0x140] sm:$0xf]
    %v2091 = vld [vmem:[#allocation2 + $0x148] sm:$0xf]
    %v2092 = vld [vmem:[#allocation2 + $0x150] sm:$0xf]
    %v2093 = vld [vmem:[#allocation2 + $0x158] sm:$0xf]
    %v2094 = vld [vmem:[#allocation2 + $0x160] sm:$0xf]
    %v2095 = vld [vmem:[#allocation2 + $0x168] sm:$0xf]
    %v2096 = vld [vmem:[#allocation2 + $0x170] sm:$0xf]
    %v2097 = vld [vmem:[#allocation2 + $0x178] sm:$0xf]
    %v2098 = vld [vmem:[#allocation2 + $0x180] sm:$0xf]
    %v2099 = vld [vmem:[#allocation2 + $0x188] sm:$0xf]
    %v2100 = vld [vmem:[#allocation2 + $0x190] sm:$0xf]
    %v2101 = vld [vmem:[#allocation2 + $0x198] sm:$0xf]
    %v2102 = vld [vmem:[#allocation2 + $0x1a0] sm:$0xf]
    %v2103 = vld [vmem:[#allocation2 + $0x1a8] sm:$0xf]
    %v2104 = vld [vmem:[#allocation2 + $0x1b0] sm:$0xf]
    %v2105 = vld [vmem:[#allocation2 + $0x1b8] sm:$0xf]
    %v2106 = vld [vmem:[#allocation2 + $0x1c0] sm:$0xf]
    %v2107 = vld [vmem:[#allocation2 + $0x1c8] sm:$0xf]
    %v2108 = vld [vmem:[#allocation2 + $0x1d0] sm:$0xf]
    %v2109 = vld [vmem:[#allocation2 + $0x1d8] sm:$0xf]
    %v2110 = vld [vmem:[#allocation2 + $0x1e0] sm:$0xf]
    %v2111 = vld [vmem:[#allocation2 + $0x1e8] sm:$0xf]
    %v2112 = vpack.c.bf16 %v2078, %v2078
    %v2113 = vpack.c.bf16 %v2079, %v2079
    %v2146 = vunpack.c.l.b16 %v2080
    %v2147 = vunpack.c.l.b16 %v2081
    %v2148 = vunpack.c.l.b16 %v2082
    %v2149 = vunpack.c.l.b16 %v2083
    %v2150 = vunpack.c.l.b16 %v2084
    %v2151 = vunpack.c.l.b16 %v2085
    %v2152 = vunpack.c.l.b16 %v2086
    %v2153 = vunpack.c.l.b16 %v2087
    %v2154 = vunpack.c.l.b16 %v2088
    %v2155 = vunpack.c.l.b16 %v2089
    %v2156 = vunpack.c.l.b16 %v2090
    %v2157 = vunpack.c.l.b16 %v2091
    %v2158 = vunpack.c.l.b16 %v2092
    %v2159 = vunpack.c.l.b16 %v2093
    %v2160 = vunpack.c.l.b16 %v2094
    %v2161 = vunpack.c.l.b16 %v2095
    %v2162 = vunpack.c.l.b16 %v2096
    %v2163 = vunpack.c.l.b16 %v2097
    %v2164 = vunpack.c.l.b16 %v2098
    %v2165 = vunpack.c.l.b16 %v2099
    %v2166 = vunpack.c.l.b16 %v2100
    %v2167 = vunpack.c.l.b16 %v2101
    %v2168 = vunpack.c.l.b16 %v2102
    %v2169 = vunpack.c.l.b16 %v2103
    %v2170 = vunpack.c.l.b16 %v2104
    %v2171 = vunpack.c.l.b16 %v2105
    %v2172 = vunpack.c.l.b16 %v2106
    %v2173 = vunpack.c.l.b16 %v2107
    %v2174 = vunpack.c.l.b16 %v2108
    %v2175 = vunpack.c.l.b16 %v2109
    %v2176 = vunpack.c.l.b16 %v2110
    %v2177 = vunpack.c.l.b16 %v2111
    %v2178 = vpack.c.b16 %v2147, %v2146
    %v2179 = vpack.c.b16 %v2149, %v2148
    %v2180 = vpack.c.b16 %v2151, %v2150
    %v2181 = vpack.c.b16 %v2153, %v2152
    %v2182 = vpack.c.b16 %v2155, %v2154
    %v2183 = vpack.c.b16 %v2157, %v2156
    %v2184 = vpack.c.b16 %v2159, %v2158
    %v2185 = vpack.c.b16 %v2161, %v2160
    %v2186 = vpack.c.b16 %v2163, %v2162
    %v2187 = vpack.c.b16 %v2165, %v2164
    %v2188 = vpack.c.b16 %v2167, %v2166
    %v2189 = vpack.c.b16 %v2169, %v2168
    %v2190 = vpack.c.b16 %v2171, %v2170
    %v2191 = vpack.c.b16 %v2173, %v2172
    %v2192 = vpack.c.b16 %v2175, %v2174
    %v2193 = vpack.c.b16 %v2177, %v2176
    %2210 = vmatprep.subr.bf16.mxu0 0
    %2211 = vmatpush1.bf16.msra.mxu0 %v2178
    %2212 = vmatprep.subr.bf16.mxu0 0
    %2213 = vmatpush1.bf16.msra.mxu0 %v2179
    %2214 = vmatprep.subr.bf16.mxu0 0
    %2215 = vmatpush1.bf16.msra.mxu0 %v2180
    %2216 = vmatprep.subr.bf16.mxu0 0
    %2217 = vmatpush1.bf16.msra.mxu0 %v2181
    %2218 = vmatprep.subr.bf16.mxu0 0
    %2219 = vmatpush1.bf16.msra.mxu0 %v2182
    %2220 = vmatprep.subr.bf16.mxu0 0
    %2221 = vmatpush1.bf16.msra.mxu0 %v2183
    %2222 = vmatprep.subr.bf16.mxu0 0
    %2223 = vmatpush1.bf16.msra.mxu0 %v2184
    %2224 = vmatprep.subr.bf16.mxu0 0
    %2225 = vmatpush1.bf16.msra.mxu0 %v2185
    %2226 = vmatprep.subr.bf16.mxu0 0
    %2227 = vmatpush1.bf16.msra.mxu0 %v2186
    %2228 = vmatprep.subr.bf16.mxu0 0
    %2229 = vmatpush1.bf16.msra.mxu0 %v2187
    %2230 = vmatprep.subr.bf16.mxu0 0
    %2231 = vmatpush1.bf16.msra.mxu0 %v2188
    %2232 = vmatprep.subr.bf16.mxu0 0
    %2233 = vmatpush1.bf16.msra.mxu0 %v2189
    %2234 = vmatprep.subr.bf16.mxu0 0
    %2235 = vmatpush1.bf16.msra.mxu0 %v2190
    %2236 = vmatprep.subr.bf16.mxu0 0
    %2237 = vmatpush1.bf16.msra.mxu0 %v2191
    %2238 = vmatprep.subr.bf16.mxu0 0
    %2239 = vmatpush1.bf16.msra.mxu0 %v2192
    %2240 = vmatprep.subr.bf16.mxu0 0
    %2241 = vmatpush1.bf16.msra.mxu0 %v2193
    %2242 = vmatprep.mubr.bf16.mxu0 %v2113
    %2243 = vmatmul.mubr.bf16.gmra.mrb[0].mxu0 %v2112
    %v2244 = vpop.f32.mrb[0].mxu0
    %v2245 = vadd.f32 %v39, %v2244
    %v2246 = vpop.f32.mrb[0].mxu0
    %v2247 = vpop.f32.mrb[0].mxu0
    %v2248 = vpop.f32.mrb[0].mxu0
    %2249 = vdwg.mxu0
    %v2250 = vsel %vm479, %v2245, -inf
    %2251 = vmax.xlane.f32.xlu0 %v2250
    %v2252 = vpop.xlane.xlu0 %2251
    %v2253 = vsub.f32 %v2245, %v2252
    %v2254 = vmul.f32 %v2253, 1.442695
    %v2255 = vpow.pop %v2254
    %v2256 = vsel %vm479, %v2255, 0.0
    %2257 = vadd.xlane.f32.xlu0 %v2256
    %v2258 = vpop.xlane.xlu0 %2257
    %v2259 = vrcp.pop %v2258
    %v2260 = vmul.f32 %v2255, %v2259
    %v2261 = vlaneseq
    %v2262 = vshrl.u32 %v2261, 7
    %v2263 = vsub.s32 0, %v2262
    %v2264 = vrot.slane %v2260, %v2263
    %2266 = vbcast.lane.b32.xlu0 %v2264, 256
    %v2267 = vpop.permute.xlu0 %2266
    %v2268 = vlaneseq
    %v2269 = vshrl.u32 %v2268, 7
    %v2270 = vsub.s32 1, %v2269
    %v2271 = vrot.slane %v2260, %v2270
    %2273 = vbcast.lane.b32.xlu0 %v2271, 256
    %v2274 = vpop.permute.xlu0 %2273
    %v2275 = vmul.f32 %v2267, %v40
    %v2276 = vmul.f32 %v2274, %v41
    %v2277 = vsel %vm210, %v2275, 0.0
    %v2278 = vrot.slane %v2277, 4
    %v2279 = vadd.f32 %v2277, %v2278
    %v2280 = vrot.slane %v2279, 2
    %v2281 = vadd.f32 %v2279, %v2280
    %v2282 = vrot.slane %v2281, 1
    %v2283 = vadd.f32 %v2281, %v2282
    %v2284 = vsel %vm210, %v2276, 0.0
    %v2285 = vrot.slane %v2284, 4
    %v2286 = vadd.f32 %v2284, %v2285
    %v2287 = vrot.slane %v2286, 2
    %v2288 = vadd.f32 %v2286, %v2287
    %v2289 = vrot.slane %v2288, 1
    %v2290 = vadd.f32 %v2288, %v2289
    %v2291 = vadd.f32 %v1407, %v2260
    %v2294 = vsel %vm524, %v2290, %v2283
    %2295 = vrot.lane.b32.xlu0 %v2294, 32
    %v2296 = vpop.permute.xlu0 %2295
    %2298 = vrot.lane.b32.xlu0 %v1581, 32
    %v2299 = vpop.permute.xlu0 %2298
    %v2301 = vsel %vm210, %v1986, %v2296
    %v2302 = vsel %vm530, %v2301, %v2299
    %v2303 = vld [vmem:[#allocation2 + $0x60] sm:$0xff]
    %v2304 = vld [vmem:[#allocation2 + $0x68] sm:$0xff]
    %v2305 = vld [vmem:[#allocation2 + $0x70] sm:$0xff]
    %v2306 = vld [vmem:[#allocation2 + $0x78] sm:$0xff]
    %v2307 = vld [vmem:[#allocation2 + $0x80] sm:$0xff]
    %v2308 = vld [vmem:[#allocation2 + $0x88] sm:$0xff]
    %v2309 = vld [vmem:[#allocation2 + $0x90] sm:$0xff]
    %v2310 = vld [vmem:[#allocation2 + $0x98] sm:$0xff]
    %v2311 = vld [vmem:[#allocation2 + $0xa0] sm:$0xff]
    %v2312 = vld [vmem:[#allocation2 + $0xa8] sm:$0xff]
    %v2313 = vld [vmem:[#allocation2 + $0xb0] sm:$0xff]
    %v2314 = vld [vmem:[#allocation2 + $0xb8] sm:$0xff]
    %v2315 = vld [vmem:[%s544] ss:$4 sm:$0x3]
    %v2316 = vpack.c.bf16 %v2302, %v2302
    %v2318 = vlaneseq
    %v2319 = vshrl.u32 %v2318, 7
    %v2320 = vsub.s32 0, %v2319
    %v2321 = vrot.slane %v2315, %v2320
    %v2322 = vlaneseq
    %v2323 = vshrl.u32 %v2322, 7
    %v2324 = vsub.s32 1, %v2323
    %v2325 = vrot.slane %v2315, %v2324
    %v2340 = vunpack.c.l.b16 %v2303
    %v2341 = vunpack.c.h.b16 %v2303
    %v2342 = vunpack.c.l.b16 %v2304
    %v2343 = vunpack.c.h.b16 %v2304
    %v2344 = vunpack.c.l.b16 %v2305
    %v2345 = vunpack.c.h.b16 %v2305
    %v2346 = vunpack.c.l.b16 %v2306
    %v2347 = vunpack.c.h.b16 %v2306
    %v2348 = vunpack.c.l.b16 %v2307
    %v2349 = vunpack.c.h.b16 %v2307
    %v2350 = vunpack.c.l.b16 %v2308
    %v2351 = vunpack.c.h.b16 %v2308
    %v2352 = vunpack.c.l.b16 %v2309
    %v2353 = vunpack.c.h.b16 %v2309
    %v2354 = vunpack.c.l.b16 %v2310
    %v2355 = vunpack.c.h.b16 %v2310
    %v2356 = vunpack.c.l.b16 %v2311
    %v2357 = vunpack.c.h.b16 %v2311
    %v2358 = vunpack.c.l.b16 %v2312
    %v2359 = vunpack.c.h.b16 %v2312
    %v2360 = vunpack.c.l.b16 %v2313
    %v2361 = vunpack.c.h.b16 %v2313
    %v2362 = vunpack.c.l.b16 %v2314
    %v2363 = vunpack.c.h.b16 %v2314
    %v2364 = vpack.c.b16 %v2342, %v2340
    %v2365 = vpack.c.b16 %v2343, %v2341
    %v2366 = vpack.c.b16 %v2346, %v2344
    %v2367 = vpack.c.b16 %v2347, %v2345
    %v2368 = vpack.c.b16 %v2350, %v2348
    %v2369 = vpack.c.b16 %v2351, %v2349
    %v2370 = vpack.c.b16 %v2354, %v2352
    %v2371 = vpack.c.b16 %v2355, %v2353
    %v2372 = vpack.c.b16 %v2358, %v2356
    %v2373 = vpack.c.b16 %v2359, %v2357
    %v2374 = vpack.c.b16 %v2362, %v2360
    %v2375 = vpack.c.b16 %v2363, %v2361
    %v2389 = vsel %vm127, %v2316, 0
    %2391 = vmatprep.subr.bf16.mxu0 %v2365
    %2392 = vmatpush1.bf16.msra.mxu0 %v2364
    %2393 = vmatprep.subr.bf16.mxu0 %v2367
    %2394 = vmatpush1.bf16.msra.mxu0 %v2366
    %2395 = vmatprep.subr.bf16.mxu0 %v2369
    %2396 = vmatpush1.bf16.msra.mxu0 %v2368
    %2397 = vmatprep.subr.bf16.mxu0 %v2371
    %2398 = vmatpush1.bf16.msra.mxu0 %v2370
    %2399 = vmatprep.subr.bf16.mxu0 %v2373
    %2400 = vmatpush1.bf16.msra.mxu0 %v2372
    %2401 = vmatprep.subr.bf16.mxu0 %v2375
    %2402 = vmatpush1.bf16.msra.mxu0 %v2374
    %2403 = vmatprep.subr.bf16.mxu0 0
    %2404 = vmatpush1.bf16.msra.mxu0 0
    %2405 = vmatprep.subr.bf16.mxu0 0
    %2406 = vmatpush1.bf16.msra.mxu0 0
    %2407 = vmatprep.subr.bf16.mxu0 0
    %2408 = vmatpush1.bf16.msra.mxu0 0
    %2409 = vmatprep.subr.bf16.mxu0 0
    %2410 = vmatpush1.bf16.msra.mxu0 0
    %2411 = vmatprep.subr.bf16.mxu0 0
    %2412 = vmatpush1.bf16.msra.mxu0 0
    %2413 = vmatprep.subr.bf16.mxu0 0
    %2414 = vmatpush1.bf16.msra.mxu0 0
    %2415 = vmatprep.subr.bf16.mxu0 0
    %2416 = vmatpush1.bf16.msra.mxu0 0
    %2417 = vmatprep.subr.bf16.mxu0 0
    %2418 = vmatpush1.bf16.msra.mxu0 0
    %2419 = vmatprep.subr.bf16.mxu0 0
    %2420 = vmatpush1.bf16.msra.mxu0 0
    %2421 = vmatprep.subr.bf16.mxu0 0
    %2422 = vmatpush1.bf16.msra.mxu0 0
    %2423 = vmatprep.mubr.bf16.mxu0 0
    %2424 = vmatmul.mubr.bf16.gmra.mrb[0].mxu0 %v2389
    %v2425 = vpop.f32.mrb[0].mxu0
    %v2426 = vadd.f32 %v2321, %v2425
    %v2427 = vpop.f32.mrb[0].mxu0
    %v2428 = vadd.f32 %v2325, %v2427
    %v2429 = vpop.f32.mrb[0].mxu0
    %v2430 = vpop.f32.mrb[0].mxu0
    %2431 = vdwg.mxu0
    %2433 = vrot.lane.b32.xlu0 %v2426, 32
    %v2434 = vpop.permute.xlu0 %2433
    %v2436 = vadd.f32 %v2426, %v2434
    %v2437 = vtanh.pop %v2436
    %v2438 = vmul.f32 %v2437, 0.5
    %v2439 = vadd.f32 %v2438, 0.5
    %2441 = vrot.lane.b32.xlu0 %v2428, 32
    %v2442 = vpop.permute.xlu0 %2441
    %v2444 = vadd.f32 %v2426, %v2442
    %v2445 = vtanh.pop %v2444
    %v2446 = vmul.f32 %v2445, 0.5
    %v2447 = vadd.f32 %v2446, 0.5
    %2448 = vrot.lane.b32.xlu0 %v2428, 96
    %v2449 = vpop.permute.xlu0 %2448
    %v2451 = vmul.f32 %v2439, %v2449
    %2453 = vrot.lane.b32.xlu0 %v2451, 64
    %v2454 = vpop.permute.xlu0 %2453
    %v2456 = vadd.f32 %v2426, %v2454
    %v2457 = vtanh.pop %v2456
    %v2458 = vsub.f32 1.0, %v2447
    %2460 = vrot.lane.b32.xlu0 %v2457, 96
    %v2461 = vpop.permute.xlu0 %2460
    %v2463 = vmul.f32 %v2458, %v2461
    %v2464 = vmul.f32 %v2447, %v1581
    %v2465 = vadd.f32 %v2463, %v2464
    %v2466 = vld [vmem:[#allocation2 + $0x1f0] sm:$0xf]
    %v2467 = vld [vmem:[#allocation2 + $0x1f8] sm:$0xf]
    %v2468 = vld [vmem:[#allocation2 + $0x200] sm:$0xf]
    %v2469 = vld [vmem:[#allocation2 + $0x208] sm:$0xf]
    %v2470 = vld [vmem:[#allocation2 + $0x210] sm:$0xf]
    %v2471 = vld [vmem:[#allocation2 + $0x218] sm:$0xf]
    %v2472 = vld [vmem:[#allocation2 + $0x220] sm:$0xf]
    %v2473 = vld [vmem:[#allocation2 + $0x228] sm:$0xf]
    %v2474 = vld [vmem:[%s1 + $0x2] sm:$0x1]
    %2476 = vrot.lane.b32.xlu0 %v2465, 96
    %v2477 = vpop.permute.xlu0 %2476
    %v2479 = vsel %vm210, %v2477, %v2296
    %v2480 = vpack.c.bf16 %v2479, %v2479
    %v2481 = vlaneseq
    %v2482 = vshrl.u32 %v2481, 7
    %v2483 = vsub.s32 0, %v2482
    %v2484 = vrot.slane %v2474, %v2483
    %v2493 = vunpack.c.l.b16 %v2466
    %v2494 = vunpack.c.l.b16 %v2467
    %v2495 = vunpack.c.l.b16 %v2468
    %v2496 = vunpack.c.l.b16 %v2469
    %v2497 = vunpack.c.l.b16 %v2470
    %v2498 = vunpack.c.l.b16 %v2471
    %v2499 = vunpack.c.l.b16 %v2472
    %v2500 = vunpack.c.l.b16 %v2473
    %v2501 = vpack.c.b16 %v2494, %v2493
    %v2502 = vpack.c.b16 %v2496, %v2495
    %v2503 = vpack.c.b16 %v2498, %v2497
    %v2504 = vpack.c.b16 %v2500, %v2499
    %v2510 = vsel %vm530, %v2480, 0
    %2512 = vmatprep.subr.bf16.mxu0 0
    %2513 = vmatpush1.bf16.msra.mxu0 %v2501
    %2514 = vmatprep.subr.bf16.mxu0 0
    %2515 = vmatpush1.bf16.msra.mxu0 %v2502
    %2516 = vmatprep.subr.bf16.mxu0 0
    %2517 = vmatpush1.bf16.msra.mxu0 %v2503
    %2518 = vmatprep.subr.bf16.mxu0 0
    %2519 = vmatpush1.bf16.msra.mxu0 %v2504
    %2520 = vmatprep.subr.bf16.mxu0 0
    %2521 = vmatpush1.bf16.msra.mxu0 0
    %2522 = vmatprep.subr.bf16.mxu0 0
    %2523 = vmatpush1.bf16.msra.mxu0 0
    %2524 = vmatprep.subr.bf16.mxu0 0
    %2525 = vmatpush1.bf16.msra.mxu0 0
    %2526 = vmatprep.subr.bf16.mxu0 0
    %2527 = vmatpush1.bf16.msra.mxu0 0
    %2528 = vmatprep.subr.bf16.mxu0 0
    %2529 = vmatpush1.bf16.msra.mxu0 0
    %2530 = vmatprep.subr.bf16.mxu0 0
    %2531 = vmatpush1.bf16.msra.mxu0 0
    %2532 = vmatprep.subr.bf16.mxu0 0
    %2533 = vmatpush1.bf16.msra.mxu0 0
    %2534 = vmatprep.subr.bf16.mxu0 0
    %2535 = vmatpush1.bf16.msra.mxu0 0
    %2536 = vmatprep.subr.bf16.mxu0 0
    %2537 = vmatpush1.bf16.msra.mxu0 0
    %2538 = vmatprep.subr.bf16.mxu0 0
    %2539 = vmatpush1.bf16.msra.mxu0 0
    %2540 = vmatprep.subr.bf16.mxu0 0
    %2541 = vmatpush1.bf16.msra.mxu0 0
    %2542 = vmatprep.subr.bf16.mxu0 0
    %2543 = vmatpush1.bf16.msra.mxu0 0
    %2544 = vmatprep.mubr.bf16.mxu0 0
    %2545 = vmatmul.mubr.bf16.gmra.mrb[0].mxu0 %v2510
    %v2546 = vpop.f32.mrb[0].mxu0
    %v2547 = vadd.f32 %v2484, %v2546
    %v2548 = vpop.f32.mrb[0].mxu0
    %v2549 = vpop.f32.mrb[0].mxu0
    %v2550 = vpop.f32.mrb[0].mxu0
    %2551 = vdwg.mxu0
    %v2552 = vmax.f32 %v2547, 0.0
    %s2553 = scalar_lea.vmem %s4, 4
    %v2554 = vld [vmem:[%s2553] sm:$0x3]
    %2556 = vrot.lane.b32.xlu0 %v2554, 33
    %v2557 = vpop.permute.xlu0 %2556
    %v2559 = vmul.f32 %v2552, %v2557
    %v2562 = vunpack.c.l.s4 1966171168
    %v2563 = vunpack.c.0.s8 %v2562
    %v2564 = vlaneseq
    %v2565 = vshrl.u32 %v2564, 7
    %v2566 = vsub.s32 %v2563, %v2565
    %v2567 = vrot.slane %v2547, %v2566
    %v2568 = vcombine.high %v2567, %v2567
    %v2570 = vunpack.c.l.s4 1966171168
    %v2571 = vunpack.c.0.s8 %v2570
    %v2572 = vlaneseq
    %v2573 = vshrl.u32 %v2572, 7
    %v2574 = vsub.s32 %v2571, %v2573
    %v2575 = vrot.slane %v2567, %v2574
    %v2577 = vunpack.c.l.s4 1966171168
    %v2578 = vunpack.c.0.s8 %v2577
    %v2579 = vlaneseq
    %v2580 = vshrl.u32 %v2579, 7
    %v2581 = vsub.s32 %v2578, %v2580
    %v2582 = vrot.slane %v2568, %v2581
    %2585 = vst.msk [vmem:[%s5 + $0x2] sm:$0x1] %vm814, %v2575
    %2586 = vst.msk [vmem:[%s5 + $0xa] sm:$0x1] %vm814, %v2582
    %v2589 = vunpack.c.l.s4 1966171168
    %v2590 = vunpack.c.0.s8 %v2589
    %v2591 = vlaneseq
    %v2592 = vshrl.u32 %v2591, 7
    %v2593 = vsub.s32 %v2590, %v2592
    %v2594 = vrot.slane %v2260, %v2593
    %v2595 = vcombine.high %v2594, %v2594
    %v2597 = vunpack.c.l.s4 1966171168
    %v2598 = vunpack.c.0.s8 %v2597
    %v2599 = vlaneseq
    %v2600 = vshrl.u32 %v2599, 7
    %v2601 = vsub.s32 %v2598, %v2600
    %v2602 = vrot.slane %v2594, %v2601
    %v2604 = vunpack.c.l.s4 1966171168
    %v2605 = vunpack.c.0.s8 %v2604
    %v2606 = vlaneseq
    %v2607 = vshrl.u32 %v2606, 7
    %v2608 = vsub.s32 %v2605, %v2607
    %v2609 = vrot.slane %v2595, %v2608
    %2612 = vst.msk [vmem:[%s6 + $0x2] sm:$0x1] %vm842, %v2602
    %2613 = vst.msk [vmem:[%s6 + $0xa] sm:$0x1] %vm842, %v2609
    %v2614 = vlaneseq
    %v2615 = vshrl.u32 %v2614, 7
    %v2616 = vsub.s32 0, %v2615
    %v2617 = vrot.slane %v2575, %v2616
    %v2618 = vlaneseq
    %v2619 = vshrl.u32 %v2618, 7
    %v2620 = vsub.s32 0, %v2619
    %v2621 = vrot.slane %v2582, %v2620
    %2622 = vrot.lane.b32.xlu0 %v2617, 96
    %v2623 = vpop.permute.xlu0 %2622
    %2624 = vrot.lane.b32.xlu0 %v2621, 96
    %v2625 = vpop.permute.xlu0 %2624
    %2628 = vst.msk [vmem:[%s7 + $0x2] sm:$0x1] %vm859, %v2623
    %2629 = vst.msk [vmem:[%s7 + $0xa] sm:$0x1] %vm859, %v2625
    %v2630 = vld [vmem:[#allocation2 + $0x230] sm:$0xf]
    %v2631 = vld [vmem:[#allocation2 + $0x238] sm:$0xf]
    %v2632 = vld [vmem:[#allocation2 + $0x240] sm:$0xf]
    %v2633 = vld [vmem:[#allocation2 + $0x248] sm:$0xf]
    %v2634 = vpack.c.bf16 %v2559, %v2559
    %2636 = vrot.lane.b32.xlu0 %v2634, 95
    %v2637 = vpop.permute.xlu0 %2636
    %v2642 = vunpack.c.l.b16 %v2630
    %v2643 = vunpack.c.l.b16 %v2631
    %v2644 = vunpack.c.l.b16 %v2632
    %v2645 = vunpack.c.l.b16 %v2633
    %v2646 = vpack.c.b16 %v2643, %v2642
    %v2647 = vpack.c.b16 %v2645, %v2644
    %v2651 = vsel %vm210, %v2637, 0
    %2653 = vmatprep.subr.bf16.mxu0 0
    %2654 = vmatpush1.bf16.msra.mxu0 %v2646
    %2655 = vmatprep.subr.bf16.mxu0 0
    %2656 = vmatpush1.bf16.msra.mxu0 %v2647
    %2657 = vmatprep.subr.bf16.mxu0 0
    %2658 = vmatpush1.bf16.msra.mxu0 0
    %2659 = vmatprep.subr.bf16.mxu0 0
    %2660 = vmatpush1.bf16.msra.mxu0 0
    %2661 = vmatprep.subr.bf16.mxu0 0
    %2662 = vmatpush1.bf16.msra.mxu0 0
    %2663 = vmatprep.subr.bf16.mxu0 0
    %2664 = vmatpush1.bf16.msra.mxu0 0
    %2665 = vmatprep.subr.bf16.mxu0 0
    %2666 = vmatpush1.bf16.msra.mxu0 0
    %2667 = vmatprep.subr.bf16.mxu0 0
    %2668 = vmatpush1.bf16.msra.mxu0 0
    %2669 = vmatprep.subr.bf16.mxu0 0
    %2670 = vmatpush1.bf16.msra.mxu0 0
    %2671 = vmatprep.subr.bf16.mxu0 0
    %2672 = vmatpush1.bf16.msra.mxu0 0
    %2673 = vmatprep.subr.bf16.mxu0 0
    %2674 = vmatpush1.bf16.msra.mxu0 0
    %2675 = vmatprep.subr.bf16.mxu0 0
    %2676 = vmatpush1.bf16.msra.mxu0 0
    %2677 = vmatprep.subr.bf16.mxu0 0
    %2678 = vmatpush1.bf16.msra.mxu0 0
    %2679 = vmatprep.subr.bf16.mxu0 0
    %2680 = vmatpush1.bf16.msra.mxu0 0
    %2681 = vmatprep.subr.bf16.mxu0 0
    %2682 = vmatpush1.bf16.msra.mxu0 0
    %2683 = vmatprep.subr.bf16.mxu0 0
    %2684 = vmatpush1.bf16.msra.mxu0 0
    %2685 = vmatprep.mubr.bf16.mxu0 0
    %2686 = vmatmul.mubr.bf16.gmra.mrb[0].mxu0 %v2651
    %v2687 = vpop.f32.mrb[0].mxu0
    %v2688 = vadd.f32 0.0, %v2687
    %v2689 = vpop.f32.mrb[0].mxu0
    %v2690 = vpop.f32.mrb[0].mxu0
    %v2691 = vpop.f32.mrb[0].mxu0
    %2692 = vdwg.mxu0
    %v2693 = vmax.f32 %v2688, 0.0
    %v2694 = vld [vmem:[%s2553] sm:$0x3]
    %2696 = vrot.lane.b32.xlu0 %v2694, 96
    %v2697 = vpop.permute.xlu0 %2696
    %v2699 = vmul.f32 %v2693, %v2697
    %2700 = vrot.lane.b32.xlu0 %v1983, 32
    %v2701 = vpop.permute.xlu0 %2700
    %v2703 = vsel %vm210, %v2699, %v2296
    %v2704 = vsel %vm530, %v2703, %v2701
    %v2705 = vld [vmem:[#allocation2] sm:$0xff]
    %v2706 = vld [vmem:[#allocation2 + $0x8] sm:$0xff]
    %v2707 = vld [vmem:[#allocation2 + $0x10] sm:$0xff]
    %v2708 = vld [vmem:[#allocation2 + $0x18] sm:$0xff]
    %v2709 = vld [vmem:[#allocation2 + $0x20] sm:$0xff]
    %v2710 = vld [vmem:[#allocation2 + $0x28] sm:$0xff]
    %v2711 = vld [vmem:[#allocation2 + $0x30] sm:$0xff]
    %v2712 = vld [vmem:[#allocation2 + $0x38] sm:$0xff]
    %v2713 = vld [vmem:[#allocation2 + $0x40] sm:$0xff]
    %v2714 = vld [vmem:[#allocation2 + $0x48] sm:$0xff]
    %v2715 = vld [vmem:[#allocation2 + $0x50] sm:$0xff]
    %v2716 = vld [vmem:[#allocation2 + $0x58] sm:$0xff]
    %v2717 = vld [vmem:[%s1] ss:$4 sm:$0x3]
    %v2718 = vpack.c.bf16 %v2704, %v2704
    %v2720 = vlaneseq
    %v2721 = vshrl.u32 %v2720, 7
    %v2722 = vsub.s32 0, %v2721
    %v2723 = vrot.slane %v2717, %v2722
    %v2724 = vlaneseq
    %v2725 = vshrl.u32 %v2724, 7
    %v2726 = vsub.s32 1, %v2725
    %v2727 = vrot.slane %v2717, %v2726
    %v2742 = vunpack.c.l.b16 %v2705
    %v2743 = vunpack.c.h.b16 %v2705
    %v2744 = vunpack.c.l.b16 %v2706
    %v2745 = vunpack.c.h.b16 %v2706
    %v2746 = vunpack.c.l.b16 %v2707
    %v2747 = vunpack.c.h.b16 %v2707
    %v2748 = vunpack.c.l.b16 %v2708
    %v2749 = vunpack.c.h.b16 %v2708
    %v2750 = vunpack.c.l.b16 %v2709
    %v2751 = vunpack.c.h.b16 %v2709
    %v2752 = vunpack.c.l.b16 %v2710
    %v2753 = vunpack.c.h.b16 %v2710
    %v2754 = vunpack.c.l.b16 %v2711
    %v2755 = vunpack.c.h.b16 %v2711
    %v2756 = vunpack.c.l.b16 %v2712
    %v2757 = vunpack.c.h.b16 %v2712
    %v2758 = vunpack.c.l.b16 %v2713
    %v2759 = vunpack.c.h.b16 %v2713
    %v2760 = vunpack.c.l.b16 %v2714
    %v2761 = vunpack.c.h.b16 %v2714
    %v2762 = vunpack.c.l.b16 %v2715
    %v2763 = vunpack.c.h.b16 %v2715
    %v2764 = vunpack.c.l.b16 %v2716
    %v2765 = vunpack.c.h.b16 %v2716
    %v2766 = vpack.c.b16 %v2744, %v2742
    %v2767 = vpack.c.b16 %v2745, %v2743
    %v2768 = vpack.c.b16 %v2748, %v2746
    %v2769 = vpack.c.b16 %v2749, %v2747
    %v2770 = vpack.c.b16 %v2752, %v2750
    %v2771 = vpack.c.b16 %v2753, %v2751
    %v2772 = vpack.c.b16 %v2756, %v2754
    %v2773 = vpack.c.b16 %v2757, %v2755
    %v2774 = vpack.c.b16 %v2760, %v2758
    %v2775 = vpack.c.b16 %v2761, %v2759
    %v2776 = vpack.c.b16 %v2764, %v2762
    %v2777 = vpack.c.b16 %v2765, %v2763
    %v2791 = vsel %vm127, %v2718, 0
    %2793 = vmatprep.subr.bf16.mxu0 %v2767
    %2794 = vmatpush1.bf16.msra.mxu0 %v2766
    %2795 = vmatprep.subr.bf16.mxu0 %v2769
    %2796 = vmatpush1.bf16.msra.mxu0 %v2768
    %2797 = vmatprep.subr.bf16.mxu0 %v2771
    %2798 = vmatpush1.bf16.msra.mxu0 %v2770
    %2799 = vmatprep.subr.bf16.mxu0 %v2773
    %2800 = vmatpush1.bf16.msra.mxu0 %v2772
    %2801 = vmatprep.subr.bf16.mxu0 %v2775
    %2802 = vmatpush1.bf16.msra.mxu0 %v2774
    %2803 = vmatprep.subr.bf16.mxu0 %v2777
    %2804 = vmatpush1.bf16.msra.mxu0 %v2776
    %2805 = vmatprep.subr.bf16.mxu0 0
    %2806 = vmatpush1.bf16.msra.mxu0 0
    %2807 = vmatprep.subr.bf16.mxu0 0
    %2808 = vmatpush1.bf16.msra.mxu0 0
    %2809 = vmatprep.subr.bf16.mxu0 0
    %2810 = vmatpush1.bf16.msra.mxu0 0
    %2811 = vmatprep.subr.bf16.mxu0 0
    %2812 = vmatpush1.bf16.msra.mxu0 0
    %2813 = vmatprep.subr.bf16.mxu0 0
    %2814 = vmatpush1.bf16.msra.mxu0 0
    %2815 = vmatprep.subr.bf16.mxu0 0
    %2816 = vmatpush1.bf16.msra.mxu0 0
    %2817 = vmatprep.subr.bf16.mxu0 0
    %2818 = vmatpush1.bf16.msra.mxu0 0
    %2819 = vmatprep.subr.bf16.mxu0 0
    %2820 = vmatpush1.bf16.msra.mxu0 0
    %2821 = vmatprep.subr.bf16.mxu0 0
    %2822 = vmatpush1.bf16.msra.mxu0 0
    %2823 = vmatprep.subr.bf16.mxu0 0
    %2824 = vmatpush1.bf16.msra.mxu0 0
    %2825 = vmatprep.mubr.bf16.mxu0 0
    %2826 = vmatmul.mubr.bf16.gmra.mrb[0].mxu0 %v2791
    %v2827 = vpop.f32.mrb[0].mxu0
    %v2828 = vadd.f32 %v2723, %v2827
    %v2829 = vpop.f32.mrb[0].mxu0
    %v2830 = vadd.f32 %v2727, %v2829
    %v2831 = vpop.f32.mrb[0].mxu0
    %v2832 = vpop.f32.mrb[0].mxu0
    %2833 = vdwg.mxu0
    %2835 = vrot.lane.b32.xlu0 %v2828, 32
    %v2836 = vpop.permute.xlu0 %2835
    %v2838 = vadd.f32 %v2828, %v2836
    %v2839 = vtanh.pop %v2838
    %v2840 = vmul.f32 %v2839, 0.5
    %v2841 = vadd.f32 %v2840, 0.5
    %2843 = vrot.lane.b32.xlu0 %v2830, 32
    %v2844 = vpop.permute.xlu0 %2843
    %v2846 = vadd.f32 %v2828, %v2844
    %v2847 = vtanh.pop %v2846
    %v2848 = vmul.f32 %v2847, 0.5
    %v2849 = vadd.f32 %v2848, 0.5
    %2850 = vrot.lane.b32.xlu0 %v2830, 96
    %v2851 = vpop.permute.xlu0 %2850
    %v2853 = vmul.f32 %v2841, %v2851
    %2855 = vrot.lane.b32.xlu0 %v2853, 64
    %v2856 = vpop.permute.xlu0 %2855
    %v2858 = vadd.f32 %v2828, %v2856
    %v2859 = vtanh.pop %v2858
    %v2860 = vsub.f32 1.0, %v2849
    %2862 = vrot.lane.b32.xlu0 %v2859, 96
    %v2863 = vpop.permute.xlu0 %2862
    %v2865 = vmul.f32 %v2860, %v2863
    %v2866 = vmul.f32 %v2849, %v1983
    %v2867 = vadd.f32 %v2865, %v2866
    %2869 = vrot.lane.b32.xlu0 %v2867, 96
    %v2870 = vpop.permute.xlu0 %2869
    %2872 = vrot.lane.b32.xlu0 %v2260, 32
    %v2873 = vpop.permute.xlu0 %2872
    %2876 = vrot.lane.b32.xlu0 %v2291, 40
    %v2877 = vpop.permute.xlu0 %2876
    %v2879 = vsel %vm210, %v2870, %v2873
    %v2880 = vsel %vm212, %v2879, %v2877
    %v2881 = vld [vmem:[#allocation2 + $0xc0] sm:$0xff]
    %v2882 = vld [vmem:[#allocation2 + $0xc8] sm:$0xff]
    %v2883 = vld [vmem:[#allocation2 + $0xd0] sm:$0xff]
    %v2884 = vld [vmem:[#allocation2 + $0xd8] sm:$0xff]
    %v2885 = vld [vmem:[#allocation2 + $0xe0] sm:$0xff]
    %v2886 = vld [vmem:[#allocation2 + $0xe8] sm:$0xff]
    %v2887 = vpack.c.bf16 %v2880, %v2880
    %v2894 = vunpack.c.l.b16 %v2881
    %v2895 = vunpack.c.h.b16 %v2881
    %v2896 = vunpack.c.l.b16 %v2882
    %v2897 = vunpack.c.h.b16 %v2882
    %v2898 = vunpack.c.l.b16 %v2883
    %v2899 = vunpack.c.h.b16 %v2883
    %v2900 = vunpack.c.l.b16 %v2884
    %v2901 = vunpack.c.h.b16 %v2884
    %v2902 = vunpack.c.l.b16 %v2885
    %v2903 = vunpack.c.h.b16 %v2885
    %v2904 = vunpack.c.l.b16 %v2886
    %v2905 = vunpack.c.h.b16 %v2886
    %v2906 = vpack.c.b16 %v2896, %v2894
    %v2907 = vpack.c.b16 %v2897, %v2895
    %v2908 = vpack.c.b16 %v2900, %v2898
    %v2909 = vpack.c.b16 %v2901, %v2899
    %v2910 = vpack.c.b16 %v2904, %v2902
    %v2911 = vpack.c.b16 %v2905, %v2903
    %v2919 = vsel %vm262, %v2887, 0
    %2921 = vmatprep.subr.bf16.mxu0 %v2907
    %2922 = vmatpush1.bf16.msra.mxu0 %v2906
    %2923 = vmatprep.subr.bf16.mxu0 %v2909
    %2924 = vmatpush1.bf16.msra.mxu0 %v2908
    %2925 = vmatprep.subr.bf16.mxu0 %v2911
    %2926 = vmatpush1.bf16.msra.mxu0 %v2910
    %2927 = vmatprep.subr.bf16.mxu0 0
    %2928 = vmatpush1.bf16.msra.mxu0 0
    %2929 = vmatprep.subr.bf16.mxu0 0
    %2930 = vmatpush1.bf16.msra.mxu0 0
    %2931 = vmatprep.subr.bf16.mxu0 0
    %2932 = vmatpush1.bf16.msra.mxu0 0
    %2933 = vmatprep.subr.bf16.mxu0 0
    %2934 = vmatpush1.bf16.msra.mxu0 0
    %2935 = vmatprep.subr.bf16.mxu0 0
    %2936 = vmatpush1.bf16.msra.mxu0 0
    %2937 = vmatprep.subr.bf16.mxu0 0
    %2938 = vmatpush1.bf16.msra.mxu0 0
    %2939 = vmatprep.subr.bf16.mxu0 0
    %2940 = vmatpush1.bf16.msra.mxu0 0
    %2941 = vmatprep.subr.bf16.mxu0 0
    %2942 = vmatpush1.bf16.msra.mxu0 0
    %2943 = vmatprep.subr.bf16.mxu0 0
    %2944 = vmatpush1.bf16.msra.mxu0 0
    %2945 = vmatprep.subr.bf16.mxu0 0
    %2946 = vmatpush1.bf16.msra.mxu0 0
    %2947 = vmatprep.subr.bf16.mxu0 0
    %2948 = vmatpush1.bf16.msra.mxu0 0
    %2949 = vmatprep.subr.bf16.mxu0 0
    %2950 = vmatpush1.bf16.msra.mxu0 0
    %2951 = vmatprep.subr.bf16.mxu0 0
    %2952 = vmatpush1.bf16.msra.mxu0 0
    %2953 = vmatprep.mubr.bf16.mxu0 0
    %2954 = vmatmul.mubr.bf16.gmra.mrb[0].mxu0 %v2919
    %v2955 = vpop.f32.mrb[0].mxu0
    %v2956 = vadd.f32 %v258, %v2955
    %v2957 = vpop.f32.mrb[0].mxu0
    %v2958 = vadd.f32 %v259, %v2957
    %v2959 = vpop.f32.mrb[0].mxu0
    %v2960 = vpop.f32.mrb[0].mxu0
    %2961 = vdwg.mxu0
    %v2962 = vtanh.pop %v2956
    %v2963 = vtanh.pop %v2958
    %v2964 = vld [vmem:[#allocation2 + $0xf0] sm:$0xf]
    %v2965 = vld [vmem:[#allocation2 + $0xf8] sm:$0xf]
    %v2966 = vld [vmem:[#allocation2 + $0x100] sm:$0xf]
    %v2967 = vld [vmem:[#allocation2 + $0x108] sm:$0xf]
    %v2968 = vld [vmem:[#allocation2 + $0x110] sm:$0xf]
    %v2969 = vld [vmem:[#allocation2 + $0x118] sm:$0xf]
    %v2970 = vld [vmem:[#allocation2 + $0x120] sm:$0xf]
    %v2971 = vld [vmem:[#allocation2 + $0x128] sm:$0xf]
    %v2972 = vld [vmem:[#allocation2 + $0x130] sm:$0xf]
    %v2973 = vld [vmem:[#allocation2 + $0x138] sm:$0xf]
    %v2974 = vld [vmem:[#allocation2 + $0x140] sm:$0xf]
    %v2975 = vld [vmem:[#allocation2 + $0x148] sm:$0xf]
    %v2976 = vld [vmem:[#allocation2 + $0x150] sm:$0xf]
    %v2977 = vld [vmem:[#allocation2 + $0x158] sm:$0xf]
    %v2978 = vld [vmem:[#allocation2 + $0x160] sm:$0xf]
    %v2979 = vld [vmem:[#allocation2 + $0x168] sm:$0xf]
    %v2980 = vld [vmem:[#allocation2 + $0x170] sm:$0xf]
    %v2981 = vld [vmem:[#allocation2 + $0x178] sm:$0xf]
    %v2982 = vld [vmem:[#allocation2 + $0x180] sm:$0xf]
    %v2983 = vld [vmem:[#allocation2 + $0x188] sm:$0xf]
    %v2984 = vld [vmem:[#allocation2 + $0x190] sm:$0xf]
    %v2985 = vld [vmem:[#allocation2 + $0x198] sm:$0xf]
    %v2986 = vld [vmem:[#allocation2 + $0x1a0] sm:$0xf]
    %v2987 = vld [vmem:[#allocation2 + $0x1a8] sm:$0xf]
    %v2988 = vld [vmem:[#allocation2 + $0x1b0] sm:$0xf]
    %v2989 = vld [vmem:[#allocation2 + $0x1b8] sm:$0xf]
    %v2990 = vld [vmem:[#allocation2 + $0x1c0] sm:$0xf]
    %v2991 = vld [vmem:[#allocation2 + $0x1c8] sm:$0xf]
    %v2992 = vld [vmem:[#allocation2 + $0x1d0] sm:$0xf]
    %v2993 = vld [vmem:[#allocation2 + $0x1d8] sm:$0xf]
    %v2994 = vld [vmem:[#allocation2 + $0x1e0] sm:$0xf]
    %v2995 = vld [vmem:[#allocation2 + $0x1e8] sm:$0xf]
    %v2996 = vpack.c.bf16 %v2962, %v2962
    %v2997 = vpack.c.bf16 %v2963, %v2963
    %v3030 = vunpack.c.l.b16 %v2964
    %v3031 = vunpack.c.l.b16 %v2965
    %v3032 = vunpack.c.l.b16 %v2966
    %v3033 = vunpack.c.l.b16 %v2967
    %v3034 = vunpack.c.l.b16 %v2968
    %v3035 = vunpack.c.l.b16 %v2969
    %v3036 = vunpack.c.l.b16 %v2970
    %v3037 = vunpack.c.l.b16 %v2971
    %v3038 = vunpack.c.l.b16 %v2972
    %v3039 = vunpack.c.l.b16 %v2973
    %v3040 = vunpack.c.l.b16 %v2974
    %v3041 = vunpack.c.l.b16 %v2975
    %v3042 = vunpack.c.l.b16 %v2976
    %v3043 = vunpack.c.l.b16 %v2977
    %v3044 = vunpack.c.l.b16 %v2978
    %v3045 = vunpack.c.l.b16 %v2979
    %v3046 = vunpack.c.l.b16 %v2980
    %v3047 = vunpack.c.l.b16 %v2981
    %v3048 = vunpack.c.l.b16 %v2982
    %v3049 = vunpack.c.l.b16 %v2983
    %v3050 = vunpack.c.l.b16 %v2984
    %v3051 = vunpack.c.l.b16 %v2985
    %v3052 = vunpack.c.l.b16 %v2986
    %v3053 = vunpack.c.l.b16 %v2987
    %v3054 = vunpack.c.l.b16 %v2988
    %v3055 = vunpack.c.l.b16 %v2989
    %v3056 = vunpack.c.l.b16 %v2990
    %v3057 = vunpack.c.l.b16 %v2991
    %v3058 = vunpack.c.l.b16 %v2992
    %v3059 = vunpack.c.l.b16 %v2993
    %v3060 = vunpack.c.l.b16 %v2994
    %v3061 = vunpack.c.l.b16 %v2995
    %v3062 = vpack.c.b16 %v3031, %v3030
    %v3063 = vpack.c.b16 %v3033, %v3032
    %v3064 = vpack.c.b16 %v3035, %v3034
    %v3065 = vpack.c.b16 %v3037, %v3036
    %v3066 = vpack.c.b16 %v3039, %v3038
    %v3067 = vpack.c.b16 %v3041, %v3040
    %v3068 = vpack.c.b16 %v3043, %v3042
    %v3069 = vpack.c.b16 %v3045, %v3044
    %v3070 = vpack.c.b16 %v3047, %v3046
    %v3071 = vpack.c.b16 %v3049, %v3048
    %v3072 = vpack.c.b16 %v3051, %v3050
    %v3073 = vpack.c.b16 %v3053, %v3052
    %v3074 = vpack.c.b16 %v3055, %v3054
    %v3075 = vpack.c.b16 %v3057, %v3056
    %v3076 = vpack.c.b16 %v3059, %v3058
    %v3077 = vpack.c.b16 %v3061, %v3060
    %3094 = vmatprep.subr.bf16.mxu0 0
    %3095 = vmatpush1.bf16.msra.mxu0 %v3062
    %3096 = vmatprep.subr.bf16.mxu0 0
    %3097 = vmatpush1.bf16.msra.mxu0 %v3063
    %3098 = vmatprep.subr.bf16.mxu0 0
    %3099 = vmatpush1.bf16.msra.mxu0 %v3064
    %3100 = vmatprep.subr.bf16.mxu0 0
    %3101 = vmatpush1.bf16.msra.mxu0 %v3065
    %3102 = vmatprep.subr.bf16.mxu0 0
    %3103 = vmatpush1.bf16.msra.mxu0 %v3066
    %3104 = vmatprep.subr.bf16.mxu0 0
    %3105 = vmatpush1.bf16.msra.mxu0 %v3067
    %3106 = vmatprep.subr.bf16.mxu0 0
    %3107 = vmatpush1.bf16.msra.mxu0 %v3068
    %3108 = vmatprep.subr.bf16.mxu0 0
    %3109 = vmatpush1.bf16.msra.mxu0 %v3069
    %3110 = vmatprep.subr.bf16.mxu0 0
    %3111 = vmatpush1.bf16.msra.mxu0 %v3070
    %3112 = vmatprep.subr.bf16.mxu0 0
    %3113 = vmatpush1.bf16.msra.mxu0 %v3071
    %3114 = vmatprep.subr.bf16.mxu0 0
    %3115 = vmatpush1.bf16.msra.mxu0 %v3072
    %3116 = vmatprep.subr.bf16.mxu0 0
    %3117 = vmatpush1.bf16.msra.mxu0 %v3073
    %3118 = vmatprep.subr.bf16.mxu0 0
    %3119 = vmatpush1.bf16.msra.mxu0 %v3074
    %3120 = vmatprep.subr.bf16.mxu0 0
    %3121 = vmatpush1.bf16.msra.mxu0 %v3075
    %3122 = vmatprep.subr.bf16.mxu0 0
    %3123 = vmatpush1.bf16.msra.mxu0 %v3076
    %3124 = vmatprep.subr.bf16.mxu0 0
    %3125 = vmatpush1.bf16.msra.mxu0 %v3077
    %3126 = vmatprep.mubr.bf16.mxu0 %v2997
    %3127 = vmatmul.mubr.bf16.gmra.mrb[0].mxu0 %v2996
    %v3128 = vpop.f32.mrb[0].mxu0
    %v3129 = vadd.f32 %v39, %v3128
    %v3130 = vpop.f32.mrb[0].mxu0
    %v3131 = vpop.f32.mrb[0].mxu0
    %v3132 = vpop.f32.mrb[0].mxu0
    %3133 = vdwg.mxu0
    %v3134 = vsel %vm479, %v3129, -inf
    %3135 = vmax.xlane.f32.xlu0 %v3134
    %v3136 = vpop.xlane.xlu0 %3135
    %v3137 = vsub.f32 %v3129, %v3136
    %v3138 = vmul.f32 %v3137, 1.442695
    %v3139 = vpow.pop %v3138
    %v3140 = vsel %vm479, %v3139, 0.0
    %3141 = vadd.xlane.f32.xlu0 %v3140
    %v3142 = vpop.xlane.xlu0 %3141
    %v3143 = vrcp.pop %v3142
    %v3144 = vmul.f32 %v3139, %v3143
    %v3145 = vlaneseq
    %v3146 = vshrl.u32 %v3145, 7
    %v3147 = vsub.s32 0, %v3146
    %v3148 = vrot.slane %v3144, %v3147
    %3150 = vbcast.lane.b32.xlu0 %v3148, 256
    %v3151 = vpop.permute.xlu0 %3150
    %v3152 = vlaneseq
    %v3153 = vshrl.u32 %v3152, 7
    %v3154 = vsub.s32 1, %v3153
    %v3155 = vrot.slane %v3144, %v3154
    %3157 = vbcast.lane.b32.xlu0 %v3155, 256
    %v3158 = vpop.permute.xlu0 %3157
    %v3159 = vmul.f32 %v3151, %v40
    %v3160 = vmul.f32 %v3158, %v41
    %v3161 = vsel %vm210, %v3159, 0.0
    %v3162 = vrot.slane %v3161, 4
    %v3163 = vadd.f32 %v3161, %v3162
    %v3164 = vrot.slane %v3163, 2
    %v3165 = vadd.f32 %v3163, %v3164
    %v3166 = vrot.slane %v3165, 1
    %v3167 = vadd.f32 %v3165, %v3166
    %v3168 = vsel %vm210, %v3160, 0.0
    %v3169 = vrot.slane %v3168, 4
    %v3170 = vadd.f32 %v3168, %v3169
    %v3171 = vrot.slane %v3170, 2
    %v3172 = vadd.f32 %v3170, %v3171
    %v3173 = vrot.slane %v3172, 1
    %v3174 = vadd.f32 %v3172, %v3173
    %v3175 = vadd.f32 %v2291, %v3144
    %v3178 = vsel %vm524, %v3174, %v3167
    %3179 = vrot.lane.b32.xlu0 %v3178, 32
    %v3180 = vpop.permute.xlu0 %3179
    %3182 = vrot.lane.b32.xlu0 %v2465, 32
    %v3183 = vpop.permute.xlu0 %3182
    %v3185 = vsel %vm210, %v2870, %v3180
    %v3186 = vsel %vm530, %v3185, %v3183
    %v3187 = vld [vmem:[#allocation2 + $0x60] sm:$0xff]
    %v3188 = vld [vmem:[#allocation2 + $0x68] sm:$0xff]
    %v3189 = vld [vmem:[#allocation2 + $0x70] sm:$0xff]
    %v3190 = vld [vmem:[#allocation2 + $0x78] sm:$0xff]
    %v3191 = vld [vmem:[#allocation2 + $0x80] sm:$0xff]
    %v3192 = vld [vmem:[#allocation2 + $0x88] sm:$0xff]
    %v3193 = vld [vmem:[#allocation2 + $0x90] sm:$0xff]
    %v3194 = vld [vmem:[#allocation2 + $0x98] sm:$0xff]
    %v3195 = vld [vmem:[#allocation2 + $0xa0] sm:$0xff]
    %v3196 = vld [vmem:[#allocation2 + $0xa8] sm:$0xff]
    %v3197 = vld [vmem:[#allocation2 + $0xb0] sm:$0xff]
    %v3198 = vld [vmem:[#allocation2 + $0xb8] sm:$0xff]
    %v3199 = vld [vmem:[%s544] ss:$4 sm:$0x3]
    %v3200 = vpack.c.bf16 %v3186, %v3186
    %v3202 = vlaneseq
    %v3203 = vshrl.u32 %v3202, 7
    %v3204 = vsub.s32 0, %v3203
    %v3205 = vrot.slane %v3199, %v3204
    %v3206 = vlaneseq
    %v3207 = vshrl.u32 %v3206, 7
    %v3208 = vsub.s32 1, %v3207
    %v3209 = vrot.slane %v3199, %v3208
    %v3224 = vunpack.c.l.b16 %v3187
    %v3225 = vunpack.c.h.b16 %v3187
    %v3226 = vunpack.c.l.b16 %v3188
    %v3227 = vunpack.c.h.b16 %v3188
    %v3228 = vunpack.c.l.b16 %v3189
    %v3229 = vunpack.c.h.b16 %v3189
    %v3230 = vunpack.c.l.b16 %v3190
    %v3231 = vunpack.c.h.b16 %v3190
    %v3232 = vunpack.c.l.b16 %v3191
    %v3233 = vunpack.c.h.b16 %v3191
    %v3234 = vunpack.c.l.b16 %v3192
    %v3235 = vunpack.c.h.b16 %v3192
    %v3236 = vunpack.c.l.b16 %v3193
    %v3237 = vunpack.c.h.b16 %v3193
    %v3238 = vunpack.c.l.b16 %v3194
    %v3239 = vunpack.c.h.b16 %v3194
    %v3240 = vunpack.c.l.b16 %v3195
    %v3241 = vunpack.c.h.b16 %v3195
    %v3242 = vunpack.c.l.b16 %v3196
    %v3243 = vunpack.c.h.b16 %v3196
    %v3244 = vunpack.c.l.b16 %v3197
    %v3245 = vunpack.c.h.b16 %v3197
    %v3246 = vunpack.c.l.b16 %v3198
    %v3247 = vunpack.c.h.b16 %v3198
    %v3248 = vpack.c.b16 %v3226, %v3224
    %v3249 = vpack.c.b16 %v3227, %v3225
    %v3250 = vpack.c.b16 %v3230, %v3228
    %v3251 = vpack.c.b16 %v3231, %v3229
    %v3252 = vpack.c.b16 %v3234, %v3232
    %v3253 = vpack.c.b16 %v3235, %v3233
    %v3254 = vpack.c.b16 %v3238, %v3236
    %v3255 = vpack.c.b16 %v3239, %v3237
    %v3256 = vpack.c.b16 %v3242, %v3240
    %v3257 = vpack.c.b16 %v3243, %v3241
    %v3258 = vpack.c.b16 %v3246, %v3244
    %v3259 = vpack.c.b16 %v3247, %v3245
    %v3273 = vsel %vm127, %v3200, 0
    %3275 = vmatprep.subr.bf16.mxu0 %v3249
    %3276 = vmatpush1.bf16.msra.mxu0 %v3248
    %3277 = vmatprep.subr.bf16.mxu0 %v3251
    %3278 = vmatpush1.bf16.msra.mxu0 %v3250
    %3279 = vmatprep.subr.bf16.mxu0 %v3253
    %3280 = vmatpush1.bf16.msra.mxu0 %v3252
    %3281 = vmatprep.subr.bf16.mxu0 %v3255
    %3282 = vmatpush1.bf16.msra.mxu0 %v3254
    %3283 = vmatprep.subr.bf16.mxu0 %v3257
    %3284 = vmatpush1.bf16.msra.mxu0 %v3256
    %3285 = vmatprep.subr.bf16.mxu0 %v3259
    %3286 = vmatpush1.bf16.msra.mxu0 %v3258
    %3287 = vmatprep.subr.bf16.mxu0 0
    %3288 = vmatpush1.bf16.msra.mxu0 0
    %3289 = vmatprep.subr.bf16.mxu0 0
    %3290 = vmatpush1.bf16.msra.mxu0 0
    %3291 = vmatprep.subr.bf16.mxu0 0
    %3292 = vmatpush1.bf16.msra.mxu0 0
    %3293 = vmatprep.subr.bf16.mxu0 0
    %3294 = vmatpush1.bf16.msra.mxu0 0
    %3295 = vmatprep.subr.bf16.mxu0 0
    %3296 = vmatpush1.bf16.msra.mxu0 0
    %3297 = vmatprep.subr.bf16.mxu0 0
    %3298 = vmatpush1.bf16.msra.mxu0 0
    %3299 = vmatprep.subr.bf16.mxu0 0
    %3300 = vmatpush1.bf16.msra.mxu0 0
    %3301 = vmatprep.subr.bf16.mxu0 0
    %3302 = vmatpush1.bf16.msra.mxu0 0
    %3303 = vmatprep.subr.bf16.mxu0 0
    %3304 = vmatpush1.bf16.msra.mxu0 0
    %3305 = vmatprep.subr.bf16.mxu0 0
    %3306 = vmatpush1.bf16.msra.mxu0 0
    %3307 = vmatprep.mubr.bf16.mxu0 0
    %3308 = vmatmul.mubr.bf16.gmra.mrb[0].mxu0 %v3273
    %v3309 = vpop.f32.mrb[0].mxu0
    %v3310 = vadd.f32 %v3205, %v3309
    %v3311 = vpop.f32.mrb[0].mxu0
    %v3312 = vadd.f32 %v3209, %v3311
    %v3313 = vpop.f32.mrb[0].mxu0
    %v3314 = vpop.f32.mrb[0].mxu0
    %3315 = vdwg.mxu0
    %3317 = vrot.lane.b32.xlu0 %v3310, 32
    %v3318 = vpop.permute.xlu0 %3317
    %v3320 = vadd.f32 %v3310, %v3318
    %v3321 = vtanh.pop %v3320
    %v3322 = vmul.f32 %v3321, 0.5
    %v3323 = vadd.f32 %v3322, 0.5
    %3325 = vrot.lane.b32.xlu0 %v3312, 32
    %v3326 = vpop.permute.xlu0 %3325
    %v3328 = vadd.f32 %v3310, %v3326
    %v3329 = vtanh.pop %v3328
    %v3330 = vmul.f32 %v3329, 0.5
    %v3331 = vadd.f32 %v3330, 0.5
    %3332 = vrot.lane.b32.xlu0 %v3312, 96
    %v3333 = vpop.permute.xlu0 %3332
    %v3335 = vmul.f32 %v3323, %v3333
    %3337 = vrot.lane.b32.xlu0 %v3335, 64
    %v3338 = vpop.permute.xlu0 %3337
    %v3340 = vadd.f32 %v3310, %v3338
    %v3341 = vtanh.pop %v3340
    %v3342 = vsub.f32 1.0, %v3331
    %3344 = vrot.lane.b32.xlu0 %v3341, 96
    %v3345 = vpop.permute.xlu0 %3344
    %v3347 = vmul.f32 %v3342, %v3345
    %v3348 = vmul.f32 %v3331, %v2465
    %v3349 = vadd.f32 %v3347, %v3348
    %v3350 = vld [vmem:[#allocation2 + $0x1f0] sm:$0xf]
    %v3351 = vld [vmem:[#allocation2 + $0x1f8] sm:$0xf]
    %v3352 = vld [vmem:[#allocation2 + $0x200] sm:$0xf]
    %v3353 = vld [vmem:[#allocation2 + $0x208] sm:$0xf]
    %v3354 = vld [vmem:[#allocation2 + $0x210] sm:$0xf]
    %v3355 = vld [vmem:[#allocation2 + $0x218] sm:$0xf]
    %v3356 = vld [vmem:[#allocation2 + $0x220] sm:$0xf]
    %v3357 = vld [vmem:[#allocation2 + $0x228] sm:$0xf]
    %v3358 = vld [vmem:[%s1 + $0x2] sm:$0x1]
    %3360 = vrot.lane.b32.xlu0 %v3349, 96
    %v3361 = vpop.permute.xlu0 %3360
    %v3363 = vsel %vm210, %v3361, %v3180
    %v3364 = vpack.c.bf16 %v3363, %v3363
    %v3365 = vlaneseq
    %v3366 = vshrl.u32 %v3365, 7
    %v3367 = vsub.s32 0, %v3366
    %v3368 = vrot.slane %v3358, %v3367
    %v3377 = vunpack.c.l.b16 %v3350
    %v3378 = vunpack.c.l.b16 %v3351
    %v3379 = vunpack.c.l.b16 %v3352
    %v3380 = vunpack.c.l.b16 %v3353
    %v3381 = vunpack.c.l.b16 %v3354
    %v3382 = vunpack.c.l.b16 %v3355
    %v3383 = vunpack.c.l.b16 %v3356
    %v3384 = vunpack.c.l.b16 %v3357
    %v3385 = vpack.c.b16 %v3378, %v3377
    %v3386 = vpack.c.b16 %v3380, %v3379
    %v3387 = vpack.c.b16 %v3382, %v3381
    %v3388 = vpack.c.b16 %v3384, %v3383
    %v3394 = vsel %vm530, %v3364, 0
    %3396 = vmatprep.subr.bf16.mxu0 0
    %3397 = vmatpush1.bf16.msra.mxu0 %v3385
    %3398 = vmatprep.subr.bf16.mxu0 0
    %3399 = vmatpush1.bf16.msra.mxu0 %v3386
    %3400 = vmatprep.subr.bf16.mxu0 0
    %3401 = vmatpush1.bf16.msra.mxu0 %v3387
    %3402 = vmatprep.subr.bf16.mxu0 0
    %3403 = vmatpush1.bf16.msra.mxu0 %v3388
    %3404 = vmatprep.subr.bf16.mxu0 0
    %3405 = vmatpush1.bf16.msra.mxu0 0
    %3406 = vmatprep.subr.bf16.mxu0 0
    %3407 = vmatpush1.bf16.msra.mxu0 0
    %3408 = vmatprep.subr.bf16.mxu0 0
    %3409 = vmatpush1.bf16.msra.mxu0 0
    %3410 = vmatprep.subr.bf16.mxu0 0
    %3411 = vmatpush1.bf16.msra.mxu0 0
    %3412 = vmatprep.subr.bf16.mxu0 0
    %3413 = vmatpush1.bf16.msra.mxu0 0
    %3414 = vmatprep.subr.bf16.mxu0 0
    %3415 = vmatpush1.bf16.msra.mxu0 0
    %3416 = vmatprep.subr.bf16.mxu0 0
    %3417 = vmatpush1.bf16.msra.mxu0 0
    %3418 = vmatprep.subr.bf16.mxu0 0
    %3419 = vmatpush1.bf16.msra.mxu0 0
    %3420 = vmatprep.subr.bf16.mxu0 0
    %3421 = vmatpush1.bf16.msra.mxu0 0
    %3422 = vmatprep.subr.bf16.mxu0 0
    %3423 = vmatpush1.bf16.msra.mxu0 0
    %3424 = vmatprep.subr.bf16.mxu0 0
    %3425 = vmatpush1.bf16.msra.mxu0 0
    %3426 = vmatprep.subr.bf16.mxu0 0
    %3427 = vmatpush1.bf16.msra.mxu0 0
    %3428 = vmatprep.mubr.bf16.mxu0 0
    %3429 = vmatmul.mubr.bf16.gmra.mrb[0].mxu0 %v3394
    %v3430 = vpop.f32.mrb[0].mxu0
    %v3431 = vadd.f32 %v3368, %v3430
    %v3432 = vpop.f32.mrb[0].mxu0
    %v3433 = vpop.f32.mrb[0].mxu0
    %v3434 = vpop.f32.mrb[0].mxu0
    %3435 = vdwg.mxu0
    %v3436 = vmax.f32 %v3431, 0.0
    %s3437 = scalar_lea.vmem %s4, 6
    %v3438 = vld [vmem:[%s3437] sm:$0x3]
    %3440 = vrot.lane.b32.xlu0 %v3438, 33
    %v3441 = vpop.permute.xlu0 %3440
    %v3443 = vmul.f32 %v3436, %v3441
    %v3446 = vunpack.c.l.s4 1966171168
    %v3447 = vunpack.c.0.s8 %v3446
    %v3448 = vlaneseq
    %v3449 = vshrl.u32 %v3448, 7
    %v3450 = vsub.s32 %v3447, %v3449
    %v3451 = vrot.slane %v3431, %v3450
    %v3452 = vcombine.high %v3451, %v3451
    %v3454 = vunpack.c.l.s4 1966171168
    %v3455 = vunpack.c.0.s8 %v3454
    %v3456 = vlaneseq
    %v3457 = vshrl.u32 %v3456, 7
    %v3458 = vsub.s32 %v3455, %v3457
    %v3459 = vrot.slane %v3451, %v3458
    %v3461 = vunpack.c.l.s4 1966171168
    %v3462 = vunpack.c.0.s8 %v3461
    %v3463 = vlaneseq
    %v3464 = vshrl.u32 %v3463, 7
    %v3465 = vsub.s32 %v3462, %v3464
    %v3466 = vrot.slane %v3452, %v3465
    %3469 = vst.msk [vmem:[%s5 + $0x3] sm:$0x1] %vm814, %v3459
    %3470 = vst.msk [vmem:[%s5 + $0xb] sm:$0x1] %vm814, %v3466
    %v3473 = vunpack.c.l.s4 1966171168
    %v3474 = vunpack.c.0.s8 %v3473
    %v3475 = vlaneseq
    %v3476 = vshrl.u32 %v3475, 7
    %v3477 = vsub.s32 %v3474, %v3476
    %v3478 = vrot.slane %v3144, %v3477
    %v3479 = vcombine.high %v3478, %v3478
    %v3481 = vunpack.c.l.s4 1966171168
    %v3482 = vunpack.c.0.s8 %v3481
    %v3483 = vlaneseq
    %v3484 = vshrl.u32 %v3483, 7
    %v3485 = vsub.s32 %v3482, %v3484
    %v3486 = vrot.slane %v3478, %v3485
    %v3488 = vunpack.c.l.s4 1966171168
    %v3489 = vunpack.c.0.s8 %v3488
    %v3490 = vlaneseq
    %v3491 = vshrl.u32 %v3490, 7
    %v3492 = vsub.s32 %v3489, %v3491
    %v3493 = vrot.slane %v3479, %v3492
    %3496 = vst.msk [vmem:[%s6 + $0x3] sm:$0x1] %vm842, %v3486
    %3497 = vst.msk [vmem:[%s6 + $0xb] sm:$0x1] %vm842, %v3493
    %v3498 = vlaneseq
    %v3499 = vshrl.u32 %v3498, 7
    %v3500 = vsub.s32 0, %v3499
    %v3501 = vrot.slane %v3459, %v3500
    %v3502 = vlaneseq
    %v3503 = vshrl.u32 %v3502, 7
    %v3504 = vsub.s32 0, %v3503
    %v3505 = vrot.slane %v3466, %v3504
    %3506 = vrot.lane.b32.xlu0 %v3501, 96
    %v3507 = vpop.permute.xlu0 %3506
    %3508 = vrot.lane.b32.xlu0 %v3505, 96
    %v3509 = vpop.permute.xlu0 %3508
    %3512 = vst.msk [vmem:[%s7 + $0x3] sm:$0x1] %vm859, %v3507
    %3513 = vst.msk [vmem:[%s7 + $0xb] sm:$0x1] %vm859, %v3509
    %v3514 = vld [vmem:[#allocation2 + $0x230] sm:$0xf]
    %v3515 = vld [vmem:[#allocation2 + $0x238] sm:$0xf]
    %v3516 = vld [vmem:[#allocation2 + $0x240] sm:$0xf]
    %v3517 = vld [vmem:[#allocation2 + $0x248] sm:$0xf]
    %v3518 = vpack.c.bf16 %v3443, %v3443
    %3520 = vrot.lane.b32.xlu0 %v3518, 95
    %v3521 = vpop.permute.xlu0 %3520
    %v3526 = vunpack.c.l.b16 %v3514
    %v3527 = vunpack.c.l.b16 %v3515
    %v3528 = vunpack.c.l.b16 %v3516
    %v3529 = vunpack.c.l.b16 %v3517
    %v3530 = vpack.c.b16 %v3527, %v3526
    %v3531 = vpack.c.b16 %v3529, %v3528
    %v3535 = vsel %vm210, %v3521, 0
    %3537 = vmatprep.subr.bf16.mxu0 0
    %3538 = vmatpush1.bf16.msra.mxu0 %v3530
    %3539 = vmatprep.subr.bf16.mxu0 0
    %3540 = vmatpush1.bf16.msra.mxu0 %v3531
    %3541 = vmatprep.subr.bf16.mxu0 0
    %3542 = vmatpush1.bf16.msra.mxu0 0
    %3543 = vmatprep.subr.bf16.mxu0 0
    %3544 = vmatpush1.bf16.msra.mxu0 0
    %3545 = vmatprep.subr.bf16.mxu0 0
    %3546 = vmatpush1.bf16.msra.mxu0 0
    %3547 = vmatprep.subr.bf16.mxu0 0
    %3548 = vmatpush1.bf16.msra.mxu0 0
    %3549 = vmatprep.subr.bf16.mxu0 0
    %3550 = vmatpush1.bf16.msra.mxu0 0
    %3551 = vmatprep.subr.bf16.mxu0 0
    %3552 = vmatpush1.bf16.msra.mxu0 0
    %3553 = vmatprep.subr.bf16.mxu0 0
    %3554 = vmatpush1.bf16.msra.mxu0 0
    %3555 = vmatprep.subr.bf16.mxu0 0
    %3556 = vmatpush1.bf16.msra.mxu0 0
    %3557 = vmatprep.subr.bf16.mxu0 0
    %3558 = vmatpush1.bf16.msra.mxu0 0
    %3559 = vmatprep.subr.bf16.mxu0 0
    %3560 = vmatpush1.bf16.msra.mxu0 0
    %3561 = vmatprep.subr.bf16.mxu0 0
    %3562 = vmatpush1.bf16.msra.mxu0 0
    %3563 = vmatprep.subr.bf16.mxu0 0
    %3564 = vmatpush1.bf16.msra.mxu0 0
    %3565 = vmatprep.subr.bf16.mxu0 0
    %3566 = vmatpush1.bf16.msra.mxu0 0
    %3567 = vmatprep.subr.bf16.mxu0 0
    %3568 = vmatpush1.bf16.msra.mxu0 0
    %3569 = vmatprep.mubr.bf16.mxu0 0
    %3570 = vmatmul.mubr.bf16.gmra.mrb[0].mxu0 %v3535
    %v3571 = vpop.f32.mrb[0].mxu0
    %v3572 = vadd.f32 0.0, %v3571
    %v3573 = vpop.f32.mrb[0].mxu0
    %v3574 = vpop.f32.mrb[0].mxu0
    %v3575 = vpop.f32.mrb[0].mxu0
    %3576 = vdwg.mxu0
    %v3577 = vmax.f32 %v3572, 0.0
    %v3578 = vld [vmem:[%s3437] sm:$0x3]
    %3580 = vrot.lane.b32.xlu0 %v3578, 96
    %v3581 = vpop.permute.xlu0 %3580
    %v3583 = vmul.f32 %v3577, %v3581
    %3584 = vrot.lane.b32.xlu0 %v2867, 32
    %v3585 = vpop.permute.xlu0 %3584
    %v3587 = vsel %vm210, %v3583, %v3180
    %v3588 = vsel %vm530, %v3587, %v3585
    %v3589 = vld [vmem:[#allocation2] sm:$0xff]
    %v3590 = vld [vmem:[#allocation2 + $0x8] sm:$0xff]
    %v3591 = vld [vmem:[#allocation2 + $0x10] sm:$0xff]
    %v3592 = vld [vmem:[#allocation2 + $0x18] sm:$0xff]
    %v3593 = vld [vmem:[#allocation2 + $0x20] sm:$0xff]
    %v3594 = vld [vmem:[#allocation2 + $0x28] sm:$0xff]
    %v3595 = vld [vmem:[#allocation2 + $0x30] sm:$0xff]
    %v3596 = vld [vmem:[#allocation2 + $0x38] sm:$0xff]
    %v3597 = vld [vmem:[#allocation2 + $0x40] sm:$0xff]
    %v3598 = vld [vmem:[#allocation2 + $0x48] sm:$0xff]
    %v3599 = vld [vmem:[#allocation2 + $0x50] sm:$0xff]
    %v3600 = vld [vmem:[#allocation2 + $0x58] sm:$0xff]
    %v3601 = vld [vmem:[%s1] ss:$4 sm:$0x3]
    %v3602 = vpack.c.bf16 %v3588, %v3588
    %v3604 = vlaneseq
    %v3605 = vshrl.u32 %v3604, 7
    %v3606 = vsub.s32 0, %v3605
    %v3607 = vrot.slane %v3601, %v3606
    %v3608 = vlaneseq
    %v3609 = vshrl.u32 %v3608, 7
    %v3610 = vsub.s32 1, %v3609
    %v3611 = vrot.slane %v3601, %v3610
    %v3626 = vunpack.c.l.b16 %v3589
    %v3627 = vunpack.c.h.b16 %v3589
    %v3628 = vunpack.c.l.b16 %v3590
    %v3629 = vunpack.c.h.b16 %v3590
    %v3630 = vunpack.c.l.b16 %v3591
    %v3631 = vunpack.c.h.b16 %v3591
    %v3632 = vunpack.c.l.b16 %v3592
    %v3633 = vunpack.c.h.b16 %v3592
    %v3634 = vunpack.c.l.b16 %v3593
    %v3635 = vunpack.c.h.b16 %v3593
    %v3636 = vunpack.c.l.b16 %v3594
    %v3637 = vunpack.c.h.b16 %v3594
    %v3638 = vunpack.c.l.b16 %v3595
    %v3639 = vunpack.c.h.b16 %v3595
    %v3640 = vunpack.c.l.b16 %v3596
    %v3641 = vunpack.c.h.b16 %v3596
    %v3642 = vunpack.c.l.b16 %v3597
    %v3643 = vunpack.c.h.b16 %v3597
    %v3644 = vunpack.c.l.b16 %v3598
    %v3645 = vunpack.c.h.b16 %v3598
    %v3646 = vunpack.c.l.b16 %v3599
    %v3647 = vunpack.c.h.b16 %v3599
    %v3648 = vunpack.c.l.b16 %v3600
    %v3649 = vunpack.c.h.b16 %v3600
    %v3650 = vpack.c.b16 %v3628, %v3626
    %v3651 = vpack.c.b16 %v3629, %v3627
    %v3652 = vpack.c.b16 %v3632, %v3630
    %v3653 = vpack.c.b16 %v3633, %v3631
    %v3654 = vpack.c.b16 %v3636, %v3634
    %v3655 = vpack.c.b16 %v3637, %v3635
    %v3656 = vpack.c.b16 %v3640, %v3638
    %v3657 = vpack.c.b16 %v3641, %v3639
    %v3658 = vpack.c.b16 %v3644, %v3642
    %v3659 = vpack.c.b16 %v3645, %v3643
    %v3660 = vpack.c.b16 %v3648, %v3646
    %v3661 = vpack.c.b16 %v3649, %v3647
    %v3675 = vsel %vm127, %v3602, 0
    %3677 = vmatprep.subr.bf16.mxu0 %v3651
    %3678 = vmatpush1.bf16.msra.mxu0 %v3650
    %3679 = vmatprep.subr.bf16.mxu0 %v3653
    %3680 = vmatpush1.bf16.msra.mxu0 %v3652
    %3681 = vmatprep.subr.bf16.mxu0 %v3655
    %3682 = vmatpush1.bf16.msra.mxu0 %v3654
    %3683 = vmatprep.subr.bf16.mxu0 %v3657
    %3684 = vmatpush1.bf16.msra.mxu0 %v3656
    %3685 = vmatprep.subr.bf16.mxu0 %v3659
    %3686 = vmatpush1.bf16.msra.mxu0 %v3658
    %3687 = vmatprep.subr.bf16.mxu0 %v3661
    %3688 = vmatpush1.bf16.msra.mxu0 %v3660
    %3689 = vmatprep.subr.bf16.mxu0 0
    %3690 = vmatpush1.bf16.msra.mxu0 0
    %3691 = vmatprep.subr.bf16.mxu0 0
    %3692 = vmatpush1.bf16.msra.mxu0 0
    %3693 = vmatprep.subr.bf16.mxu0 0
    %3694 = vmatpush1.bf16.msra.mxu0 0
    %3695 = vmatprep.subr.bf16.mxu0 0
    %3696 = vmatpush1.bf16.msra.mxu0 0
    %3697 = vmatprep.subr.bf16.mxu0 0
    %3698 = vmatpush1.bf16.msra.mxu0 0
    %3699 = vmatprep.subr.bf16.mxu0 0
    %3700 = vmatpush1.bf16.msra.mxu0 0
    %3701 = vmatprep.subr.bf16.mxu0 0
    %3702 = vmatpush1.bf16.msra.mxu0 0
    %3703 = vmatprep.subr.bf16.mxu0 0
    %3704 = vmatpush1.bf16.msra.mxu0 0
    %3705 = vmatprep.subr.bf16.mxu0 0
    %3706 = vmatpush1.bf16.msra.mxu0 0
    %3707 = vmatprep.subr.bf16.mxu0 0
    %3708 = vmatpush1.bf16.msra.mxu0 0
    %3709 = vmatprep.mubr.bf16.mxu0 0
    %3710 = vmatmul.mubr.bf16.gmra.mrb[0].mxu0 %v3675
    %v3711 = vpop.f32.mrb[0].mxu0
    %v3712 = vadd.f32 %v3607, %v3711
    %v3713 = vpop.f32.mrb[0].mxu0
    %v3714 = vadd.f32 %v3611, %v3713
    %v3715 = vpop.f32.mrb[0].mxu0
    %v3716 = vpop.f32.mrb[0].mxu0
    %3717 = vdwg.mxu0
    %3719 = vrot.lane.b32.xlu0 %v3712, 32
    %v3720 = vpop.permute.xlu0 %3719
    %v3722 = vadd.f32 %v3712, %v3720
    %v3723 = vtanh.pop %v3722
    %v3724 = vmul.f32 %v3723, 0.5
    %v3725 = vadd.f32 %v3724, 0.5
    %3727 = vrot.lane.b32.xlu0 %v3714, 32
    %v3728 = vpop.permute.xlu0 %3727
    %v3730 = vadd.f32 %v3712, %v3728
    %v3731 = vtanh.pop %v3730
    %v3732 = vmul.f32 %v3731, 0.5
    %v3733 = vadd.f32 %v3732, 0.5
    %3734 = vrot.lane.b32.xlu0 %v3714, 96
    %v3735 = vpop.permute.xlu0 %3734
    %v3737 = vmul.f32 %v3725, %v3735
    %3739 = vrot.lane.b32.xlu0 %v3737, 64
    %v3740 = vpop.permute.xlu0 %3739
    %v3742 = vadd.f32 %v3712, %v3740
    %v3743 = vtanh.pop %v3742
    %v3744 = vsub.f32 1.0, %v3733
    %3746 = vrot.lane.b32.xlu0 %v3743, 96
    %v3747 = vpop.permute.xlu0 %3746
    %v3749 = vmul.f32 %v3744, %v3747
    %v3750 = vmul.f32 %v3733, %v2867
    %v3751 = vadd.f32 %v3749, %v3750
    %3753 = vrot.lane.b32.xlu0 %v3751, 96
    %v3754 = vpop.permute.xlu0 %3753
    %3756 = vrot.lane.b32.xlu0 %v3144, 32
    %v3757 = vpop.permute.xlu0 %3756
    %3760 = vrot.lane.b32.xlu0 %v3175, 40
    %v3761 = vpop.permute.xlu0 %3760
    %v3763 = vsel %vm210, %v3754, %v3757
    %v3764 = vsel %vm212, %v3763, %v3761
    %v3765 = vld [vmem:[#allocation2 + $0xc0] sm:$0xff]
    %v3766 = vld [vmem:[#allocation2 + $0xc8] sm:$0xff]
    %v3767 = vld [vmem:[#allocation2 + $0xd0] sm:$0xff]
    %v3768 = vld [vmem:[#allocation2 + $0xd8] sm:$0xff]
    %v3769 = vld [vmem:[#allocation2 + $0xe0] sm:$0xff]
    %v3770 = vld [vmem:[#allocation2 + $0xe8] sm:$0xff]
    %v3771 = vpack.c.bf16 %v3764, %v3764
    %v3778 = vunpack.c.l.b16 %v3765
    %v3779 = vunpack.c.h.b16 %v3765
    %v3780 = vunpack.c.l.b16 %v3766
    %v3781 = vunpack.c.h.b16 %v3766
    %v3782 = vunpack.c.l.b16 %v3767
    %v3783 = vunpack.c.h.b16 %v3767
    %v3784 = vunpack.c.l.b16 %v3768
    %v3785 = vunpack.c.h.b16 %v3768
    %v3786 = vunpack.c.l.b16 %v3769
    %v3787 = vunpack.c.h.b16 %v3769
    %v3788 = vunpack.c.l.b16 %v3770
    %v3789 = vunpack.c.h.b16 %v3770
    %v3790 = vpack.c.b16 %v3780, %v3778
    %v3791 = vpack.c.b16 %v3781, %v3779
    %v3792 = vpack.c.b16 %v3784, %v3782
    %v3793 = vpack.c.b16 %v3785, %v3783
    %v3794 = vpack.c.b16 %v3788, %v3786
    %v3795 = vpack.c.b16 %v3789, %v3787
    %v3803 = vsel %vm262, %v3771, 0
    %3805 = vmatprep.subr.bf16.mxu0 %v3791
    %3806 = vmatpush1.bf16.msra.mxu0 %v3790
    %3807 = vmatprep.subr.bf16.mxu0 %v3793
    %3808 = vmatpush1.bf16.msra.mxu0 %v3792
    %3809 = vmatprep.subr.bf16.mxu0 %v3795
    %3810 = vmatpush1.bf16.msra.mxu0 %v3794
    %3811 = vmatprep.subr.bf16.mxu0 0
    %3812 = vmatpush1.bf16.msra.mxu0 0
    %3813 = vmatprep.subr.bf16.mxu0 0
    %3814 = vmatpush1.bf16.msra.mxu0 0
    %3815 = vmatprep.subr.bf16.mxu0 0
    %3816 = vmatpush1.bf16.msra.mxu0 0
    %3817 = vmatprep.subr.bf16.mxu0 0
    %3818 = vmatpush1.bf16.msra.mxu0 0
    %3819 = vmatprep.subr.bf16.mxu0 0
    %3820 = vmatpush1.bf16.msra.mxu0 0
    %3821 = vmatprep.subr.bf16.mxu0 0
    %3822 = vmatpush1.bf16.msra.mxu0 0
    %3823 = vmatprep.subr.bf16.mxu0 0
    %3824 = vmatpush1.bf16.msra.mxu0 0
    %3825 = vmatprep.subr.bf16.mxu0 0
    %3826 = vmatpush1.bf16.msra.mxu0 0
    %3827 = vmatprep.subr.bf16.mxu0 0
    %3828 = vmatpush1.bf16.msra.mxu0 0
    %3829 = vmatprep.subr.bf16.mxu0 0
    %3830 = vmatpush1.bf16.msra.mxu0 0
    %3831 = vmatprep.subr.bf16.mxu0 0
    %3832 = vmatpush1.bf16.msra.mxu0 0
    %3833 = vmatprep.subr.bf16.mxu0 0
    %3834 = vmatpush1.bf16.msra.mxu0 0
    %3835 = vmatprep.subr.bf16.mxu0 0
    %3836 = vmatpush1.bf16.msra.mxu0 0
    %3837 = vmatprep.mubr.bf16.mxu0 0
    %3838 = vmatmul.mubr.bf16.gmra.mrb[0].mxu0 %v3803
    %v3839 = vpop.f32.mrb[0].mxu0
    %v3840 = vadd.f32 %v258, %v3839
    %v3841 = vpop.f32.mrb[0].mxu0
    %v3842 = vadd.f32 %v259, %v3841
    %v3843 = vpop.f32.mrb[0].mxu0
    %v3844 = vpop.f32.mrb[0].mxu0
    %3845 = vdwg.mxu0
    %v3846 = vtanh.pop %v3840
    %v3847 = vtanh.pop %v3842
    %v3848 = vld [vmem:[#allocation2 + $0xf0] sm:$0xf]
    %v3849 = vld [vmem:[#allocation2 + $0xf8] sm:$0xf]
    %v3850 = vld [vmem:[#allocation2 + $0x100] sm:$0xf]
    %v3851 = vld [vmem:[#allocation2 + $0x108] sm:$0xf]
    %v3852 = vld [vmem:[#allocation2 + $0x110] sm:$0xf]
    %v3853 = vld [vmem:[#allocation2 + $0x118] sm:$0xf]
    %v3854 = vld [vmem:[#allocation2 + $0x120] sm:$0xf]
    %v3855 = vld [vmem:[#allocation2 + $0x128] sm:$0xf]
    %v3856 = vld [vmem:[#allocation2 + $0x130] sm:$0xf]
    %v3857 = vld [vmem:[#allocation2 + $0x138] sm:$0xf]
    %v3858 = vld [vmem:[#allocation2 + $0x140] sm:$0xf]
    %v3859 = vld [vmem:[#allocation2 + $0x148] sm:$0xf]
    %v3860 = vld [vmem:[#allocation2 + $0x150] sm:$0xf]
    %v3861 = vld [vmem:[#allocation2 + $0x158] sm:$0xf]
    %v3862 = vld [vmem:[#allocation2 + $0x160] sm:$0xf]
    %v3863 = vld [vmem:[#allocation2 + $0x168] sm:$0xf]
    %v3864 = vld [vmem:[#allocation2 + $0x170] sm:$0xf]
    %v3865 = vld [vmem:[#allocation2 + $0x178] sm:$0xf]
    %v3866 = vld [vmem:[#allocation2 + $0x180] sm:$0xf]
    %v3867 = vld [vmem:[#allocation2 + $0x188] sm:$0xf]
    %v3868 = vld [vmem:[#allocation2 + $0x190] sm:$0xf]
    %v3869 = vld [vmem:[#allocation2 + $0x198] sm:$0xf]
    %v3870 = vld [vmem:[#allocation2 + $0x1a0] sm:$0xf]
    %v3871 = vld [vmem:[#allocation2 + $0x1a8] sm:$0xf]
    %v3872 = vld [vmem:[#allocation2 + $0x1b0] sm:$0xf]
    %v3873 = vld [vmem:[#allocation2 + $0x1b8] sm:$0xf]
    %v3874 = vld [vmem:[#allocation2 + $0x1c0] sm:$0xf]
    %v3875 = vld [vmem:[#allocation2 + $0x1c8] sm:$0xf]
    %v3876 = vld [vmem:[#allocation2 + $0x1d0] sm:$0xf]
    %v3877 = vld [vmem:[#allocation2 + $0x1d8] sm:$0xf]
    %v3878 = vld [vmem:[#allocation2 + $0x1e0] sm:$0xf]
    %v3879 = vld [vmem:[#allocation2 + $0x1e8] sm:$0xf]
    %v3880 = vpack.c.bf16 %v3846, %v3846
    %v3881 = vpack.c.bf16 %v3847, %v3847
    %v3914 = vunpack.c.l.b16 %v3848
    %v3915 = vunpack.c.l.b16 %v3849
    %v3916 = vunpack.c.l.b16 %v3850
    %v3917 = vunpack.c.l.b16 %v3851
    %v3918 = vunpack.c.l.b16 %v3852
    %v3919 = vunpack.c.l.b16 %v3853
    %v3920 = vunpack.c.l.b16 %v3854
    %v3921 = vunpack.c.l.b16 %v3855
    %v3922 = vunpack.c.l.b16 %v3856
    %v3923 = vunpack.c.l.b16 %v3857
    %v3924 = vunpack.c.l.b16 %v3858
    %v3925 = vunpack.c.l.b16 %v3859
    %v3926 = vunpack.c.l.b16 %v3860
    %v3927 = vunpack.c.l.b16 %v3861
    %v3928 = vunpack.c.l.b16 %v3862
    %v3929 = vunpack.c.l.b16 %v3863
    %v3930 = vunpack.c.l.b16 %v3864
    %v3931 = vunpack.c.l.b16 %v3865
    %v3932 = vunpack.c.l.b16 %v3866
    %v3933 = vunpack.c.l.b16 %v3867
    %v3934 = vunpack.c.l.b16 %v3868
    %v3935 = vunpack.c.l.b16 %v3869
    %v3936 = vunpack.c.l.b16 %v3870
    %v3937 = vunpack.c.l.b16 %v3871
    %v3938 = vunpack.c.l.b16 %v3872
    %v3939 = vunpack.c.l.b16 %v3873
    %v3940 = vunpack.c.l.b16 %v3874
    %v3941 = vunpack.c.l.b16 %v3875
    %v3942 = vunpack.c.l.b16 %v3876
    %v3943 = vunpack.c.l.b16 %v3877
    %v3944 = vunpack.c.l.b16 %v3878
    %v3945 = vunpack.c.l.b16 %v3879
    %v3946 = vpack.c.b16 %v3915, %v3914
    %v3947 = vpack.c.b16 %v3917, %v3916
    %v3948 = vpack.c.b16 %v3919, %v3918
    %v3949 = vpack.c.b16 %v3921, %v3920
    %v3950 = vpack.c.b16 %v3923, %v3922
    %v3951 = vpack.c.b16 %v3925, %v3924
    %v3952 = vpack.c.b16 %v3927, %v3926
    %v3953 = vpack.c.b16 %v3929, %v3928
    %v3954 = vpack.c.b16 %v3931, %v3930
    %v3955 = vpack.c.b16 %v3933, %v3932
    %v3956 = vpack.c.b16 %v3935, %v3934
    %v3957 = vpack.c.b16 %v3937, %v3936
    %v3958 = vpack.c.b16 %v3939, %v3938
    %v3959 = vpack.c.b16 %v3941, %v3940
    %v3960 = vpack.c.b16 %v3943, %v3942
    %v3961 = vpack.c.b16 %v3945, %v3944
    %3978 = vmatprep.subr.bf16.mxu0 0
    %3979 = vmatpush1.bf16.msra.mxu0 %v3946
    %3980 = vmatprep.subr.bf16.mxu0 0
    %3981 = vmatpush1.bf16.msra.mxu0 %v3947
    %3982 = vmatprep.subr.bf16.mxu0 0
    %3983 = vmatpush1.bf16.msra.mxu0 %v3948
    %3984 = vmatprep.subr.bf16.mxu0 0
    %3985 = vmatpush1.bf16.msra.mxu0 %v3949
    %3986 = vmatprep.subr.bf16.mxu0 0
    %3987 = vmatpush1.bf16.msra.mxu0 %v3950
    %3988 = vmatprep.subr.bf16.mxu0 0
    %3989 = vmatpush1.bf16.msra.mxu0 %v3951
    %3990 = vmatprep.subr.bf16.mxu0 0
    %3991 = vmatpush1.bf16.msra.mxu0 %v3952
    %3992 = vmatprep.subr.bf16.mxu0 0
    %3993 = vmatpush1.bf16.msra.mxu0 %v3953
    %3994 = vmatprep.subr.bf16.mxu0 0
    %3995 = vmatpush1.bf16.msra.mxu0 %v3954
    %3996 = vmatprep.subr.bf16.mxu0 0
    %3997 = vmatpush1.bf16.msra.mxu0 %v3955
    %3998 = vmatprep.subr.bf16.mxu0 0
    %3999 = vmatpush1.bf16.msra.mxu0 %v3956
    %4000 = vmatprep.subr.bf16.mxu0 0
    %4001 = vmatpush1.bf16.msra.mxu0 %v3957
    %4002 = vmatprep.subr.bf16.mxu0 0
    %4003 = vmatpush1.bf16.msra.mxu0 %v3958
    %4004 = vmatprep.subr.bf16.mxu0 0
    %4005 = vmatpush1.bf16.msra.mxu0 %v3959
    %4006 = vmatprep.subr.bf16.mxu0 0
    %4007 = vmatpush1.bf16.msra.mxu0 %v3960
    %4008 = vmatprep.subr.bf16.mxu0 0
    %4009 = vmatpush1.bf16.msra.mxu0 %v3961
    %4010 = vmatprep.mubr.bf16.mxu0 %v3881
    %4011 = vmatmul.mubr.bf16.gmra.mrb[0].mxu0 %v3880
    %v4012 = vpop.f32.mrb[0].mxu0
    %v4013 = vadd.f32 %v39, %v4012
    %v4014 = vpop.f32.mrb[0].mxu0
    %v4015 = vpop.f32.mrb[0].mxu0
    %v4016 = vpop.f32.mrb[0].mxu0
    %4017 = vdwg.mxu0
    %v4018 = vsel %vm479, %v4013, -inf
    %4019 = vmax.xlane.f32.xlu0 %v4018
    %v4020 = vpop.xlane.xlu0 %4019
    %v4021 = vsub.f32 %v4013, %v4020
    %v4022 = vmul.f32 %v4021, 1.442695
    %v4023 = vpow.pop %v4022
    %v4024 = vsel %vm479, %v4023, 0.0
    %4025 = vadd.xlane.f32.xlu0 %v4024
    %v4026 = vpop.xlane.xlu0 %4025
    %v4027 = vrcp.pop %v4026
    %v4028 = vmul.f32 %v4023, %v4027
    %v4029 = vlaneseq
    %v4030 = vshrl.u32 %v4029, 7
    %v4031 = vsub.s32 0, %v4030
    %v4032 = vrot.slane %v4028, %v4031
    %4034 = vbcast.lane.b32.xlu0 %v4032, 256
    %v4035 = vpop.permute.xlu0 %4034
    %v4036 = vlaneseq
    %v4037 = vshrl.u32 %v4036, 7
    %v4038 = vsub.s32 1, %v4037
    %v4039 = vrot.slane %v4028, %v4038
    %4041 = vbcast.lane.b32.xlu0 %v4039, 256
    %v4042 = vpop.permute.xlu0 %4041
    %v4043 = vmul.f32 %v4035, %v40
    %v4044 = vmul.f32 %v4042, %v41
    %v4045 = vsel %vm210, %v4043, 0.0
    %v4046 = vrot.slane %v4045, 4
    %v4047 = vadd.f32 %v4045, %v4046
    %v4048 = vrot.slane %v4047, 2
    %v4049 = vadd.f32 %v4047, %v4048
    %v4050 = vrot.slane %v4049, 1
    %v4051 = vadd.f32 %v4049, %v4050
    %v4052 = vsel %vm210, %v4044, 0.0
    %v4053 = vrot.slane %v4052, 4
    %v4054 = vadd.f32 %v4052, %v4053
    %v4055 = vrot.slane %v4054, 2
    %v4056 = vadd.f32 %v4054, %v4055
    %v4057 = vrot.slane %v4056, 1
    %v4058 = vadd.f32 %v4056, %v4057
    %v4059 = vadd.f32 %v3175, %v4028
    %v4062 = vsel %vm524, %v4058, %v4051
    %4063 = vrot.lane.b32.xlu0 %v4062, 32
    %v4064 = vpop.permute.xlu0 %4063
    %4066 = vrot.lane.b32.xlu0 %v3349, 32
    %v4067 = vpop.permute.xlu0 %4066
    %v4069 = vsel %vm210, %v3754, %v4064
    %v4070 = vsel %vm530, %v4069, %v4067
    %v4071 = vld [vmem:[#allocation2 + $0x60] sm:$0xff]
    %v4072 = vld [vmem:[#allocation2 + $0x68] sm:$0xff]
    %v4073 = vld [vmem:[#allocation2 + $0x70] sm:$0xff]
    %v4074 = vld [vmem:[#allocation2 + $0x78] sm:$0xff]
    %v4075 = vld [vmem:[#allocation2 + $0x80] sm:$0xff]
    %v4076 = vld [vmem:[#allocation2 + $0x88] sm:$0xff]
    %v4077 = vld [vmem:[#allocation2 + $0x90] sm:$0xff]
    %v4078 = vld [vmem:[#allocation2 + $0x98] sm:$0xff]
    %v4079 = vld [vmem:[#allocation2 + $0xa0] sm:$0xff]
    %v4080 = vld [vmem:[#allocation2 + $0xa8] sm:$0xff]
    %v4081 = vld [vmem:[#allocation2 + $0xb0] sm:$0xff]
    %v4082 = vld [vmem:[#allocation2 + $0xb8] sm:$0xff]
    %v4083 = vld [vmem:[%s544] ss:$4 sm:$0x3]
    %v4084 = vpack.c.bf16 %v4070, %v4070
    %v4086 = vlaneseq
    %v4087 = vshrl.u32 %v4086, 7
    %v4088 = vsub.s32 0, %v4087
    %v4089 = vrot.slane %v4083, %v4088
    %v4090 = vlaneseq
    %v4091 = vshrl.u32 %v4090, 7
    %v4092 = vsub.s32 1, %v4091
    %v4093 = vrot.slane %v4083, %v4092
    %v4108 = vunpack.c.l.b16 %v4071
    %v4109 = vunpack.c.h.b16 %v4071
    %v4110 = vunpack.c.l.b16 %v4072
    %v4111 = vunpack.c.h.b16 %v4072
    %v4112 = vunpack.c.l.b16 %v4073
    %v4113 = vunpack.c.h.b16 %v4073
    %v4114 = vunpack.c.l.b16 %v4074
    %v4115 = vunpack.c.h.b16 %v4074
    %v4116 = vunpack.c.l.b16 %v4075
    %v4117 = vunpack.c.h.b16 %v4075
    %v4118 = vunpack.c.l.b16 %v4076
    %v4119 = vunpack.c.h.b16 %v4076
    %v4120 = vunpack.c.l.b16 %v4077
    %v4121 = vunpack.c.h.b16 %v4077
    %v4122 = vunpack.c.l.b16 %v4078
    %v4123 = vunpack.c.h.b16 %v4078
    %v4124 = vunpack.c.l.b16 %v4079
    %v4125 = vunpack.c.h.b16 %v4079
    %v4126 = vunpack.c.l.b16 %v4080
    %v4127 = vunpack.c.h.b16 %v4080
    %v4128 = vunpack.c.l.b16 %v4081
    %v4129 = vunpack.c.h.b16 %v4081
    %v4130 = vunpack.c.l.b16 %v4082
    %v4131 = vunpack.c.h.b16 %v4082
    %v4132 = vpack.c.b16 %v4110, %v4108
    %v4133 = vpack.c.b16 %v4111, %v4109
    %v4134 = vpack.c.b16 %v4114, %v4112
    %v4135 = vpack.c.b16 %v4115, %v4113
    %v4136 = vpack.c.b16 %v4118, %v4116
    %v4137 = vpack.c.b16 %v4119, %v4117
    %v4138 = vpack.c.b16 %v4122, %v4120
    %v4139 = vpack.c.b16 %v4123, %v4121
    %v4140 = vpack.c.b16 %v4126, %v4124
    %v4141 = vpack.c.b16 %v4127, %v4125
    %v4142 = vpack.c.b16 %v4130, %v4128
    %v4143 = vpack.c.b16 %v4131, %v4129
    %v4157 = vsel %vm127, %v4084, 0
    %4159 = vmatprep.subr.bf16.mxu0 %v4133
    %4160 = vmatpush1.bf16.msra.mxu0 %v4132
    %4161 = vmatprep.subr.bf16.mxu0 %v4135
    %4162 = vmatpush1.bf16.msra.mxu0 %v4134
    %4163 = vmatprep.subr.bf16.mxu0 %v4137
    %4164 = vmatpush1.bf16.msra.mxu0 %v4136
    %4165 = vmatprep.subr.bf16.mxu0 %v4139
    %4166 = vmatpush1.bf16.msra.mxu0 %v4138
    %4167 = vmatprep.subr.bf16.mxu0 %v4141
    %4168 = vmatpush1.bf16.msra.mxu0 %v4140
    %4169 = vmatprep.subr.bf16.mxu0 %v4143
    %4170 = vmatpush1.bf16.msra.mxu0 %v4142
    %4171 = vmatprep.subr.bf16.mxu0 0
    %4172 = vmatpush1.bf16.msra.mxu0 0
    %4173 = vmatprep.subr.bf16.mxu0 0
    %4174 = vmatpush1.bf16.msra.mxu0 0
    %4175 = vmatprep.subr.bf16.mxu0 0
    %4176 = vmatpush1.bf16.msra.mxu0 0
    %4177 = vmatprep.subr.bf16.mxu0 0
    %4178 = vmatpush1.bf16.msra.mxu0 0
    %4179 = vmatprep.subr.bf16.mxu0 0
    %4180 = vmatpush1.bf16.msra.mxu0 0
    %4181 = vmatprep.subr.bf16.mxu0 0
    %4182 = vmatpush1.bf16.msra.mxu0 0
    %4183 = vmatprep.subr.bf16.mxu0 0
    %4184 = vmatpush1.bf16.msra.mxu0 0
    %4185 = vmatprep.subr.bf16.mxu0 0
    %4186 = vmatpush1.bf16.msra.mxu0 0
    %4187 = vmatprep.subr.bf16.mxu0 0
    %4188 = vmatpush1.bf16.msra.mxu0 0
    %4189 = vmatprep.subr.bf16.mxu0 0
    %4190 = vmatpush1.bf16.msra.mxu0 0
    %4191 = vmatprep.mubr.bf16.mxu0 0
    %4192 = vmatmul.mubr.bf16.gmra.mrb[0].mxu0 %v4157
    %v4193 = vpop.f32.mrb[0].mxu0
    %v4194 = vadd.f32 %v4089, %v4193
    %v4195 = vpop.f32.mrb[0].mxu0
    %v4196 = vadd.f32 %v4093, %v4195
    %v4197 = vpop.f32.mrb[0].mxu0
    %v4198 = vpop.f32.mrb[0].mxu0
    %4199 = vdwg.mxu0
    %4201 = vrot.lane.b32.xlu0 %v4194, 32
    %v4202 = vpop.permute.xlu0 %4201
    %v4204 = vadd.f32 %v4194, %v4202
    %v4205 = vtanh.pop %v4204
    %v4206 = vmul.f32 %v4205, 0.5
    %v4207 = vadd.f32 %v4206, 0.5
    %4209 = vrot.lane.b32.xlu0 %v4196, 32
    %v4210 = vpop.permute.xlu0 %4209
    %v4212 = vadd.f32 %v4194, %v4210
    %v4213 = vtanh.pop %v4212
    %v4214 = vmul.f32 %v4213, 0.5
    %v4215 = vadd.f32 %v4214, 0.5
    %4216 = vrot.lane.b32.xlu0 %v4196, 96
    %v4217 = vpop.permute.xlu0 %4216
    %v4219 = vmul.f32 %v4207, %v4217
    %4221 = vrot.lane.b32.xlu0 %v4219, 64
    %v4222 = vpop.permute.xlu0 %4221
    %v4224 = vadd.f32 %v4194, %v4222
    %v4225 = vtanh.pop %v4224
    %v4226 = vsub.f32 1.0, %v4215
    %4228 = vrot.lane.b32.xlu0 %v4225, 96
    %v4229 = vpop.permute.xlu0 %4228
    %v4231 = vmul.f32 %v4226, %v4229
    %v4232 = vmul.f32 %v4215, %v3349
    %v4233 = vadd.f32 %v4231, %v4232
    %v4234 = vld [vmem:[#allocation2 + $0x1f0] sm:$0xf]
    %v4235 = vld [vmem:[#allocation2 + $0x1f8] sm:$0xf]
    %v4236 = vld [vmem:[#allocation2 + $0x200] sm:$0xf]
    %v4237 = vld [vmem:[#allocation2 + $0x208] sm:$0xf]
    %v4238 = vld [vmem:[#allocation2 + $0x210] sm:$0xf]
    %v4239 = vld [vmem:[#allocation2 + $0x218] sm:$0xf]
    %v4240 = vld [vmem:[#allocation2 + $0x220] sm:$0xf]
    %v4241 = vld [vmem:[#allocation2 + $0x228] sm:$0xf]
    %v4242 = vld [vmem:[%s1 + $0x2] sm:$0x1]
    %4244 = vrot.lane.b32.xlu0 %v4233, 96
    %v4245 = vpop.permute.xlu0 %4244
    %v4247 = vsel %vm210, %v4245, %v4064
    %v4248 = vpack.c.bf16 %v4247, %v4247
    %v4249 = vlaneseq
    %v4250 = vshrl.u32 %v4249, 7
    %v4251 = vsub.s32 0, %v4250
    %v4252 = vrot.slane %v4242, %v4251
    %v4261 = vunpack.c.l.b16 %v4234
    %v4262 = vunpack.c.l.b16 %v4235
    %v4263 = vunpack.c.l.b16 %v4236
    %v4264 = vunpack.c.l.b16 %v4237
    %v4265 = vunpack.c.l.b16 %v4238
    %v4266 = vunpack.c.l.b16 %v4239
    %v4267 = vunpack.c.l.b16 %v4240
    %v4268 = vunpack.c.l.b16 %v4241
    %v4269 = vpack.c.b16 %v4262, %v4261
    %v4270 = vpack.c.b16 %v4264, %v4263
    %v4271 = vpack.c.b16 %v4266, %v4265
    %v4272 = vpack.c.b16 %v4268, %v4267
    %v4278 = vsel %vm530, %v4248, 0
    %4280 = vmatprep.subr.bf16.mxu0 0
    %4281 = vmatpush1.bf16.msra.mxu0 %v4269
    %4282 = vmatprep.subr.bf16.mxu0 0
    %4283 = vmatpush1.bf16.msra.mxu0 %v4270
    %4284 = vmatprep.subr.bf16.mxu0 0
    %4285 = vmatpush1.bf16.msra.mxu0 %v4271
    %4286 = vmatprep.subr.bf16.mxu0 0
    %4287 = vmatpush1.bf16.msra.mxu0 %v4272
    %4288 = vmatprep.subr.bf16.mxu0 0
    %4289 = vmatpush1.bf16.msra.mxu0 0
    %4290 = vmatprep.subr.bf16.mxu0 0
    %4291 = vmatpush1.bf16.msra.mxu0 0
    %4292 = vmatprep.subr.bf16.mxu0 0
    %4293 = vmatpush1.bf16.msra.mxu0 0
    %4294 = vmatprep.subr.bf16.mxu0 0
    %4295 = vmatpush1.bf16.msra.mxu0 0
    %4296 = vmatprep.subr.bf16.mxu0 0
    %4297 = vmatpush1.bf16.msra.mxu0 0
    %4298 = vmatprep.subr.bf16.mxu0 0
    %4299 = vmatpush1.bf16.msra.mxu0 0
    %4300 = vmatprep.subr.bf16.mxu0 0
    %4301 = vmatpush1.bf16.msra.mxu0 0
    %4302 = vmatprep.subr.bf16.mxu0 0
    %4303 = vmatpush1.bf16.msra.mxu0 0
    %4304 = vmatprep.subr.bf16.mxu0 0
    %4305 = vmatpush1.bf16.msra.mxu0 0
    %4306 = vmatprep.subr.bf16.mxu0 0
    %4307 = vmatpush1.bf16.msra.mxu0 0
    %4308 = vmatprep.subr.bf16.mxu0 0
    %4309 = vmatpush1.bf16.msra.mxu0 0
    %4310 = vmatprep.subr.bf16.mxu0 0
    %4311 = vmatpush1.bf16.msra.mxu0 0
    %4312 = vmatprep.mubr.bf16.mxu0 0
    %4313 = vmatmul.mubr.bf16.gmra.mrb[0].mxu0 %v4278
    %v4314 = vpop.f32.mrb[0].mxu0
    %v4315 = vadd.f32 %v4252, %v4314
    %v4316 = vpop.f32.mrb[0].mxu0
    %v4317 = vpop.f32.mrb[0].mxu0
    %v4318 = vpop.f32.mrb[0].mxu0
    %4319 = vdwg.mxu0
    %v4320 = vmax.f32 %v4315, 0.0
    %s4321 = scalar_lea.vmem %s4, 8
    %v4322 = vld [vmem:[%s4321] sm:$0x3]
    %4324 = vrot.lane.b32.xlu0 %v4322, 33
    %v4325 = vpop.permute.xlu0 %4324
    %v4327 = vmul.f32 %v4320, %v4325
    %v4330 = vunpack.c.l.s4 1966171168
    %v4331 = vunpack.c.0.s8 %v4330
    %v4332 = vlaneseq
    %v4333 = vshrl.u32 %v4332, 7
    %v4334 = vsub.s32 %v4331, %v4333
    %v4335 = vrot.slane %v4315, %v4334
    %v4336 = vcombine.high %v4335, %v4335
    %v4338 = vunpack.c.l.s4 1966171168
    %v4339 = vunpack.c.0.s8 %v4338
    %v4340 = vlaneseq
    %v4341 = vshrl.u32 %v4340, 7
    %v4342 = vsub.s32 %v4339, %v4341
    %v4343 = vrot.slane %v4335, %v4342
    %v4345 = vunpack.c.l.s4 1966171168
    %v4346 = vunpack.c.0.s8 %v4345
    %v4347 = vlaneseq
    %v4348 = vshrl.u32 %v4347, 7
    %v4349 = vsub.s32 %v4346, %v4348
    %v4350 = vrot.slane %v4336, %v4349
    %4353 = vst.msk [vmem:[%s5 + $0x4] sm:$0x1] %vm814, %v4343
    %4354 = vst.msk [vmem:[%s5 + $0xc] sm:$0x1] %vm814, %v4350
    %v4357 = vunpack.c.l.s4 1966171168
    %v4358 = vunpack.c.0.s8 %v4357
    %v4359 = vlaneseq
    %v4360 = vshrl.u32 %v4359, 7
    %v4361 = vsub.s32 %v4358, %v4360
    %v4362 = vrot.slane %v4028, %v4361
    %v4363 = vcombine.high %v4362, %v4362
    %v4365 = vunpack.c.l.s4 1966171168
    %v4366 = vunpack.c.0.s8 %v4365
    %v4367 = vlaneseq
    %v4368 = vshrl.u32 %v4367, 7
    %v4369 = vsub.s32 %v4366, %v4368
    %v4370 = vrot.slane %v4362, %v4369
    %v4372 = vunpack.c.l.s4 1966171168
    %v4373 = vunpack.c.0.s8 %v4372
    %v4374 = vlaneseq
    %v4375 = vshrl.u32 %v4374, 7
    %v4376 = vsub.s32 %v4373, %v4375
    %v4377 = vrot.slane %v4363, %v4376
    %4380 = vst.msk [vmem:[%s6 + $0x4] sm:$0x1] %vm842, %v4370
    %4381 = vst.msk [vmem:[%s6 + $0xc] sm:$0x1] %vm842, %v4377
    %v4382 = vlaneseq
    %v4383 = vshrl.u32 %v4382, 7
    %v4384 = vsub.s32 0, %v4383
    %v4385 = vrot.slane %v4343, %v4384
    %v4386 = vlaneseq
    %v4387 = vshrl.u32 %v4386, 7
    %v4388 = vsub.s32 0, %v4387
    %v4389 = vrot.slane %v4350, %v4388
    %4390 = vrot.lane.b32.xlu0 %v4385, 96
    %v4391 = vpop.permute.xlu0 %4390
    %4392 = vrot.lane.b32.xlu0 %v4389, 96
    %v4393 = vpop.permute.xlu0 %4392
    %4396 = vst.msk [vmem:[%s7 + $0x4] sm:$0x1] %vm859, %v4391
    %4397 = vst.msk [vmem:[%s7 + $0xc] sm:$0x1] %vm859, %v4393
    %v4398 = vld [vmem:[#allocation2 + $0x230] sm:$0xf]
    %v4399 = vld [vmem:[#allocation2 + $0x238] sm:$0xf]
    %v4400 = vld [vmem:[#allocation2 + $0x240] sm:$0xf]
    %v4401 = vld [vmem:[#allocation2 + $0x248] sm:$0xf]
    %v4402 = vpack.c.bf16 %v4327, %v4327
    %4404 = vrot.lane.b32.xlu0 %v4402, 95
    %v4405 = vpop.permute.xlu0 %4404
    %v4410 = vunpack.c.l.b16 %v4398
    %v4411 = vunpack.c.l.b16 %v4399
    %v4412 = vunpack.c.l.b16 %v4400
    %v4413 = vunpack.c.l.b16 %v4401
    %v4414 = vpack.c.b16 %v4411, %v4410
    %v4415 = vpack.c.b16 %v4413, %v4412
    %v4419 = vsel %vm210, %v4405, 0
    %4421 = vmatprep.subr.bf16.mxu0 0
    %4422 = vmatpush1.bf16.msra.mxu0 %v4414
    %4423 = vmatprep.subr.bf16.mxu0 0
    %4424 = vmatpush1.bf16.msra.mxu0 %v4415
    %4425 = vmatprep.subr.bf16.mxu0 0
    %4426 = vmatpush1.bf16.msra.mxu0 0
    %4427 = vmatprep.subr.bf16.mxu0 0
    %4428 = vmatpush1.bf16.msra.mxu0 0
    %4429 = vmatprep.subr.bf16.mxu0 0
    %4430 = vmatpush1.bf16.msra.mxu0 0
    %4431 = vmatprep.subr.bf16.mxu0 0
    %4432 = vmatpush1.bf16.msra.mxu0 0
    %4433 = vmatprep.subr.bf16.mxu0 0
    %4434 = vmatpush1.bf16.msra.mxu0 0
    %4435 = vmatprep.subr.bf16.mxu0 0
    %4436 = vmatpush1.bf16.msra.mxu0 0
    %4437 = vmatprep.subr.bf16.mxu0 0
    %4438 = vmatpush1.bf16.msra.mxu0 0
    %4439 = vmatprep.subr.bf16.mxu0 0
    %4440 = vmatpush1.bf16.msra.mxu0 0
    %4441 = vmatprep.subr.bf16.mxu0 0
    %4442 = vmatpush1.bf16.msra.mxu0 0
    %4443 = vmatprep.subr.bf16.mxu0 0
    %4444 = vmatpush1.bf16.msra.mxu0 0
    %4445 = vmatprep.subr.bf16.mxu0 0
    %4446 = vmatpush1.bf16.msra.mxu0 0
    %4447 = vmatprep.subr.bf16.mxu0 0
    %4448 = vmatpush1.bf16.msra.mxu0 0
    %4449 = vmatprep.subr.bf16.mxu0 0
    %4450 = vmatpush1.bf16.msra.mxu0 0
    %4451 = vmatprep.subr.bf16.mxu0 0
    %4452 = vmatpush1.bf16.msra.mxu0 0
    %4453 = vmatprep.mubr.bf16.mxu0 0
    %4454 = vmatmul.mubr.bf16.gmra.mrb[0].mxu0 %v4419
    %v4455 = vpop.f32.mrb[0].mxu0
    %v4456 = vadd.f32 0.0, %v4455
    %v4457 = vpop.f32.mrb[0].mxu0
    %v4458 = vpop.f32.mrb[0].mxu0
    %v4459 = vpop.f32.mrb[0].mxu0
    %4460 = vdwg.mxu0
    %v4461 = vmax.f32 %v4456, 0.0
    %v4462 = vld [vmem:[%s4321] sm:$0x3]
    %4464 = vrot.lane.b32.xlu0 %v4462, 96
    %v4465 = vpop.permute.xlu0 %4464
    %v4467 = vmul.f32 %v4461, %v4465
    %4468 = vrot.lane.b32.xlu0 %v3751, 32
    %v4469 = vpop.permute.xlu0 %4468
    %v4471 = vsel %vm210, %v4467, %v4064
    %v4472 = vsel %vm530, %v4471, %v4469
    %v4473 = vld [vmem:[#allocation2] sm:$0xff]
    %v4474 = vld [vmem:[#allocation2 + $0x8] sm:$0xff]
    %v4475 = vld [vmem:[#allocation2 + $0x10] sm:$0xff]
    %v4476 = vld [vmem:[#allocation2 + $0x18] sm:$0xff]
    %v4477 = vld [vmem:[#allocation2 + $0x20] sm:$0xff]
    %v4478 = vld [vmem:[#allocation2 + $0x28] sm:$0xff]
    %v4479 = vld [vmem:[#allocation2 + $0x30] sm:$0xff]
    %v4480 = vld [vmem:[#allocation2 + $0x38] sm:$0xff]
    %v4481 = vld [vmem:[#allocation2 + $0x40] sm:$0xff]
    %v4482 = vld [vmem:[#allocation2 + $0x48] sm:$0xff]
    %v4483 = vld [vmem:[#allocation2 + $0x50] sm:$0xff]
    %v4484 = vld [vmem:[#allocation2 + $0x58] sm:$0xff]
    %v4485 = vld [vmem:[%s1] ss:$4 sm:$0x3]
    %v4486 = vpack.c.bf16 %v4472, %v4472
    %v4488 = vlaneseq
    %v4489 = vshrl.u32 %v4488, 7
    %v4490 = vsub.s32 0, %v4489
    %v4491 = vrot.slane %v4485, %v4490
    %v4492 = vlaneseq
    %v4493 = vshrl.u32 %v4492, 7
    %v4494 = vsub.s32 1, %v4493
    %v4495 = vrot.slane %v4485, %v4494
    %v4510 = vunpack.c.l.b16 %v4473
    %v4511 = vunpack.c.h.b16 %v4473
    %v4512 = vunpack.c.l.b16 %v4474
    %v4513 = vunpack.c.h.b16 %v4474
    %v4514 = vunpack.c.l.b16 %v4475
    %v4515 = vunpack.c.h.b16 %v4475
    %v4516 = vunpack.c.l.b16 %v4476
    %v4517 = vunpack.c.h.b16 %v4476
    %v4518 = vunpack.c.l.b16 %v4477
    %v4519 = vunpack.c.h.b16 %v4477
    %v4520 = vunpack.c.l.b16 %v4478
    %v4521 = vunpack.c.h.b16 %v4478
    %v4522 = vunpack.c.l.b16 %v4479
    %v4523 = vunpack.c.h.b16 %v4479
    %v4524 = vunpack.c.l.b16 %v4480
    %v4525 = vunpack.c.h.b16 %v4480
    %v4526 = vunpack.c.l.b16 %v4481
    %v4527 = vunpack.c.h.b16 %v4481
    %v4528 = vunpack.c.l.b16 %v4482
    %v4529 = vunpack.c.h.b16 %v4482
    %v4530 = vunpack.c.l.b16 %v4483
    %v4531 = vunpack.c.h.b16 %v4483
    %v4532 = vunpack.c.l.b16 %v4484
    %v4533 = vunpack.c.h.b16 %v4484
    %v4534 = vpack.c.b16 %v4512, %v4510
    %v4535 = vpack.c.b16 %v4513, %v4511
    %v4536 = vpack.c.b16 %v4516, %v4514
    %v4537 = vpack.c.b16 %v4517, %v4515
    %v4538 = vpack.c.b16 %v4520, %v4518
    %v4539 = vpack.c.b16 %v4521, %v4519
    %v4540 = vpack.c.b16 %v4524, %v4522
    %v4541 = vpack.c.b16 %v4525, %v4523
    %v4542 = vpack.c.b16 %v4528, %v4526
    %v4543 = vpack.c.b16 %v4529, %v4527
    %v4544 = vpack.c.b16 %v4532, %v4530
    %v4545 = vpack.c.b16 %v4533, %v4531
    %v4559 = vsel %vm127, %v4486, 0
    %4561 = vmatprep.subr.bf16.mxu0 %v4535
    %4562 = vmatpush1.bf16.msra.mxu0 %v4534
    %4563 = vmatprep.subr.bf16.mxu0 %v4537
    %4564 = vmatpush1.bf16.msra.mxu0 %v4536
    %4565 = vmatprep.subr.bf16.mxu0 %v4539
    %4566 = vmatpush1.bf16.msra.mxu0 %v4538
    %4567 = vmatprep.subr.bf16.mxu0 %v4541
    %4568 = vmatpush1.bf16.msra.mxu0 %v4540
    %4569 = vmatprep.subr.bf16.mxu0 %v4543
    %4570 = vmatpush1.bf16.msra.mxu0 %v4542
    %4571 = vmatprep.subr.bf16.mxu0 %v4545
    %4572 = vmatpush1.bf16.msra.mxu0 %v4544
    %4573 = vmatprep.subr.bf16.mxu0 0
    %4574 = vmatpush1.bf16.msra.mxu0 0
    %4575 = vmatprep.subr.bf16.mxu0 0
    %4576 = vmatpush1.bf16.msra.mxu0 0
    %4577 = vmatprep.subr.bf16.mxu0 0
    %4578 = vmatpush1.bf16.msra.mxu0 0
    %4579 = vmatprep.subr.bf16.mxu0 0
    %4580 = vmatpush1.bf16.msra.mxu0 0
    %4581 = vmatprep.subr.bf16.mxu0 0
    %4582 = vmatpush1.bf16.msra.mxu0 0
    %4583 = vmatprep.subr.bf16.mxu0 0
    %4584 = vmatpush1.bf16.msra.mxu0 0
    %4585 = vmatprep.subr.bf16.mxu0 0
    %4586 = vmatpush1.bf16.msra.mxu0 0
    %4587 = vmatprep.subr.bf16.mxu0 0
    %4588 = vmatpush1.bf16.msra.mxu0 0
    %4589 = vmatprep.subr.bf16.mxu0 0
    %4590 = vmatpush1.bf16.msra.mxu0 0
    %4591 = vmatprep.subr.bf16.mxu0 0
    %4592 = vmatpush1.bf16.msra.mxu0 0
    %4593 = vmatprep.mubr.bf16.mxu0 0
    %4594 = vmatmul.mubr.bf16.gmra.mrb[0].mxu0 %v4559
    %v4595 = vpop.f32.mrb[0].mxu0
    %v4596 = vadd.f32 %v4491, %v4595
    %v4597 = vpop.f32.mrb[0].mxu0
    %v4598 = vadd.f32 %v4495, %v4597
    %v4599 = vpop.f32.mrb[0].mxu0
    %v4600 = vpop.f32.mrb[0].mxu0
    %4601 = vdwg.mxu0
    %4603 = vrot.lane.b32.xlu0 %v4596, 32
    %v4604 = vpop.permute.xlu0 %4603
    %v4606 = vadd.f32 %v4596, %v4604
    %v4607 = vtanh.pop %v4606
    %v4608 = vmul.f32 %v4607, 0.5
    %v4609 = vadd.f32 %v4608, 0.5
    %4611 = vrot.lane.b32.xlu0 %v4598, 32
    %v4612 = vpop.permute.xlu0 %4611
    %v4614 = vadd.f32 %v4596, %v4612
    %v4615 = vtanh.pop %v4614
    %v4616 = vmul.f32 %v4615, 0.5
    %v4617 = vadd.f32 %v4616, 0.5
    %4618 = vrot.lane.b32.xlu0 %v4598, 96
    %v4619 = vpop.permute.xlu0 %4618
    %v4621 = vmul.f32 %v4609, %v4619
    %4623 = vrot.lane.b32.xlu0 %v4621, 64
    %v4624 = vpop.permute.xlu0 %4623
    %v4626 = vadd.f32 %v4596, %v4624
    %v4627 = vtanh.pop %v4626
    %v4628 = vsub.f32 1.0, %v4617
    %4630 = vrot.lane.b32.xlu0 %v4627, 96
    %v4631 = vpop.permute.xlu0 %4630
    %v4633 = vmul.f32 %v4628, %v4631
    %v4634 = vmul.f32 %v4617, %v3751
    %v4635 = vadd.f32 %v4633, %v4634
    %4637 = vrot.lane.b32.xlu0 %v4635, 96
    %v4638 = vpop.permute.xlu0 %4637
    %4640 = vrot.lane.b32.xlu0 %v4028, 32
    %v4641 = vpop.permute.xlu0 %4640
    %4644 = vrot.lane.b32.xlu0 %v4059, 40
    %v4645 = vpop.permute.xlu0 %4644
    %v4647 = vsel %vm210, %v4638, %v4641
    %v4648 = vsel %vm212, %v4647, %v4645
    %v4649 = vld [vmem:[#allocation2 + $0xc0] sm:$0xff]
    %v4650 = vld [vmem:[#allocation2 + $0xc8] sm:$0xff]
    %v4651 = vld [vmem:[#allocation2 + $0xd0] sm:$0xff]
    %v4652 = vld [vmem:[#allocation2 + $0xd8] sm:$0xff]
    %v4653 = vld [vmem:[#allocation2 + $0xe0] sm:$0xff]
    %v4654 = vld [vmem:[#allocation2 + $0xe8] sm:$0xff]
    %v4655 = vpack.c.bf16 %v4648, %v4648
    %v4662 = vunpack.c.l.b16 %v4649
    %v4663 = vunpack.c.h.b16 %v4649
    %v4664 = vunpack.c.l.b16 %v4650
    %v4665 = vunpack.c.h.b16 %v4650
    %v4666 = vunpack.c.l.b16 %v4651
    %v4667 = vunpack.c.h.b16 %v4651
    %v4668 = vunpack.c.l.b16 %v4652
    %v4669 = vunpack.c.h.b16 %v4652
    %v4670 = vunpack.c.l.b16 %v4653
    %v4671 = vunpack.c.h.b16 %v4653
    %v4672 = vunpack.c.l.b16 %v4654
    %v4673 = vunpack.c.h.b16 %v4654
    %v4674 = vpack.c.b16 %v4664, %v4662
    %v4675 = vpack.c.b16 %v4665, %v4663
    %v4676 = vpack.c.b16 %v4668, %v4666
    %v4677 = vpack.c.b16 %v4669, %v4667
    %v4678 = vpack.c.b16 %v4672, %v4670
    %v4679 = vpack.c.b16 %v4673, %v4671
    %v4687 = vsel %vm262, %v4655, 0
    %4689 = vmatprep.subr.bf16.mxu0 %v4675
    %4690 = vmatpush1.bf16.msra.mxu0 %v4674
    %4691 = vmatprep.subr.bf16.mxu0 %v4677
    %4692 = vmatpush1.bf16.msra.mxu0 %v4676
    %4693 = vmatprep.subr.bf16.mxu0 %v4679
    %4694 = vmatpush1.bf16.msra.mxu0 %v4678
    %4695 = vmatprep.subr.bf16.mxu0 0
    %4696 = vmatpush1.bf16.msra.mxu0 0
    %4697 = vmatprep.subr.bf16.mxu0 0
    %4698 = vmatpush1.bf16.msra.mxu0 0
    %4699 = vmatprep.subr.bf16.mxu0 0
    %4700 = vmatpush1.bf16.msra.mxu0 0
    %4701 = vmatprep.subr.bf16.mxu0 0
    %4702 = vmatpush1.bf16.msra.mxu0 0
    %4703 = vmatprep.subr.bf16.mxu0 0
    %4704 = vmatpush1.bf16.msra.mxu0 0
    %4705 = vmatprep.subr.bf16.mxu0 0
    %4706 = vmatpush1.bf16.msra.mxu0 0
    %4707 = vmatprep.subr.bf16.mxu0 0
    %4708 = vmatpush1.bf16.msra.mxu0 0
    %4709 = vmatprep.subr.bf16.mxu0 0
    %4710 = vmatpush1.bf16.msra.mxu0 0
    %4711 = vmatprep.subr.bf16.mxu0 0
    %4712 = vmatpush1.bf16.msra.mxu0 0
    %4713 = vmatprep.subr.bf16.mxu0 0
    %4714 = vmatpush1.bf16.msra.mxu0 0
    %4715 = vmatprep.subr.bf16.mxu0 0
    %4716 = vmatpush1.bf16.msra.mxu0 0
    %4717 = vmatprep.subr.bf16.mxu0 0
    %4718 = vmatpush1.bf16.msra.mxu0 0
    %4719 = vmatprep.subr.bf16.mxu0 0
    %4720 = vmatpush1.bf16.msra.mxu0 0
    %4721 = vmatprep.mubr.bf16.mxu0 0
    %4722 = vmatmul.mubr.bf16.gmra.mrb[0].mxu0 %v4687
    %v4723 = vpop.f32.mrb[0].mxu0
    %v4724 = vadd.f32 %v258, %v4723
    %v4725 = vpop.f32.mrb[0].mxu0
    %v4726 = vadd.f32 %v259, %v4725
    %v4727 = vpop.f32.mrb[0].mxu0
    %v4728 = vpop.f32.mrb[0].mxu0
    %4729 = vdwg.mxu0
    %v4730 = vtanh.pop %v4724
    %v4731 = vtanh.pop %v4726
    %v4732 = vld [vmem:[#allocation2 + $0xf0] sm:$0xf]
    %v4733 = vld [vmem:[#allocation2 + $0xf8] sm:$0xf]
    %v4734 = vld [vmem:[#allocation2 + $0x100] sm:$0xf]
    %v4735 = vld [vmem:[#allocation2 + $0x108] sm:$0xf]
    %v4736 = vld [vmem:[#allocation2 + $0x110] sm:$0xf]
    %v4737 = vld [vmem:[#allocation2 + $0x118] sm:$0xf]
    %v4738 = vld [vmem:[#allocation2 + $0x120] sm:$0xf]
    %v4739 = vld [vmem:[#allocation2 + $0x128] sm:$0xf]
    %v4740 = vld [vmem:[#allocation2 + $0x130] sm:$0xf]
    %v4741 = vld [vmem:[#allocation2 + $0x138] sm:$0xf]
    %v4742 = vld [vmem:[#allocation2 + $0x140] sm:$0xf]
    %v4743 = vld [vmem:[#allocation2 + $0x148] sm:$0xf]
    %v4744 = vld [vmem:[#allocation2 + $0x150] sm:$0xf]
    %v4745 = vld [vmem:[#allocation2 + $0x158] sm:$0xf]
    %v4746 = vld [vmem:[#allocation2 + $0x160] sm:$0xf]
    %v4747 = vld [vmem:[#allocation2 + $0x168] sm:$0xf]
    %v4748 = vld [vmem:[#allocation2 + $0x170] sm:$0xf]
    %v4749 = vld [vmem:[#allocation2 + $0x178] sm:$0xf]
    %v4750 = vld [vmem:[#allocation2 + $0x180] sm:$0xf]
    %v4751 = vld [vmem:[#allocation2 + $0x188] sm:$0xf]
    %v4752 = vld [vmem:[#allocation2 + $0x190] sm:$0xf]
    %v4753 = vld [vmem:[#allocation2 + $0x198] sm:$0xf]
    %v4754 = vld [vmem:[#allocation2 + $0x1a0] sm:$0xf]
    %v4755 = vld [vmem:[#allocation2 + $0x1a8] sm:$0xf]
    %v4756 = vld [vmem:[#allocation2 + $0x1b0] sm:$0xf]
    %v4757 = vld [vmem:[#allocation2 + $0x1b8] sm:$0xf]
    %v4758 = vld [vmem:[#allocation2 + $0x1c0] sm:$0xf]
    %v4759 = vld [vmem:[#allocation2 + $0x1c8] sm:$0xf]
    %v4760 = vld [vmem:[#allocation2 + $0x1d0] sm:$0xf]
    %v4761 = vld [vmem:[#allocation2 + $0x1d8] sm:$0xf]
    %v4762 = vld [vmem:[#allocation2 + $0x1e0] sm:$0xf]
    %v4763 = vld [vmem:[#allocation2 + $0x1e8] sm:$0xf]
    %v4764 = vpack.c.bf16 %v4730, %v4730
    %v4765 = vpack.c.bf16 %v4731, %v4731
    %v4798 = vunpack.c.l.b16 %v4732
    %v4799 = vunpack.c.l.b16 %v4733
    %v4800 = vunpack.c.l.b16 %v4734
    %v4801 = vunpack.c.l.b16 %v4735
    %v4802 = vunpack.c.l.b16 %v4736
    %v4803 = vunpack.c.l.b16 %v4737
    %v4804 = vunpack.c.l.b16 %v4738
    %v4805 = vunpack.c.l.b16 %v4739
    %v4806 = vunpack.c.l.b16 %v4740
    %v4807 = vunpack.c.l.b16 %v4741
    %v4808 = vunpack.c.l.b16 %v4742
    %v4809 = vunpack.c.l.b16 %v4743
    %v4810 = vunpack.c.l.b16 %v4744
    %v4811 = vunpack.c.l.b16 %v4745
    %v4812 = vunpack.c.l.b16 %v4746
    %v4813 = vunpack.c.l.b16 %v4747
    %v4814 = vunpack.c.l.b16 %v4748
    %v4815 = vunpack.c.l.b16 %v4749
    %v4816 = vunpack.c.l.b16 %v4750
    %v4817 = vunpack.c.l.b16 %v4751
    %v4818 = vunpack.c.l.b16 %v4752
    %v4819 = vunpack.c.l.b16 %v4753
    %v4820 = vunpack.c.l.b16 %v4754
    %v4821 = vunpack.c.l.b16 %v4755
    %v4822 = vunpack.c.l.b16 %v4756
    %v4823 = vunpack.c.l.b16 %v4757
    %v4824 = vunpack.c.l.b16 %v4758
    %v4825 = vunpack.c.l.b16 %v4759
    %v4826 = vunpack.c.l.b16 %v4760
    %v4827 = vunpack.c.l.b16 %v4761
    %v4828 = vunpack.c.l.b16 %v4762
    %v4829 = vunpack.c.l.b16 %v4763
    %v4830 = vpack.c.b16 %v4799, %v4798
    %v4831 = vpack.c.b16 %v4801, %v4800
    %v4832 = vpack.c.b16 %v4803, %v4802
    %v4833 = vpack.c.b16 %v4805, %v4804
    %v4834 = vpack.c.b16 %v4807, %v4806
    %v4835 = vpack.c.b16 %v4809, %v4808
    %v4836 = vpack.c.b16 %v4811, %v4810
    %v4837 = vpack.c.b16 %v4813, %v4812
    %v4838 = vpack.c.b16 %v4815, %v4814
    %v4839 = vpack.c.b16 %v4817, %v4816
    %v4840 = vpack.c.b16 %v4819, %v4818
    %v4841 = vpack.c.b16 %v4821, %v4820
    %v4842 = vpack.c.b16 %v4823, %v4822
    %v4843 = vpack.c.b16 %v4825, %v4824
    %v4844 = vpack.c.b16 %v4827, %v4826
    %v4845 = vpack.c.b16 %v4829, %v4828
    %4862 = vmatprep.subr.bf16.mxu0 0
    %4863 = vmatpush1.bf16.msra.mxu0 %v4830
    %4864 = vmatprep.subr.bf16.mxu0 0
    %4865 = vmatpush1.bf16.msra.mxu0 %v4831
    %4866 = vmatprep.subr.bf16.mxu0 0
    %4867 = vmatpush1.bf16.msra.mxu0 %v4832
    %4868 = vmatprep.subr.bf16.mxu0 0
    %4869 = vmatpush1.bf16.msra.mxu0 %v4833
    %4870 = vmatprep.subr.bf16.mxu0 0
    %4871 = vmatpush1.bf16.msra.mxu0 %v4834
    %4872 = vmatprep.subr.bf16.mxu0 0
    %4873 = vmatpush1.bf16.msra.mxu0 %v4835
    %4874 = vmatprep.subr.bf16.mxu0 0
    %4875 = vmatpush1.bf16.msra.mxu0 %v4836
    %4876 = vmatprep.subr.bf16.mxu0 0
    %4877 = vmatpush1.bf16.msra.mxu0 %v4837
    %4878 = vmatprep.subr.bf16.mxu0 0
    %4879 = vmatpush1.bf16.msra.mxu0 %v4838
    %4880 = vmatprep.subr.bf16.mxu0 0
    %4881 = vmatpush1.bf16.msra.mxu0 %v4839
    %4882 = vmatprep.subr.bf16.mxu0 0
    %4883 = vmatpush1.bf16.msra.mxu0 %v4840
    %4884 = vmatprep.subr.bf16.mxu0 0
    %4885 = vmatpush1.bf16.msra.mxu0 %v4841
    %4886 = vmatprep.subr.bf16.mxu0 0
    %4887 = vmatpush1.bf16.msra.mxu0 %v4842
    %4888 = vmatprep.subr.bf16.mxu0 0
    %4889 = vmatpush1.bf16.msra.mxu0 %v4843
    %4890 = vmatprep.subr.bf16.mxu0 0
    %4891 = vmatpush1.bf16.msra.mxu0 %v4844
    %4892 = vmatprep.subr.bf16.mxu0 0
    %4893 = vmatpush1.bf16.msra.mxu0 %v4845
    %4894 = vmatprep.mubr.bf16.mxu0 %v4765
    %4895 = vmatmul.mubr.bf16.gmra.mrb[0].mxu0 %v4764
    %v4896 = vpop.f32.mrb[0].mxu0
    %v4897 = vadd.f32 %v39, %v4896
    %v4898 = vpop.f32.mrb[0].mxu0
    %v4899 = vpop.f32.mrb[0].mxu0
    %v4900 = vpop.f32.mrb[0].mxu0
    %4901 = vdwg.mxu0
    %v4902 = vsel %vm479, %v4897, -inf
    %4903 = vmax.xlane.f32.xlu0 %v4902
    %v4904 = vpop.xlane.xlu0 %4903
    %v4905 = vsub.f32 %v4897, %v4904
    %v4906 = vmul.f32 %v4905, 1.442695
    %v4907 = vpow.pop %v4906
    %v4908 = vsel %vm479, %v4907, 0.0
    %4909 = vadd.xlane.f32.xlu0 %v4908
    %v4910 = vpop.xlane.xlu0 %4909
    %v4911 = vrcp.pop %v4910
    %v4912 = vmul.f32 %v4907, %v4911
    %v4913 = vlaneseq
    %v4914 = vshrl.u32 %v4913, 7
    %v4915 = vsub.s32 0, %v4914
    %v4916 = vrot.slane %v4912, %v4915
    %4918 = vbcast.lane.b32.xlu0 %v4916, 256
    %v4919 = vpop.permute.xlu0 %4918
    %v4920 = vlaneseq
    %v4921 = vshrl.u32 %v4920, 7
    %v4922 = vsub.s32 1, %v4921
    %v4923 = vrot.slane %v4912, %v4922
    %4925 = vbcast.lane.b32.xlu0 %v4923, 256
    %v4926 = vpop.permute.xlu0 %4925
    %v4927 = vmul.f32 %v4919, %v40
    %v4928 = vmul.f32 %v4926, %v41
    %v4929 = vsel %vm210, %v4927, 0.0
    %v4930 = vrot.slane %v4929, 4
    %v4931 = vadd.f32 %v4929, %v4930
    %v4932 = vrot.slane %v4931, 2
    %v4933 = vadd.f32 %v4931, %v4932
    %v4934 = vrot.slane %v4933, 1
    %v4935 = vadd.f32 %v4933, %v4934
    %v4936 = vsel %vm210, %v4928, 0.0
    %v4937 = vrot.slane %v4936, 4
    %v4938 = vadd.f32 %v4936, %v4937
    %v4939 = vrot.slane %v4938, 2
    %v4940 = vadd.f32 %v4938, %v4939
    %v4941 = vrot.slane %v4940, 1
    %v4942 = vadd.f32 %v4940, %v4941
    %v4945 = vsel %vm524, %v4942, %v4935
    %4946 = vrot.lane.b32.xlu0 %v4945, 32
    %v4947 = vpop.permute.xlu0 %4946
    %4949 = vrot.lane.b32.xlu0 %v4233, 32
    %v4950 = vpop.permute.xlu0 %4949
    %v4952 = vsel %vm210, %v4638, %v4947
    %v4953 = vsel %vm530, %v4952, %v4950
    %v4954 = vld [vmem:[#allocation2 + $0x60] sm:$0xff]
    %v4955 = vld [vmem:[#allocation2 + $0x68] sm:$0xff]
    %v4956 = vld [vmem:[#allocation2 + $0x70] sm:$0xff]
    %v4957 = vld [vmem:[#allocation2 + $0x78] sm:$0xff]
    %v4958 = vld [vmem:[#allocation2 + $0x80] sm:$0xff]
    %v4959 = vld [vmem:[#allocation2 + $0x88] sm:$0xff]
    %v4960 = vld [vmem:[#allocation2 + $0x90] sm:$0xff]
    %v4961 = vld [vmem:[#allocation2 + $0x98] sm:$0xff]
    %v4962 = vld [vmem:[#allocation2 + $0xa0] sm:$0xff]
    %v4963 = vld [vmem:[#allocation2 + $0xa8] sm:$0xff]
    %v4964 = vld [vmem:[#allocation2 + $0xb0] sm:$0xff]
    %v4965 = vld [vmem:[#allocation2 + $0xb8] sm:$0xff]
    %v4966 = vld [vmem:[%s544] ss:$4 sm:$0x3]
    %v4967 = vpack.c.bf16 %v4953, %v4953
    %v4969 = vlaneseq
    %v4970 = vshrl.u32 %v4969, 7
    %v4971 = vsub.s32 0, %v4970
    %v4972 = vrot.slane %v4966, %v4971
    %v4973 = vlaneseq
    %v4974 = vshrl.u32 %v4973, 7
    %v4975 = vsub.s32 1, %v4974
    %v4976 = vrot.slane %v4966, %v4975
    %v4991 = vunpack.c.l.b16 %v4954
    %v4992 = vunpack.c.h.b16 %v4954
    %v4993 = vunpack.c.l.b16 %v4955
    %v4994 = vunpack.c.h.b16 %v4955
    %v4995 = vunpack.c.l.b16 %v4956
    %v4996 = vunpack.c.h.b16 %v4956
    %v4997 = vunpack.c.l.b16 %v4957
    %v4998 = vunpack.c.h.b16 %v4957
    %v4999 = vunpack.c.l.b16 %v4958
    %v5000 = vunpack.c.h.b16 %v4958
    %v5001 = vunpack.c.l.b16 %v4959
    %v5002 = vunpack.c.h.b16 %v4959
    %v5003 = vunpack.c.l.b16 %v4960
    %v5004 = vunpack.c.h.b16 %v4960
    %v5005 = vunpack.c.l.b16 %v4961
    %v5006 = vunpack.c.h.b16 %v4961
    %v5007 = vunpack.c.l.b16 %v4962
    %v5008 = vunpack.c.h.b16 %v4962
    %v5009 = vunpack.c.l.b16 %v4963
    %v5010 = vunpack.c.h.b16 %v4963
    %v5011 = vunpack.c.l.b16 %v4964
    %v5012 = vunpack.c.h.b16 %v4964
    %v5013 = vunpack.c.l.b16 %v4965
    %v5014 = vunpack.c.h.b16 %v4965
    %v5015 = vpack.c.b16 %v4993, %v4991
    %v5016 = vpack.c.b16 %v4994, %v4992
    %v5017 = vpack.c.b16 %v4997, %v4995
    %v5018 = vpack.c.b16 %v4998, %v4996
    %v5019 = vpack.c.b16 %v5001, %v4999
    %v5020 = vpack.c.b16 %v5002, %v5000
    %v5021 = vpack.c.b16 %v5005, %v5003
    %v5022 = vpack.c.b16 %v5006, %v5004
    %v5023 = vpack.c.b16 %v5009, %v5007
    %v5024 = vpack.c.b16 %v5010, %v5008
    %v5025 = vpack.c.b16 %v5013, %v5011
    %v5026 = vpack.c.b16 %v5014, %v5012
    %v5040 = vsel %vm127, %v4967, 0
    %5042 = vmatprep.subr.bf16.mxu0 %v5016
    %5043 = vmatpush1.bf16.msra.mxu0 %v5015
    %5044 = vmatprep.subr.bf16.mxu0 %v5018
    %5045 = vmatpush1.bf16.msra.mxu0 %v5017
    %5046 = vmatprep.subr.bf16.mxu0 %v5020
    %5047 = vmatpush1.bf16.msra.mxu0 %v5019
    %5048 = vmatprep.subr.bf16.mxu0 %v5022
    %5049 = vmatpush1.bf16.msra.mxu0 %v5021
    %5050 = vmatprep.subr.bf16.mxu0 %v5024
    %5051 = vmatpush1.bf16.msra.mxu0 %v5023
    %5052 = vmatprep.subr.bf16.mxu0 %v5026
    %5053 = vmatpush1.bf16.msra.mxu0 %v5025
    %5054 = vmatprep.subr.bf16.mxu0 0
    %5055 = vmatpush1.bf16.msra.mxu0 0
    %5056 = vmatprep.subr.bf16.mxu0 0
    %5057 = vmatpush1.bf16.msra.mxu0 0
    %5058 = vmatprep.subr.bf16.mxu0 0
    %5059 = vmatpush1.bf16.msra.mxu0 0
    %5060 = vmatprep.subr.bf16.mxu0 0
    %5061 = vmatpush1.bf16.msra.mxu0 0
    %5062 = vmatprep.subr.bf16.mxu0 0
    %5063 = vmatpush1.bf16.msra.mxu0 0
    %5064 = vmatprep.subr.bf16.mxu0 0
    %5065 = vmatpush1.bf16.msra.mxu0 0
    %5066 = vmatprep.subr.bf16.mxu0 0
    %5067 = vmatpush1.bf16.msra.mxu0 0
    %5068 = vmatprep.subr.bf16.mxu0 0
    %5069 = vmatpush1.bf16.msra.mxu0 0
    %5070 = vmatprep.subr.bf16.mxu0 0
    %5071 = vmatpush1.bf16.msra.mxu0 0
    %5072 = vmatprep.subr.bf16.mxu0 0
    %5073 = vmatpush1.bf16.msra.mxu0 0
    %5074 = vmatprep.mubr.bf16.mxu0 0
    %5075 = vmatmul.mubr.bf16.gmra.mrb[0].mxu0 %v5040
    %v5076 = vpop.f32.mrb[0].mxu0
    %v5077 = vadd.f32 %v4972, %v5076
    %v5078 = vpop.f32.mrb[0].mxu0
    %v5079 = vadd.f32 %v4976, %v5078
    %v5080 = vpop.f32.mrb[0].mxu0
    %v5081 = vpop.f32.mrb[0].mxu0
    %5082 = vdwg.mxu0
    %5084 = vrot.lane.b32.xlu0 %v5077, 32
    %v5085 = vpop.permute.xlu0 %5084
    %v5087 = vadd.f32 %v5077, %v5085
    %v5088 = vtanh.pop %v5087
    %v5089 = vmul.f32 %v5088, 0.5
    %v5090 = vadd.f32 %v5089, 0.5
    %5092 = vrot.lane.b32.xlu0 %v5079, 32
    %v5093 = vpop.permute.xlu0 %5092
    %v5095 = vadd.f32 %v5077, %v5093
    %v5096 = vtanh.pop %v5095
    %v5097 = vmul.f32 %v5096, 0.5
    %v5098 = vadd.f32 %v5097, 0.5
    %5099 = vrot.lane.b32.xlu0 %v5079, 96
    %v5100 = vpop.permute.xlu0 %5099
    %v5102 = vmul.f32 %v5090, %v5100
    %5104 = vrot.lane.b32.xlu0 %v5102, 64
    %v5105 = vpop.permute.xlu0 %5104
    %v5107 = vadd.f32 %v5077, %v5105
    %v5108 = vtanh.pop %v5107
    %v5109 = vsub.f32 1.0, %v5098
    %5111 = vrot.lane.b32.xlu0 %v5108, 96
    %v5112 = vpop.permute.xlu0 %5111
    %v5114 = vmul.f32 %v5109, %v5112
    %v5115 = vmul.f32 %v5098, %v4233
    %v5116 = vadd.f32 %v5114, %v5115
    %v5117 = vld [vmem:[#allocation2 + $0x1f0] sm:$0xf]
    %v5118 = vld [vmem:[#allocation2 + $0x1f8] sm:$0xf]
    %v5119 = vld [vmem:[#allocation2 + $0x200] sm:$0xf]
    %v5120 = vld [vmem:[#allocation2 + $0x208] sm:$0xf]
    %v5121 = vld [vmem:[#allocation2 + $0x210] sm:$0xf]
    %v5122 = vld [vmem:[#allocation2 + $0x218] sm:$0xf]
    %v5123 = vld [vmem:[#allocation2 + $0x220] sm:$0xf]
    %v5124 = vld [vmem:[#allocation2 + $0x228] sm:$0xf]
    %v5125 = vld [vmem:[%s1 + $0x2] sm:$0x1]
    %5127 = vrot.lane.b32.xlu0 %v5116, 96
    %v5128 = vpop.permute.xlu0 %5127
    %v5130 = vsel %vm210, %v5128, %v4947
    %v5131 = vpack.c.bf16 %v5130, %v5130
    %v5132 = vlaneseq
    %v5133 = vshrl.u32 %v5132, 7
    %v5134 = vsub.s32 0, %v5133
    %v5135 = vrot.slane %v5125, %v5134
    %v5144 = vunpack.c.l.b16 %v5117
    %v5145 = vunpack.c.l.b16 %v5118
    %v5146 = vunpack.c.l.b16 %v5119
    %v5147 = vunpack.c.l.b16 %v5120
    %v5148 = vunpack.c.l.b16 %v5121
    %v5149 = vunpack.c.l.b16 %v5122
    %v5150 = vunpack.c.l.b16 %v5123
    %v5151 = vunpack.c.l.b16 %v5124
    %v5152 = vpack.c.b16 %v5145, %v5144
    %v5153 = vpack.c.b16 %v5147, %v5146
    %v5154 = vpack.c.b16 %v5149, %v5148
    %v5155 = vpack.c.b16 %v5151, %v5150
    %v5161 = vsel %vm530, %v5131, 0
    %5163 = vmatprep.subr.bf16.mxu0 0
    %5164 = vmatpush1.bf16.msra.mxu0 %v5152
    %5165 = vmatprep.subr.bf16.mxu0 0
    %5166 = vmatpush1.bf16.msra.mxu0 %v5153
    %5167 = vmatprep.subr.bf16.mxu0 0
    %5168 = vmatpush1.bf16.msra.mxu0 %v5154
    %5169 = vmatprep.subr.bf16.mxu0 0
    %5170 = vmatpush1.bf16.msra.mxu0 %v5155
    %5171 = vmatprep.subr.bf16.mxu0 0
    %5172 = vmatpush1.bf16.msra.mxu0 0
    %5173 = vmatprep.subr.bf16.mxu0 0
    %5174 = vmatpush1.bf16.msra.mxu0 0
    %5175 = vmatprep.subr.bf16.mxu0 0
    %5176 = vmatpush1.bf16.msra.mxu0 0
    %5177 = vmatprep.subr.bf16.mxu0 0
    %5178 = vmatpush1.bf16.msra.mxu0 0
    %5179 = vmatprep.subr.bf16.mxu0 0
    %5180 = vmatpush1.bf16.msra.mxu0 0
    %5181 = vmatprep.subr.bf16.mxu0 0
    %5182 = vmatpush1.bf16.msra.mxu0 0
    %5183 = vmatprep.subr.bf16.mxu0 0
    %5184 = vmatpush1.bf16.msra.mxu0 0
    %5185 = vmatprep.subr.bf16.mxu0 0
    %5186 = vmatpush1.bf16.msra.mxu0 0
    %5187 = vmatprep.subr.bf16.mxu0 0
    %5188 = vmatpush1.bf16.msra.mxu0 0
    %5189 = vmatprep.subr.bf16.mxu0 0
    %5190 = vmatpush1.bf16.msra.mxu0 0
    %5191 = vmatprep.subr.bf16.mxu0 0
    %5192 = vmatpush1.bf16.msra.mxu0 0
    %5193 = vmatprep.subr.bf16.mxu0 0
    %5194 = vmatpush1.bf16.msra.mxu0 0
    %5195 = vmatprep.mubr.bf16.mxu0 0
    %5196 = vmatmul.mubr.bf16.gmra.mrb[0].mxu0 %v5161
    %v5197 = vpop.f32.mrb[0].mxu0
    %v5198 = vadd.f32 %v5135, %v5197
    %v5199 = vpop.f32.mrb[0].mxu0
    %v5200 = vpop.f32.mrb[0].mxu0
    %v5201 = vpop.f32.mrb[0].mxu0
    %5202 = vdwg.mxu0
    %v5205 = vunpack.c.l.s4 1966171168
    %v5206 = vunpack.c.0.s8 %v5205
    %v5207 = vlaneseq
    %v5208 = vshrl.u32 %v5207, 7
    %v5209 = vsub.s32 %v5206, %v5208
    %v5210 = vrot.slane %v5198, %v5209
    %v5211 = vcombine.high %v5210, %v5210
    %v5213 = vunpack.c.l.s4 1966171168
    %v5214 = vunpack.c.0.s8 %v5213
    %v5215 = vlaneseq
    %v5216 = vshrl.u32 %v5215, 7
    %v5217 = vsub.s32 %v5214, %v5216
    %v5218 = vrot.slane %v5210, %v5217
    %v5220 = vunpack.c.l.s4 1966171168
    %v5221 = vunpack.c.0.s8 %v5220
    %v5222 = vlaneseq
    %v5223 = vshrl.u32 %v5222, 7
    %v5224 = vsub.s32 %v5221, %v5223
    %v5225 = vrot.slane %v5211, %v5224
    %5228 = vst.msk [vmem:[%s5 + $0x5] sm:$0x1] %vm814, %v5218
    %5229 = vst.msk [vmem:[%s5 + $0xd] sm:$0x1] %vm814, %v5225
    %v5232 = vunpack.c.l.s4 1966171168
    %v5233 = vunpack.c.0.s8 %v5232
    %v5234 = vlaneseq
    %v5235 = vshrl.u32 %v5234, 7
    %v5236 = vsub.s32 %v5233, %v5235
    %v5237 = vrot.slane %v4912, %v5236
    %v5238 = vcombine.high %v5237, %v5237
    %v5240 = vunpack.c.l.s4 1966171168
    %v5241 = vunpack.c.0.s8 %v5240
    %v5242 = vlaneseq
    %v5243 = vshrl.u32 %v5242, 7
    %v5244 = vsub.s32 %v5241, %v5243
    %v5245 = vrot.slane %v5237, %v5244
    %v5247 = vunpack.c.l.s4 1966171168
    %v5248 = vunpack.c.0.s8 %v5247
    %v5249 = vlaneseq
    %v5250 = vshrl.u32 %v5249, 7
    %v5251 = vsub.s32 %v5248, %v5250
    %v5252 = vrot.slane %v5238, %v5251
    %5255 = vst.msk [vmem:[%s6 + $0x5] sm:$0x1] %vm842, %v5245
    %5256 = vst.msk [vmem:[%s6 + $0xd] sm:$0x1] %vm842, %v5252
    %v5257 = vlaneseq
    %v5258 = vshrl.u32 %v5257, 7
    %v5259 = vsub.s32 0, %v5258
    %v5260 = vrot.slane %v5218, %v5259
    %v5261 = vlaneseq
    %v5262 = vshrl.u32 %v5261, 7
    %v5263 = vsub.s32 0, %v5262
    %v5264 = vrot.slane %v5225, %v5263
    %5265 = vrot.lane.b32.xlu0 %v5260, 96
    %v5266 = vpop.permute.xlu0 %5265
    %5267 = vrot.lane.b32.xlu0 %v5264, 96
    %v5268 = vpop.permute.xlu0 %5267
    %5271 = vst.msk [vmem:[%s7 + $0x5] sm:$0x1] %vm859, %v5266
    %5272 = vst.msk [vmem:[%s7 + $0xd] sm:$0x1] %vm859, %v5268
    // Predicated region
    $region26: #{decoder_forward.1} parent=1 // pred_check
      _
    $region27: #{decoder_forward.1} parent=1 // pred_check_branch
      %5274 = sbr.rel (0) target = $region29
    $region28: #{decoder_forward.1} parent=1 // pred_region
      _
    $region29: #{decoder_forward.1} parent=1 // pred_fallthru
      _
    // Predicated region
    $region30: #{decoder_forward.1} parent=1 // pred_check
      _
    $region31: #{decoder_forward.1} parent=1 // pred_check_branch
      %5276 = sbr.rel (0) target = $region33
    $region32: #{decoder_forward.1} parent=1 // pred_region
      _
    $region33: #{decoder_forward.1} parent=1 // pred_fallthru
      _
    // Predicated region
    $region34: #{decoder_forward.1} parent=1 // pred_check
      _
    $region35: #{decoder_forward.1} parent=1 // pred_check_branch
      %5278 = sbr.rel (0) target = $region37
    $region36: #{decoder_forward.1} parent=1 // pred_region
      _
    $region37: #{decoder_forward.1} parent=1 // pred_fallthru
      _
    // Predicated region
    $region38: #{decoder_forward.1} parent=1 // pred_check
      _
    $region39: #{decoder_forward.1} parent=1 // pred_check_branch
      %5280 = sbr.rel (0) target = $region41
    $region40: #{decoder_forward.1} parent=1 // pred_region
      _
    $region41: #{decoder_forward.1} parent=1 // pred_fallthru
      _
    // Predicated region
    $region42: #{decoder_forward.1} parent=1 // pred_check
      _
    $region43: #{decoder_forward.1} parent=1 // pred_check_branch
      %5282 = sbr.rel (0) target = $region45
    $region44: #{decoder_forward.1} parent=1 // pred_region
      _
    $region45: #{decoder_forward.1} parent=1 // pred_fallthru
      _
    // Predicated region
    $region46: #{decoder_forward.1} parent=1 // pred_check
      _
    $region47: #{decoder_forward.1} parent=1 // pred_check_branch
      %5284 = sbr.rel (0) target = $region49
    $region48: #{decoder_forward.1} parent=1 // pred_region
      _
    $region49: #{decoder_forward.1} parent=1 // pred_fallthru
      _
    %5285 = vsyncpa [#allocation3], 1

</llo_original>
